<compile_context>
chip_gen: v7x
topology: tpu7x:2x2x1
jax: 0.10.0
libtpu: 0.0.40
codegen_flags: <defaults>
</compile_context>

<pallas_src>
import jax
import jax.numpy as jnp
from jax.experimental import pallas as pl
from jax.experimental.pallas import tpu as pltpu


def _round_up(x, m):
    return (x + m - 1) // m * m


def _cdiv(a, b):
    return -(-a // b)


# ----------------------------------------------------------------------------
# Pallas kernel: tiled matmul + fused bias (1x1 convolutions)
# ----------------------------------------------------------------------------
def _matmul_bias_kernel(x_ref, w_ref, b_ref, o_ref):
    acc = jnp.dot(x_ref[...], w_ref[...], preferred_element_type=jnp.float32)
    o_ref[...] = (acc + b_ref[...]).astype(o_ref.dtype)


def pallas_matmul(a, w, bias=None, out_dtype=jnp.float32, tm=1024):
    """(M, K) @ (K, N) + bias.  M (tokens) tiled across a parallel grid; K and N (1x1-conv channel
    dims) stay whole per tile.  bf16 operands on the MXU, f32 accumulation.  NOTE: bf16 operands
    are a deliberate precision divergence from the f32 PyTorch conv (covered by the loose check)."""
    m, k = a.shape
    _, n = w.shape
    if bias is None:
        bias = jnp.zeros((n,), jnp.float32)

    # Lane-dense output stores: pad N up to a multiple of 128 only when the extra HBM store bytes
    # stay modest (<= 50%), e.g. qkv N=96 -> 128, but NOT proj N=32 -> 128 (4x store bytes).
    npad = n
    if n % 128 != 0:
        cand = _round_up(n, 128)
        if cand - n <= n // 2:
            npad = cand
    if npad != n:
        w = jnp.pad(w, ((0, 0), (0, npad - n)))
        bias = jnp.pad(bias, ((0, npad - n),))

    a = a.astype(jnp.bfloat16)
    w = w.astype(jnp.bfloat16)
    b2 = bias.reshape(1, npad).astype(jnp.float32)

    tm = min(tm, _round_up(m, 8))
    # Keep >= 2 grid steps when there is enough work so the "parallel" axis can shard across the
    # two v7x TensorCores; the extra ~0.35us grid-step overhead is negligible.
    if m >= 256 and _round_up(m, tm) // tm < 2:
        tm = _round_up(_cdiv(m, 2), 8)
    mp = _round_up(m, tm)
    if mp != m:
        a = jnp.pad(a, ((0, mp - m), (0, 0)))

    out_bytes = jnp.dtype(out_dtype).itemsize
    est = 2 * (tm * k * 2 + tm * npad * out_bytes) + k * npad * 2 + npad * 4
    vmem_limit = int(min(64 << 20, max(32 << 20, 2 * est)))

    out = pl.pallas_call(
        _matmul_bias_kernel,
        grid=(mp // tm,),
        in_specs=[
            pl.BlockSpec((tm, k), lambda i: (i, 0)),
            pl.BlockSpec((k, npad), lambda i: (0, 0)),
            pl.BlockSpec((1, npad), lambda i: (0, 0)),
        ],
        out_specs=pl.BlockSpec((tm, npad), lambda i: (i, 0)),
        out_shape=jax.ShapeDtypeStruct((mp, npad), out_dtype),
        compiler_params=pltpu.CompilerParams(
            dimension_semantics=("parallel",),
            vmem_limit_bytes=vmem_limit),
    )(a, w, b2)
    return out[:m, :n]


# ----------------------------------------------------------------------------
# Pallas kernel: overlapping-window attention (all heads per window, G windows per step)
# ----------------------------------------------------------------------------
def _ocab_attn_kernel(q_ref, k_ref, v_ref, lhw_ref, e_ref, o_ref):
    g, nq, inner = q_ref.shape
    nk = k_ref.shape[1]
    heads = lhw_ref.shape[1]
    two_owin = lhw_ref.shape[3]
    dh = inner // heads

    q = q_ref[...]                   # (g, nq, heads*dh) bf16, pre-scaled by dh**-0.5
    k = k_ref[...]                   # (g, nk, heads*dh) bf16
    v = v_ref[...]                   # (g, nk, heads*dh) bf16
    lhw = lhw_ref[...]               # (g, heads, nq, 2*owin) f32 decomposed rel-pos terms
    e = e_ref[...]                   # (2*owin, nk) f32 constant 0/1 expansion matrix
    ones_col = jnp.ones((nk, 1), jnp.float32)   # hoisted out of the head loop

    for h in range(heads):           # static unroll; heads is small
        lo = h * dh
        qh = q[:, :, lo:lo + dh]
        kh = k[:, :, lo:lo + dh]
        vh = v[:, :, lo:lo + dh]

        # QK^T on the MXU, f32 accumulation.
        attn = jnp.einsum("gqd,gkd->gqk", qh, kh, preferred_element_type=jnp.float32)

        # Rel-pos bias: expand the decomposed (lh | lw) terms to the dense (nq, nk) bias on the
        # otherwise-idle MXU:  bias[q, u*owin + v] = lh[q, u] + lw[q, v] = (lh|lw) @ E.
        lhw_h = lhw[:, h].reshape(g * nq, two_owin)
        bias = jnp.dot(lhw_h, e, preferred_element_type=jnp.float32).reshape(g, nq, nk)
        attn = attn + bias

        # Softmax: row max on the XLU, row sum as an MXU matvec (keeps the XLU mostly free).
        # Padded (all-zero) windows give a uniform softmax, never inf/NaN, and are sliced off.
        attn = attn - jnp.max(attn, axis=-1, keepdims=True)
        p = jnp.exp(attn)
        denom = jnp.dot(p.reshape(g * nq, nk), ones_col,
                        preferred_element_type=jnp.float32).reshape(g, nq, 1)
        p = p * pl.reciprocal(denom, approx=False)

        out_h = jnp.einsum("gqk,gkd->gqd", p.astype(vh.dtype), vh,
                           preferred_element_type=jnp.float32)
        # Direct slice store per head (no lane-dim concat / relayout).
        o_ref[:, :, lo:lo + dh] = out_h.astype(o_ref.dtype)


def _attn_tiling(bnw, nq, nk, inner, heads, owin, *, max_windows=32, min_steps=4,
                 vmem_budget=20 << 20):
    """Pick windows-per-step G and a VMEM limit for the attention pallas_call.
    Budget covers double-buffered q/k/v/out/lhw tiles plus per-head f32 attention transients.
    Keeping >= min_steps grid steps lets the parallel axis shard across v7x's two TensorCores."""
    io_bytes = (2 * nq * inner + 2 * nk * inner) * 2        # q, out, k, v (bf16)
    io_bytes += heads * nq * (2 * owin) * 4                 # decomposed rel-pos terms (f32)
    live_bytes = 3 * nq * nk * 4                            # attn / bias / p f32 transients
    per_win = 2 * io_bytes + live_bytes                     # x2: double-buffered pipeline tiles
    g_vmem = max(1, vmem_budget // per_win)
    g_steps = max(1, _cdiv(bnw, min_steps))
    g = int(max(1, min(max_windows, g_vmem, g_steps, bnw)))
    need = g * per_win + 2 * owin * nk * 4 + (2 << 20)
    vmem_limit = int(min(64 << 20, max(32 << 20, 2 * need)))
    return g, vmem_limit


def _bias_expand_matrix(owin):
    """(2*owin, nk) 0/1 matrix E with (lh | lw) @ E = dense bias, nk = owin*owin (row-major u,v)."""
    nk = owin * owin
    kk = jnp.arange(nk)
    rows = jnp.arange(owin)[:, None]
    e_row = (kk[None, :] // owin == rows).astype(jnp.float32)   # selects the key-row term lh
    e_col = (kk[None, :] % owin == rows).astype(jnp.float32)    # selects the key-col term lw
    return jnp.concatenate([e_row, e_col], axis=0)


def ocab_attention(q, k, v, lhw, *, owin):
    """q: (Bnw, nq, inner) scaled; k, v: (Bnw, nk, inner); lhw: (Bnw, heads, nq, 2*owin)."""
    bnw, nq, inner = q.shape
    nk = k.shape[1]
    heads = lhw.shape[1]
    g, vmem_limit = _attn_tiling(bnw, nq, nk, inner, heads, owin)
    bp = _round_up(bnw, g)

    def padw(t):
        if bp == bnw:
            return t
        return jnp.pad(t, ((0, bp - bnw),) + ((0, 0),) * (t.ndim - 1))

    qb = padw(q).astype(jnp.bfloat16)
    kb = padw(k).astype(jnp.bfloat16)
    vb = padw(v).astype(jnp.bfloat16)
    lb = padw(lhw).astype(jnp.float32)
    e = _bias_expand_matrix(owin)

    out = pl.pallas_call(
        _ocab_attn_kernel,
        grid=(bp // g,),
        in_specs=[
            pl.BlockSpec((g, nq, inner), lambda i: (i, 0, 0)),
            pl.BlockSpec((g, nk, inner), lambda i: (i, 0, 0)),
            pl.BlockSpec((g, nk, inner), lambda i: (i, 0, 0)),
            pl.BlockSpec((g, heads, nq, 2 * owin), lambda i: (i, 0, 0, 0)),
            pl.BlockSpec((2 * owin, nk), lambda i: (0, 0)),   # constant block -> fetched once
        ],
        out_specs=pl.BlockSpec((g, nq, inner), lambda i: (i, 0, 0)),
        out_shape=jax.ShapeDtypeStruct((bp, nq, inner), jnp.bfloat16),
        compiler_params=pltpu.CompilerParams(
            dimension_semantics=("parallel",),
            vmem_limit_bytes=vmem_limit),
    )(qb, kb, vb, lb, e)
    return out[:bnw]


# ----------------------------------------------------------------------------
# XLA glue (window extraction, unfold, relative-position terms)
# ----------------------------------------------------------------------------
def _conv1x1(x, w, b, use_pallas, out_dtype=jnp.float32):
    bsz, hh, ww, cin = x.shape
    cout = w.shape[1]
    if use_pallas:
        y = pallas_matmul(x.reshape(-1, cin), w, b, out_dtype=out_dtype)
    else:
        y = x.reshape(-1, cin).astype(jnp.float32) @ w + b[None, :]
    return y.reshape(bsz, hh, ww, cout)


def _unfold_overlap(t, ws, owin):
    """nn.Unfold(kernel=owin, stride=ws, padding=(owin-ws)//2) on NHWC -> (B*nw, owin*owin, C)."""
    # TODO(synk): replace this XLA materialization (duplicates K/V by ~(owin/ws)^2 through HBM)
    # with an in-kernel manual DMA gather (memory_space=pl.ANY + make_async_copy, double-buffered).
    bsz, h, wd, c = t.shape
    pad = (owin - ws) // 2
    tp = jnp.pad(t, ((0, 0), (pad, pad), (pad, pad), (0, 0)))
    nwr, nwc = h // ws, wd // ws
    row = (jnp.arange(nwr) * ws)[:, None] + jnp.arange(owin)[None, :]     # (nwr, owin)
    col = (jnp.arange(nwc) * ws)[:, None] + jnp.arange(owin)[None, :]     # (nwc, owin)
    patches = tp[:, row[:, :, None, None], col[None, None, :, :], :]      # (B,nwr,owin,nwc,owin,C)
    patches = patches.transpose(0, 1, 3, 2, 4, 5)
    return patches.reshape(bsz * nwr * nwc, owin * owin, c)


def _rel_pos_terms(q5, rel_h, rel_w, ws, owin):
    """Decomposed relative-position logits.  q5: (Bnw, heads, ws, ws, dh) scaled queries.
    Returns concat([lh, lw], -1) of shape (Bnw, heads, ws*ws, 2*owin) where
      lh[.., q, u] = q . rel_h[u - q_row + owin - 1]   (depends on the key ROW u)
      lw[.., q, v] = q . rel_w[v - q_col + owin - 1]   (depends on the key COL v)
    and the dense bias is bias[q, u*owin + v] = lh[q, u] + lw[q, v] (matches RelPosEmb/rel_to_abs)."""
    bnw, heads = q5.shape[0], q5.shape[1]
    idx = jnp.arange(owin)[None, :] - jnp.arange(ws)[:, None] + (owin - 1)   # (ws, owin)
    r_w = rel_w[idx]                                                         # (ws, owin, dh)
    r_h = rel_h[idx]
    lw = jnp.einsum("bhxyd,yvd->bhxyv", q5, r_w, preferred_element_type=jnp.float32)
    lh = jnp.einsum("bhxyd,xud->bhxyu", q5, r_h, preferred_element_type=jnp.float32)
    lh = lh.reshape(bnw, heads, ws * ws, owin)
    lw = lw.reshape(bnw, heads, ws * ws, owin)
    return jnp.concatenate([lh, lw], axis=-1)


def _reference_attention(q, k, v, bias, heads, dh):
    bnw, nq, inner = q.shape
    qh = q.reshape(bnw, nq, heads, dh).transpose(0, 2, 1, 3)
    kh = k.reshape(bnw, -1, heads, dh).transpose(0, 2, 1, 3)
    vh = v.reshape(bnw, -1, heads, dh).transpose(0, 2, 1, 3)
    attn = jnp.einsum("bhqd,bhkd->bhqk", qh, kh) + bias
    attn = jax.nn.softmax(attn, axis=-1)
    out = jnp.einsum("bhqk,bhkd->bhqd", attn, vh)
    return out.transpose(0, 2, 1, 3).reshape(bnw, nq, inner)


# ----------------------------------------------------------------------------
# OCAB forward
# ----------------------------------------------------------------------------
def ocab_forward(x_nchw, p, *, use_pallas=True):
    ws, owin = p["window_size"], p["owin"]
    heads, dh = p["heads"], p["dim_head"]
    inner = heads * dh
    scale = dh ** (-0.5)

    bsz, _, h, wd = x_nchw.shape
    assert h % ws == 0 and wd % ws == 0, "H and W must be multiples of window_size"
    nwr, nwc = h // ws, wd // ws
    bnw = bsz * nwr * nwc
    nq, nk = ws * ws, owin * owin

    x = jnp.transpose(x_nchw, (0, 2, 3, 1)).astype(jnp.float32)        # NCHW -> NHWC
    qkv_dtype = jnp.bfloat16 if use_pallas else jnp.float32
    qkv = _conv1x1(x, p["qkv_w"], p["qkv_b"], use_pallas, out_dtype=qkv_dtype)
    qs, ks, vs = jnp.split(qkv, 3, axis=-1)

    # queries: non-overlapping ws x ws windows, scaled BEFORE both QK^T and rel-pos (as in PyTorch)
    q_win = qs.reshape(bsz, nwr, ws, nwc, ws, inner).transpose(0, 1, 3, 2, 4, 5)
    q_win = (q_win.reshape(bnw, nq, inner) * scale).astype(qkv_dtype)
    # keys / values: overlapping owin x owin windows (nn.Unfold equivalent)
    k_win = _unfold_overlap(ks, ws, owin)
    v_win = _unfold_overlap(vs, ws, owin)

    # decomposed relative-position terms from the scaled queries (expanded inside the kernel)
    q5 = q_win.reshape(bnw, ws, ws, heads, dh).transpose(0, 3, 1, 2, 4)
    lhw = _rel_pos_terms(q5, p["rel_h"], p["rel_w"], ws, owin)         # (Bnw, heads, nq, 2*owin)

    if use_pallas:
        out = ocab_attention(q_win, k_win, v_win, lhw, owin=owin)
    else:
        lh, lw = lhw[..., :owin], lhw[..., owin:]
        bias = (lh[..., :, None] + lw[..., None, :]).reshape(bnw, heads, nq, nk)
        out = _reference_attention(q_win, k_win, v_win, bias, heads, dh)

    # '(b h w) (p1 p2) (head c) -> b (h p1) (w p2) (head c)'
    out = out.reshape(bsz, nwr, nwc, ws, ws, inner).transpose(0, 1, 3, 2, 4, 5)
    out = out.reshape(bsz, h, wd, inner)
    y = _conv1x1(out, p["proj_w"], p["proj_b"], use_pallas, out_dtype=jnp.float32)
    return jnp.transpose(y, (0, 3, 1, 2))                              # NHWC -> NCHW


# ----------------------------------------------------------------------------
# Deterministic parameters
# ----------------------------------------------------------------------------
def make_ocab_params(key, *, dim, window_size, overlap_ratio, num_heads, dim_head, bias=True):
    owin = int(window_size * overlap_ratio) + window_size
    inner = num_heads * dim_head
    keys = jax.random.split(key, 6)

    def nrm(k, shape, std):
        return jax.random.normal(k, shape, jnp.float32) * std

    return {
        "window_size": window_size, "owin": owin,
        "heads": num_heads, "dim_head": dim_head,
        "qkv_w": nrm(keys[0], (dim, inner * 3), 0.05),
        "qkv_b": nrm(keys[1], (inner * 3,), 0.02) if bias else jnp.zeros((inner * 3,), jnp.float32),
        "proj_w": nrm(keys[2], (inner, dim), 0.05),
        "proj_b": nrm(keys[3], (dim,), 0.02) if bias else jnp.zeros((dim,), jnp.float32),
        "rel_h": nrm(keys[4], (2 * owin - 1, dim_head), dim_head ** -0.5),
        "rel_w": nrm(keys[5], (2 * owin - 1, dim_head), dim_head ** -0.5),
    }


# ----------------------------------------------------------------------------
# Main
# ----------------------------------------------------------------------------
if __name__ == "__main__":
    key = jax.random.PRNGKey(0)
    B, C, H, W = 2, 32, 16, 16
    params = make_ocab_params(jax.random.fold_in(key, 1),
                              dim=C, window_size=8, overlap_ratio=0.5,
                              num_heads=2, dim_head=16, bias=True)
    x = jax.random.normal(jax.random.fold_in(key, 2), (B, C, H, W), jnp.float32)

    fwd = jax.jit(lambda inp: ocab_forward(inp, params, use_pallas=True))
    out = jax.block_until_ready(fwd(x))

    assert out.shape == (B, C, H, W), out.shape
    assert bool(jnp.all(jnp.isfinite(out)))

    # sanity check against a pure-XLA f32 reference (Pallas path uses bf16 MXU operands)
    ref = ocab_forward(x, params, use_pallas=False)
    err = float(jnp.max(jnp.abs(out - ref)))
    ref_mag = float(jnp.max(jnp.abs(ref))) + 1e-6
    assert err <= 0.1 * ref_mag, (err, ref_mag)

    print("KERNEL_OK")
</pallas_src>

<mosaic_0001>
module attributes {stable_mosaic.version = 11 : i64} {
  func.func @_matmul_bias_kernel(%arg0: i32, %arg1: memref<256x32xbf16, #tpu.memory_space<vmem>>, %arg2: memref<32x128xbf16, #tpu.memory_space<vmem>>, %arg3: memref<1x128xf32, #tpu.memory_space<vmem>>, %arg4: memref<256x128xbf16, #tpu.memory_space<vmem>>) attributes {dimension_semantics = [#tpu.dimension_semantics<parallel>], iteration_bounds = array<i64: 2>, scalar_prefetch = 0 : i64, scratch_operands = 0 : i64, tpu.core_type = #tpu.core_type<tc>, window_params = [{transform_indices = @transform_0, window_bounds = array<i64: 256, 32>}, {pipeline_mode = #tpu.pipeline_mode<synchronous>, transform_indices = @transform_1, window_bounds = array<i64: 32, 128>}, {pipeline_mode = #tpu.pipeline_mode<synchronous>, transform_indices = @transform_2, window_bounds = array<i64: 1, 128>}, {transform_indices = @transform_3, window_bounds = array<i64: 256, 128>}]} {
    %c0 = arith.constant 0 : index
    %c0_0 = arith.constant 0 : index
    %0 = vector.load %arg1[%c0, %c0_0] : memref<256x32xbf16, #tpu.memory_space<vmem>>, vector<256x32xbf16>
    %c0_1 = arith.constant 0 : index
    %c0_2 = arith.constant 0 : index
    %1 = vector.load %arg2[%c0_1, %c0_2] : memref<32x128xbf16, #tpu.memory_space<vmem>>, vector<32x128xbf16>
    %cst = arith.constant dense<0.000000e+00> : vector<256x128xf32>
    %2 = tpu.matmul %0, %1, %cst {dimension_numbers = #tpu.dot_dimension_numbers<[1], [0], [0], [1], [0, 0, 1, 1], [], []>} : vector<256x32xbf16>, vector<32x128xbf16>, vector<256x128xf32> -> vector<256x128xf32>
    %c0_3 = arith.constant 0 : index
    %c0_4 = arith.constant 0 : index
    %3 = vector.load %arg3[%c0_3, %c0_4] : memref<1x128xf32, #tpu.memory_space<vmem>>, vector<1x128xf32>
    %4 = vector.broadcast %3 : vector<1x128xf32> to vector<256x128xf32>
    %5 = arith.addf %2, %4 : vector<256x128xf32>
    %6 = arith.truncf %5 : vector<256x128xf32> to vector<256x128xbf16>
    %c0_5 = arith.constant 0 : index
    %c0_6 = arith.constant 0 : index
    %7 = vector.load %arg4[%c0_5, %c0_6] : memref<256x128xbf16, #tpu.memory_space<vmem>>, vector<256x128xbf16>
    tpu.vector_store %arg4[%c0_5, %c0_6], %6 {strides = array<i32>} : memref<256x128xbf16, #tpu.memory_space<vmem>>, vector<256x128xbf16>,
    return
  }
  func.func @transform_0(%arg0: i32) -> (i32, i32) {
    %c0_i32 = arith.constant 0 : i32
    %c0_i32_0 = arith.constant 0 : i32
    return %arg0, %c0_i32 : i32, i32
  }
  func.func @transform_1(%arg0: i32) -> (i32, i32) {
    %c0_i32 = arith.constant 0 : i32
    %c0_i32_0 = arith.constant 0 : i32
    %c0_i32_1 = arith.constant 0 : i32
    return %c0_i32, %c0_i32_0 : i32, i32
  }
  func.func @transform_2(%arg0: i32) -> (i32, i32) {
    %c0_i32 = arith.constant 0 : i32
    %c0_i32_0 = arith.constant 0 : i32
    %c0_i32_1 = arith.constant 0 : i32
    return %c0_i32, %c0_i32_0 : i32, i32
  }
  func.func @transform_3(%arg0: i32) -> (i32, i32) {
    %c0_i32 = arith.constant 0 : i32
    %c0_i32_0 = arith.constant 0 : i32
    return %arg0, %c0_i32 : i32, i32
  }
}

module attributes {stable_mosaic.version = 11 : i64} {
  func.func @_matmul_bias_kernel(%arg0: i32, %arg1: memref<256x32xbf16, #tpu.memory_space<vmem>>, %arg2: memref<32x32xbf16, #tpu.memory_space<vmem>>, %arg3: memref<1x32xf32, #tpu.memory_space<vmem>>, %arg4: memref<256x32xf32, #tpu.memory_space<vmem>>) attributes {dimension_semantics = [#tpu.dimension_semantics<parallel>], iteration_bounds = array<i64: 2>, scalar_prefetch = 0 : i64, scratch_operands = 0 : i64, tpu.core_type = #tpu.core_type<tc>, window_params = [{transform_indices = @transform_0, window_bounds = array<i64: 256, 32>}, {pipeline_mode = #tpu.pipeline_mode<synchronous>, transform_indices = @transform_1, window_bounds = array<i64: 32, 32>}, {pipeline_mode = #tpu.pipeline_mode<synchronous>, transform_indices = @transform_2, window_bounds = array<i64: 1, 32>}, {transform_indices = @transform_3, window_bounds = array<i64: 256, 32>}]} {
    %c0 = arith.constant 0 : index
    %c0_0 = arith.constant 0 : index
    %0 = vector.load %arg1[%c0, %c0_0] : memref<256x32xbf16, #tpu.memory_space<vmem>>, vector<256x32xbf16>
    %c0_1 = arith.constant 0 : index
    %c0_2 = arith.constant 0 : index
    %1 = vector.load %arg2[%c0_1, %c0_2] : memref<32x32xbf16, #tpu.memory_space<vmem>>, vector<32x32xbf16>
    %cst = arith.constant dense<0.000000e+00> : vector<256x32xf32>
    %2 = tpu.matmul %0, %1, %cst {dimension_numbers = #tpu.dot_dimension_numbers<[1], [0], [0], [1], [0, 0, 1, 1], [], []>} : vector<256x32xbf16>, vector<32x32xbf16>, vector<256x32xf32> -> vector<256x32xf32>
    %c0_3 = arith.constant 0 : index
    %c0_4 = arith.constant 0 : index
    %3 = vector.load %arg3[%c0_3, %c0_4] : memref<1x32xf32, #tpu.memory_space<vmem>>, vector<1x32xf32>
    %4 = vector.broadcast %3 : vector<1x32xf32> to vector<256x32xf32>
    %5 = arith.addf %2, %4 : vector<256x32xf32>
    %c0_5 = arith.constant 0 : index
    %c0_6 = arith.constant 0 : index
    %6 = vector.load %arg4[%c0_5, %c0_6] : memref<256x32xf32, #tpu.memory_space<vmem>>, vector<256x32xf32>
    tpu.vector_store %arg4[%c0_5, %c0_6], %5 {strides = array<i32>} : memref<256x32xf32, #tpu.memory_space<vmem>>, vector<256x32xf32>,
    return
  }
  func.func @transform_0(%arg0: i32) -> (i32, i32) {
    %c0_i32 = arith.constant 0 : i32
    %c0_i32_0 = arith.constant 0 : i32
    return %arg0, %c0_i32 : i32, i32
  }
  func.func @transform_1(%arg0: i32) -> (i32, i32) {
    %c0_i32 = arith.constant 0 : i32
    %c0_i32_0 = arith.constant 0 : i32
    %c0_i32_1 = arith.constant 0 : i32
    return %c0_i32, %c0_i32_0 : i32, i32
  }
  func.func @transform_2(%arg0: i32) -> (i32, i32) {
    %c0_i32 = arith.constant 0 : i32
    %c0_i32_0 = arith.constant 0 : i32
    %c0_i32_1 = arith.constant 0 : i32
    return %c0_i32, %c0_i32_0 : i32, i32
  }
  func.func @transform_3(%arg0: i32) -> (i32, i32) {
    %c0_i32 = arith.constant 0 : i32
    %c0_i32_0 = arith.constant 0 : i32
    return %arg0, %c0_i32 : i32, i32
  }
}

module attributes {stable_mosaic.version = 11 : i64} {
  func.func @_ocab_attn_kernel(%arg0: i32, %arg1: memref<2x64x32xbf16, #tpu.memory_space<vmem>>, %arg2: memref<2x144x32xbf16, #tpu.memory_space<vmem>>, %arg3: memref<2x144x32xbf16, #tpu.memory_space<vmem>>, %arg4: memref<2x2x64x24xf32, #tpu.memory_space<vmem>>, %arg5: memref<24x144xf32, #tpu.memory_space<vmem>>, %arg6: memref<2x64x32xbf16, #tpu.memory_space<vmem>>) attributes {dimension_semantics = [#tpu.dimension_semantics<parallel>], iteration_bounds = array<i64: 4>, scalar_prefetch = 0 : i64, scratch_operands = 0 : i64, tpu.core_type = #tpu.core_type<tc>, window_params = [{transform_indices = @transform_0, window_bounds = array<i64: 2, 64, 32>}, {transform_indices = @transform_1, window_bounds = array<i64: 2, 144, 32>}, {transform_indices = @transform_2, window_bounds = array<i64: 2, 144, 32>}, {transform_indices = @transform_3, window_bounds = array<i64: 2, 2, 64, 24>}, {pipeline_mode = #tpu.pipeline_mode<synchronous>, transform_indices = @transform_4, window_bounds = array<i64: 24, 144>}, {transform_indices = @transform_5, window_bounds = array<i64: 2, 64, 32>}]} {
    %c0 = arith.constant 0 : index
    %c0_0 = arith.constant 0 : index
    %c0_1 = arith.constant 0 : index
    %0 = vector.load %arg1[%c0, %c0_0, %c0_1] : memref<2x64x32xbf16, #tpu.memory_space<vmem>>, vector<2x64x32xbf16>
    %c0_2 = arith.constant 0 : index
    %c0_3 = arith.constant 0 : index
    %c0_4 = arith.constant 0 : index
    %1 = vector.load %arg2[%c0_2, %c0_3, %c0_4] : memref<2x144x32xbf16, #tpu.memory_space<vmem>>, vector<2x144x32xbf16>
    %c0_5 = arith.constant 0 : index
    %c0_6 = arith.constant 0 : index
    %c0_7 = arith.constant 0 : index
    %2 = vector.load %arg3[%c0_5, %c0_6, %c0_7] : memref<2x144x32xbf16, #tpu.memory_space<vmem>>, vector<2x144x32xbf16>
    %c0_8 = arith.constant 0 : index
    %c0_9 = arith.constant 0 : index
    %c0_10 = arith.constant 0 : index
    %c0_11 = arith.constant 0 : index
    %3 = vector.load %arg4[%c0_8, %c0_9, %c0_10, %c0_11] : memref<2x2x64x24xf32, #tpu.memory_space<vmem>>, vector<2x2x64x24xf32>
    %c0_12 = arith.constant 0 : index
    %c0_13 = arith.constant 0 : index
    %4 = vector.load %arg5[%c0_12, %c0_13] : memref<24x144xf32, #tpu.memory_space<vmem>>, vector<24x144xf32>
    %cst = arith.constant 1.000000e+00 : f32
    %5 = vector.broadcast %cst : f32 to vector<144x1xf32>
    %6 = vector.extract_strided_slice %0 {offsets = [0, 0, 0], sizes = [2, 64, 16], strides = [1, 1, 1]} : vector<2x64x32xbf16> to vector<2x64x16xbf16>
    %7 = vector.extract_strided_slice %1 {offsets = [0, 0, 0], sizes = [2, 144, 16], strides = [1, 1, 1]} : vector<2x144x32xbf16> to vector<2x144x16xbf16>
    %8 = vector.extract_strided_slice %2 {offsets = [0, 0, 0], sizes = [2, 144, 16], strides = [1, 1, 1]} : vector<2x144x32xbf16> to vector<2x144x16xbf16>
    "tpu.trace_start"() <{level = 10 : i32, message = "gqd,gkd->gqk"}> : () -> ()
    %cst_14 = arith.constant dense<0.000000e+00> : vector<2x64x144xf32>
    %9 = tpu.matmul %6, %7, %cst_14 {dimension_numbers = #tpu.dot_dimension_numbers<[2], [2], [1], [1], [0, 0, 0, 1, 1, 1], [0], [0]>} : vector<2x64x16xbf16>, vector<2x144x16xbf16>, vector<2x64x144xf32> -> vector<2x64x144xf32>
    "tpu.trace_stop"() : () -> ()
    %10 = vector.extract_strided_slice %3 {offsets = [0, 0, 0, 0], sizes = [2, 1, 64, 24], strides = [1, 1, 1, 1]} : vector<2x2x64x24xf32> to vector<2x1x64x24xf32>
    %11 = vector.shape_cast %10 : vector<2x1x64x24xf32> to vector<2x64x24xf32>
    %12 = vector.shape_cast %11 : vector<2x64x24xf32> to vector<128x24xf32>
    %cst_15 = arith.constant dense<0.000000e+00> : vector<128x144xf32>
    %13 = tpu.matmul %12, %4, %cst_15 {dimension_numbers = #tpu.dot_dimension_numbers<[1], [0], [0], [1], [0, 0, 1, 1], [], []>} : vector<128x24xf32>, vector<24x144xf32>, vector<128x144xf32> -> vector<128x144xf32>
    %14 = vector.shape_cast %13 : vector<128x144xf32> to vector<2x64x144xf32>
    %15 = arith.addf %9, %14 : vector<2x64x144xf32>
    %cst_16 = arith.constant dense<0xFF800000> : vector<2x64xf32>
    %16 = vector.multi_reduction <maximumf>, %15, %cst_16 [2] : vector<2x64x144xf32> to vector<2x64xf32>
    %17 = vector.shape_cast %16 : vector<2x64xf32> to vector<2x64x1xf32>
    %18 = vector.broadcast %17 : vector<2x64x1xf32> to vector<2x64x144xf32>
    %19 = arith.subf %15, %18 : vector<2x64x144xf32>
    %20 = math.exp %19 : vector<2x64x144xf32>
    %21 = vector.shape_cast %20 : vector<2x64x144xf32> to vector<128x144xf32>
    %cst_17 = arith.constant dense<0.000000e+00> : vector<128x1xf32>
    %22 = tpu.matmul %21, %5, %cst_17 {dimension_numbers = #tpu.dot_dimension_numbers<[1], [0], [0], [1], [0, 0, 1, 1], [], []>} : vector<128x144xf32>, vector<144x1xf32>, vector<128x1xf32> -> vector<128x1xf32>
    %23 = vector.shape_cast %22 : vector<128x1xf32> to vector<2x64x1xf32>
    %24 = tpu.reciprocal %23 : vector<2x64x1xf32> -> vector<2x64x1xf32>
    %25 = vector.broadcast %24 : vector<2x64x1xf32> to vector<2x64x144xf32>
    %26 = arith.mulf %20, %25 : vector<2x64x144xf32>
    %27 = arith.truncf %26 : vector<2x64x144xf32> to vector<2x64x144xbf16>
    "tpu.trace_start"() <{level = 10 : i32, message = "gqk,gkd->gqd"}> : () -> ()
    %cst_18 = arith.constant dense<0.000000e+00> : vector<2x64x16xf32>
    %28 = tpu.matmul %27, %8, %cst_18 {dimension_numbers = #tpu.dot_dimension_numbers<[2], [1], [1], [2], [0, 0, 0, 1, 1, 2], [0], [0]>} : vector<2x64x144xbf16>, vector<2x144x16xbf16>, vector<2x64x16xf32> -> vector<2x64x16xf32>
    "tpu.trace_stop"() : () -> ()
    %29 = arith.truncf %28 : vector<2x64x16xf32> to vector<2x64x16xbf16>
    %c0_19 = arith.constant 0 : index
    %c0_20 = arith.constant 0 : index
    %c0_21 = arith.constant 0 : index
    %30 = vector.load %arg6[%c0_19, %c0_20, %c0_21] : memref<2x64x32xbf16, #tpu.memory_space<vmem>>, vector<2x64x16xbf16>
    tpu.vector_store %arg6[%c0_19, %c0_20, %c0_21], %29 {strides = array<i32>} : memref<2x64x32xbf16, #tpu.memory_space<vmem>>, vector<2x64x16xbf16>,
    %31 = vector.extract_strided_slice %0 {offsets = [0, 0, 16], sizes = [2, 64, 16], strides = [1, 1, 1]} : vector<2x64x32xbf16> to vector<2x64x16xbf16>
    %32 = vector.extract_strided_slice %1 {offsets = [0, 0, 16], sizes = [2, 144, 16], strides = [1, 1, 1]} : vector<2x144x32xbf16> to vector<2x144x16xbf16>
    %33 = vector.extract_strided_slice %2 {offsets = [0, 0, 16], sizes = [2, 144, 16], strides = [1, 1, 1]} : vector<2x144x32xbf16> to vector<2x144x16xbf16>
    "tpu.trace_start"() <{level = 10 : i32, message = "gqd,gkd->gqk"}> : () -> ()
    %cst_22 = arith.constant dense<0.000000e+00> : vector<2x64x144xf32>
    %34 = tpu.matmul %31, %32, %cst_22 {dimension_numbers = #tpu.dot_dimension_numbers<[2], [2], [1], [1], [0, 0, 0, 1, 1, 1], [0], [0]>} : vector<2x64x16xbf16>, vector<2x144x16xbf16>, vector<2x64x144xf32> -> vector<2x64x144xf32>
    "tpu.trace_stop"() : () -> ()
    %35 = vector.extract_strided_slice %3 {offsets = [0, 1, 0, 0], sizes = [2, 1, 64, 24], strides = [1, 1, 1, 1]} : vector<2x2x64x24xf32> to vector<2x1x64x24xf32>
    %36 = vector.shape_cast %35 : vector<2x1x64x24xf32> to vector<2x64x24xf32>
    %37 = vector.shape_cast %36 : vector<2x64x24xf32> to vector<128x24xf32>
    %cst_23 = arith.constant dense<0.000000e+00> : vector<128x144xf32>
    %38 = tpu.matmul %37, %4, %cst_23 {dimension_numbers = #tpu.dot_dimension_numbers<[1], [0], [0], [1], [0, 0, 1, 1], [], []>} : vector<128x24xf32>, vector<24x144xf32>, vector<128x144xf32> -> vector<128x144xf32>
    %39 = vector.shape_cast %38 : vector<128x144xf32> to vector<2x64x144xf32>
    %40 = arith.addf %34, %39 : vector<2x64x144xf32>
    %cst_24 = arith.constant dense<0xFF800000> : vector<2x64xf32>
    %41 = vector.multi_reduction <maximumf>, %40, %cst_24 [2] : vector<2x64x144xf32> to vector<2x64xf32>
    %42 = vector.shape_cast %41 : vector<2x64xf32> to vector<2x64x1xf32>
    %43 = vector.broadcast %42 : vector<2x64x1xf32> to vector<2x64x144xf32>
    %44 = arith.subf %40, %43 : vector<2x64x144xf32>
    %45 = math.exp %44 : vector<2x64x144xf32>
    %46 = vector.shape_cast %45 : vector<2x64x144xf32> to vector<128x144xf32>
    %cst_25 = arith.constant dense<0.000000e+00> : vector<128x1xf32>
    %47 = tpu.matmul %46, %5, %cst_25 {dimension_numbers = #tpu.dot_dimension_numbers<[1], [0], [0], [1], [0, 0, 1, 1], [], []>} : vector<128x144xf32>, vector<144x1xf32>, vector<128x1xf32> -> vector<128x1xf32>
    %48 = vector.shape_cast %47 : vector<128x1xf32> to vector<2x64x1xf32>
    %49 = tpu.reciprocal %48 : vector<2x64x1xf32> -> vector<2x64x1xf32>
    %50 = vector.broadcast %49 : vector<2x64x1xf32> to vector<2x64x144xf32>
    %51 = arith.mulf %45, %50 : vector<2x64x144xf32>
    %52 = arith.truncf %51 : vector<2x64x144xf32> to vector<2x64x144xbf16>
    "tpu.trace_start"() <{level = 10 : i32, message = "gqk,gkd->gqd"}> : () -> ()
    %cst_26 = arith.constant dense<0.000000e+00> : vector<2x64x16xf32>
    %53 = tpu.matmul %52, %33, %cst_26 {dimension_numbers = #tpu.dot_dimension_numbers<[2], [1], [1], [2], [0, 0, 0, 1, 1, 2], [0], [0]>} : vector<2x64x144xbf16>, vector<2x144x16xbf16>, vector<2x64x16xf32> -> vector<2x64x16xf32>
    "tpu.trace_stop"() : () -> ()
    %54 = arith.truncf %53 : vector<2x64x16xf32> to vector<2x64x16xbf16>
    %c0_27 = arith.constant 0 : index
    %c0_28 = arith.constant 0 : index
    %c16 = arith.constant 16 : index
    %55 = vector.load %arg6[%c0_27, %c0_28, %c16] : memref<2x64x32xbf16, #tpu.memory_space<vmem>>, vector<2x64x16xbf16>
    tpu.vector_store %arg6[%c0_27, %c0_28, %c16], %54 {strides = array<i32>} : memref<2x64x32xbf16, #tpu.memory_space<vmem>>, vector<2x64x16xbf16>,
    return
  }
  func.func @transform_0(%arg0: i32) -> (i32, i32, i32) {
    %c0_i32 = arith.constant 0 : i32
    %c0_i32_0 = arith.constant 0 : i32
    %c0_i32_1 = arith.constant 0 : i32
    return %arg0, %c0_i32, %c0_i32_0 : i32, i32, i32
  }
  func.func @transform_1(%arg0: i32) -> (i32, i32, i32) {
    %c0_i32 = arith.constant 0 : i32
    %c0_i32_0 = arith.constant 0 : i32
    %c0_i32_1 = arith.constant 0 : i32
    return %arg0, %c0_i32, %c0_i32_0 : i32, i32, i32
  }
  func.func @transform_2(%arg0: i32) -> (i32, i32, i32) {
    %c0_i32 = arith.constant 0 : i32
    %c0_i32_0 = arith.constant 0 : i32
    %c0_i32_1 = arith.constant 0 : i32
    return %arg0, %c0_i32, %c0_i32_0 : i32, i32, i32
  }
  func.func @transform_3(%arg0: i32) -> (i32, i32, i32, i32) {
    %c0_i32 = arith.constant 0 : i32
    %c0_i32_0 = arith.constant 0 : i32
    %c0_i32_1 = arith.constant 0 : i32
    %c0_i32_2 = arith.constant 0 : i32
    return %arg0, %c0_i32, %c0_i32_0, %c0_i32_1 : i32, i32, i32, i32
  }
  func.func @transform_4(%arg0: i32) -> (i32, i32) {
    %c0_i32 = arith.constant 0 : i32
    %c0_i32_0 = arith.constant 0 : i32
    %c0_i32_1 = arith.constant 0 : i32
    return %c0_i32, %c0_i32_0 : i32, i32
  }
  func.func @transform_5(%arg0: i32) -> (i32, i32, i32) {
    %c0_i32 = arith.constant 0 : i32
    %c0_i32_0 = arith.constant 0 : i32
    %c0_i32_1 = arith.constant 0 : i32
    return %arg0, %c0_i32, %c0_i32_0 : i32, i32, i32
  }
}

</mosaic_0001>

<llo_original>
// kernel: _lambda_.3
$region0: #{_lambda_.3}
  #allocation0 [shape = 'u32[]', space=smem, size = 0x4, offset = 0x4, fixed_abs, tag = 'smem constant byte address 0x4 - core index']
  #allocation1 [shape = 'u32[144,128]{1,0:T(1,128)}', space=vmem, size = 0x12000, scoped, tag = 'internal scratch']
  %s0 = inlined_call_operand.vmem [shape: bf16[512,32], index: 0, kind: input, shape index: {}]
  %s1 = inlined_call_operand.vmem [shape: bf16[32,128], index: 1, kind: input, shape index: {}]
  %s2 = inlined_call_operand.vmem [shape: f32[1,128], index: 2, kind: input, shape index: {}]
  %s3 = inlined_call_operand.vmem [shape: bf16[512,128], index: 3, kind: output, shape index: {}]
  %s4 = sld [smem:[#allocation0]]
  $region45: #{_lambda_.3} parent=0
    _
  %s6 = ssub.s32 1, %s4
  %s7 = scalar_select 0, %s6, %s4
  loop: start=0, step=1, limit=4
  $region2: #{_lambda_.3} parent=0 // loop_pre_header
    _
  $region3: #{_lambda_.3} parent=0 // loop_header
    %s9 = sphi 0, %s13
    %p10 = scmp.ge.s32.totalorder %s9, 4
    %s19 = sphi 0, %s21
    %s22 = sphi 0, %s19
    %s23 = sphi 0, %s22
    %s39 = sphi 0, %s23
    %s43 = sphi 0, %s43
    %s45 = sphi 0, %s43
    %s46 = sphi 0, %s45
    %s60 = sphi 0, %s46
    %s64 = sphi 0, %s64
    %s66 = sphi 0, %s64
    %s67 = sphi 0, %s66
    %s81 = sphi 0, %s67
    %s87 = sphi 0, %s89
    %s90 = sphi 0, %s87
    %s91 = sphi 0, %s90
    %s107 = sphi 0, %s91
  $region4: #{_lambda_.3} parent=0 // loop_header_branch
    %12 = sbr.rel (%p10) target = $region8
  $region5: #{_lambda_.3} parent=0 // loop_body
    %s14 = ssub.s32 %s9, 1
    %s15 = ssub.s32 %s9, 2
    %s16 = sadd.s32 %s9, 1
    %s17 = ssub.s32 %s9, %s16
    %p18 = scmp.eq.s32.totalorder %s17, 0
    %s20 = sadd.s32 %s19, 1
    %s21 = scalar_select %p18, %s19, %s20
    %p24 = pneg %p18
    %p25 = scmp.eq.s32.totalorder %s9, 1
    %p26 = por %p24, %p25
    %p27 = scmp.ne.s32.totalorder %s19, %s22
    %p28 = scmp.eq.s32.totalorder %s9, 0
    %p29 = por %p27, %p28
    %p30 = scmp.ne.s32.totalorder %s19, %s22
    %p31 = scmp.eq.s32.totalorder %s14, 1
    %p32 = por %p30, %p31
    %p33 = scmp.ne.s32.totalorder %s22, %s23
    %p34 = scmp.eq.s32.totalorder %s14, 0
    %p35 = por %p33, %p34
    %p36 = scmp.ne.s32.totalorder %s22, %s23
    %p37 = scmp.eq.s32.totalorder %s15, 1
    %p38 = por %p36, %p37
    %p40 = scmp.ne.s32.totalorder %s23, %s39
    %p41 = scmp.eq.s32.totalorder %s15, 0
    %p42 = por %p40, %p41
    %s44 = sadd.s32 %s43, 1
    %p47 = scmp.eq.s32.totalorder %s9, 1
    %p48 = scmp.ne.s32.totalorder %s43, %s45
    %p49 = scmp.eq.s32.totalorder %s9, 0
    %p50 = por %p48, %p49
    %p51 = scmp.ne.s32.totalorder %s43, %s45
    %p52 = scmp.eq.s32.totalorder %s14, 1
    %p53 = por %p51, %p52
    %p54 = scmp.ne.s32.totalorder %s45, %s46
    %p55 = scmp.eq.s32.totalorder %s14, 0
    %p56 = por %p54, %p55
    %p57 = scmp.ne.s32.totalorder %s45, %s46
    %p58 = scmp.eq.s32.totalorder %s15, 1
    %p59 = por %p57, %p58
    %p61 = scmp.ne.s32.totalorder %s46, %s60
    %p62 = scmp.eq.s32.totalorder %s15, 0
    %p63 = por %p61, %p62
    %s65 = sadd.s32 %s64, 1
    %p68 = scmp.eq.s32.totalorder %s9, 1
    %p69 = scmp.ne.s32.totalorder %s64, %s66
    %p70 = scmp.eq.s32.totalorder %s9, 0
    %p71 = por %p69, %p70
    %p72 = scmp.ne.s32.totalorder %s64, %s66
    %p73 = scmp.eq.s32.totalorder %s14, 1
    %p74 = por %p72, %p73
    %p75 = scmp.ne.s32.totalorder %s66, %s67
    %p76 = scmp.eq.s32.totalorder %s14, 0
    %p77 = por %p75, %p76
    %p78 = scmp.ne.s32.totalorder %s66, %s67
    %p79 = scmp.eq.s32.totalorder %s15, 1
    %p80 = por %p78, %p79
    %p82 = scmp.ne.s32.totalorder %s67, %s81
    %p83 = scmp.eq.s32.totalorder %s15, 0
    %p84 = por %p82, %p83
    %s85 = ssub.s32 %s9, %s16
    %p86 = scmp.eq.s32.totalorder %s85, 0
    %s88 = sadd.s32 %s87, 1
    %s89 = scalar_select %p86, %s87, %s88
    %p92 = pneg %p86
    %p93 = scmp.eq.s32.totalorder %s9, 1
    %p94 = por %p92, %p93
    %p95 = scmp.ne.s32.totalorder %s87, %s90
    %p96 = scmp.eq.s32.totalorder %s9, 0
    %p97 = por %p95, %p96
    %p98 = scmp.ne.s32.totalorder %s87, %s90
    %p99 = scmp.eq.s32.totalorder %s14, 1
    %p100 = por %p98, %p99
    %p101 = scmp.ne.s32.totalorder %s90, %s91
    %p102 = scmp.eq.s32.totalorder %s14, 0
    %p103 = por %p101, %p102
    %p104 = scmp.ne.s32.totalorder %s90, %s91
    %p105 = scmp.eq.s32.totalorder %s15, 1
    %p106 = por %p104, %p105
    %p108 = scmp.ne.s32.totalorder %s91, %s107
    %p109 = scmp.eq.s32.totalorder %s15, 0
    %p110 = por %p108, %p109
    %p111 = scmp.le.s32.totalorder 1, %s9
    %p112 = scmp.lt.s32.totalorder %s9, 3
    %p113 = pnand %p111, %p112
    %p114 = pneg %p113
    // Predicated region
    $region9: #{_lambda_.3} parent=5 // pred_check
      _
    $region10: #{_lambda_.3} parent=5 // pred_check_branch
      %116 = sbr.rel (%p113) target = $region12
    $region11: #{_lambda_.3} parent=5 // pred_region
      %s117 = ssub.s32 %s9, 1
      // Predicated region
      $region13: #{_lambda_.3} parent=11 // pred_check
        %p118 = pneg %p56
      $region14: #{_lambda_.3} parent=11 // pred_check_branch
        %120 = sbr.rel (%p118) target = $region16
      $region15: #{_lambda_.3} parent=11 // pred_region
        _
      $region16: #{_lambda_.3} parent=11 // pred_fallthru
        _
      // Predicated region
      $region17: #{_lambda_.3} parent=11 // pred_check
        %p121 = pneg %p77
      $region18: #{_lambda_.3} parent=11 // pred_check_branch
        %123 = sbr.rel (%p121) target = $region20
      $region19: #{_lambda_.3} parent=11 // pred_region
        _
      $region20: #{_lambda_.3} parent=11 // pred_fallthru
        _
    $region12: #{_lambda_.3} parent=5 // pred_fallthru
      _
    %p124 = scmp.lt.s32.totalorder %s9, 2
    // Predicated region
    $region21: #{_lambda_.3} parent=5 // pred_check
      %p125 = pneg %p124
    $region22: #{_lambda_.3} parent=5 // pred_check_branch
      %127 = sbr.rel (%p125) target = $region24
    $region23: #{_lambda_.3} parent=5 // pred_region
      // Predicated region
      $region25: #{_lambda_.3} parent=23 // pred_check
        %p128 = pneg %p29
      $region26: #{_lambda_.3} parent=23 // pred_check_branch
        %130 = sbr.rel (%p128) target = $region28
      $region27: #{_lambda_.3} parent=23 // pred_region
        %s131 = smul.u32 32, %s9
        %p132 = scmp.lt.s32.totalorder %s131, 63
        %s133 = scalar_select %p132, %s131, 63
        %s134 = smul.addr %s133, 4
        %s135 = scalar_lea.vmem %s0, %s134
        %s136 = smul.u32 32, %s9
      $region28: #{_lambda_.3} parent=23 // pred_fallthru
        _
    $region24: #{_lambda_.3} parent=5 // pred_fallthru
      _
    %p137 = scmp.le.s32.totalorder 1, %s9
    %p138 = scmp.lt.s32.totalorder %s9, 3
    %p139 = pnand %p137, %p138
    %p140 = pneg %p139
    // Predicated region
    $region29: #{_lambda_.3} parent=5 // pred_check
      _
    $region30: #{_lambda_.3} parent=5 // pred_check_branch
      %142 = sbr.rel (%p139) target = $region32
    $region31: #{_lambda_.3} parent=5 // pred_region
      %s143 = ssub.s32 %s9, 1
      %s144 = smul.u32 32, %s14
      %p145 = scmp.lt.s32.totalorder %s144, 63
      %s146 = scalar_select %p145, %s144, 63
      %s147 = smul.addr %s146, 4
      %s148 = scalar_lea.vmem %s0, %s147
      %p149 = pneg %p35
      %p150 = pneg %p32
      %p151 = pneg %p56
      %p152 = pneg %p53
      %p153 = pneg %p77
      %p154 = pneg %p74
      %p155 = pneg %p103
      %p156 = pneg %p100
      %s157 = smul.u32 32, %s14
      %p158 = scmp.lt.s32.totalorder %s157, 63
      %s159 = scalar_select %p158, %s157, 63
      %s160 = smul.addr %s159, 4
      %s161 = scalar_lea.vmem %s3, %s160
      %s162 = smul.u32 32, %s14
      %p163 = scmp.lt.s32.totalorder %s162, 63
      %s164 = scalar_select %p163, %s162, 63
      %s165 = smul.addr %s164, 4
      %s166 = scalar_lea.vmem %s0, %s165
      %s167 = smul.u32 32, %s14
      %s168 = smul.u32 32, %s14
      %p169 = scmp.lt.s32.totalorder %s168, 63
      %s170 = scalar_select %p169, %s168, 63
      %s171 = smul.addr %s170, 4
      %s172 = scalar_lea.vmem %s3, %s171
      %s173 = smul.u32 32, %s14
      %v175 = vld [vmem:[%s166] sm:$0xf]
      %v176 = vld [vmem:[%s166 + $0x4] sm:$0xf]
      %v177 = vld [vmem:[%s166 + $0x8] sm:$0xf]
      %v178 = vld [vmem:[%s166 + $0xc] sm:$0xf]
      %v179 = vld [vmem:[%s166 + $0x10] sm:$0xf]
      %v180 = vld [vmem:[%s166 + $0x14] sm:$0xf]
      %v181 = vld [vmem:[%s166 + $0x18] sm:$0xf]
      %v182 = vld [vmem:[%s166 + $0x1c] sm:$0xf]
      %v183 = vld [vmem:[%s166 + $0x20] sm:$0xf]
      %v184 = vld [vmem:[%s166 + $0x24] sm:$0xf]
      %v185 = vld [vmem:[%s166 + $0x28] sm:$0xf]
      %v186 = vld [vmem:[%s166 + $0x2c] sm:$0xf]
      %v187 = vld [vmem:[%s166 + $0x30] sm:$0xf]
      %v188 = vld [vmem:[%s166 + $0x34] sm:$0xf]
      %v189 = vld [vmem:[%s166 + $0x38] sm:$0xf]
      %v190 = vld [vmem:[%s166 + $0x3c] sm:$0xf]
      %v191 = vld [vmem:[%s166 + $0x40] sm:$0xf]
      %v192 = vld [vmem:[%s166 + $0x44] sm:$0xf]
      %v193 = vld [vmem:[%s166 + $0x48] sm:$0xf]
      %v194 = vld [vmem:[%s166 + $0x4c] sm:$0xf]
      %v195 = vld [vmem:[%s166 + $0x50] sm:$0xf]
      %v196 = vld [vmem:[%s166 + $0x54] sm:$0xf]
      %v197 = vld [vmem:[%s166 + $0x58] sm:$0xf]
      %v198 = vld [vmem:[%s166 + $0x5c] sm:$0xf]
      %v199 = vld [vmem:[%s166 + $0x60] sm:$0xf]
      %v200 = vld [vmem:[%s166 + $0x64] sm:$0xf]
      %v201 = vld [vmem:[%s166 + $0x68] sm:$0xf]
      %v202 = vld [vmem:[%s166 + $0x6c] sm:$0xf]
      %v203 = vld [vmem:[%s166 + $0x70] sm:$0xf]
      %v204 = vld [vmem:[%s166 + $0x74] sm:$0xf]
      %v205 = vld [vmem:[%s166 + $0x78] sm:$0xf]
      %v206 = vld [vmem:[%s166 + $0x7c] sm:$0xf]
      %v207 = vld [vmem:[%s1] sm:$0xf]
      %v208 = vld [vmem:[%s1 + $0x4] sm:$0xf]
      %v209 = vld [vmem:[%s1 + $0x8] sm:$0xf]
      %v210 = vld [vmem:[%s1 + $0xc] sm:$0xf]
      %v211 = vld [vmem:[%s2] sm:$0x1]
      %v213 = vlaneseq
      %v214 = vshrl.u32 %v213, 7
      %v215 = vsub.s32 0, %v214
      %v216 = vrot.slane %v211, %v215
      %v250 = vunpack.c.l.b16 %v175
      %v251 = vunpack.c.l.b16 %v176
      %v252 = vunpack.c.l.b16 %v177
      %v253 = vunpack.c.l.b16 %v178
      %v254 = vunpack.c.l.b16 %v179
      %v255 = vunpack.c.l.b16 %v180
      %v256 = vunpack.c.l.b16 %v181
      %v257 = vunpack.c.l.b16 %v182
      %v258 = vunpack.c.l.b16 %v183
      %v259 = vunpack.c.l.b16 %v184
      %v260 = vunpack.c.l.b16 %v185
      %v261 = vunpack.c.l.b16 %v186
      %v262 = vunpack.c.l.b16 %v187
      %v263 = vunpack.c.l.b16 %v188
      %v264 = vunpack.c.l.b16 %v189
      %v265 = vunpack.c.l.b16 %v190
      %v266 = vunpack.c.l.b16 %v191
      %v267 = vunpack.c.l.b16 %v192
      %v268 = vunpack.c.l.b16 %v193
      %v269 = vunpack.c.l.b16 %v194
      %v270 = vunpack.c.l.b16 %v195
      %v271 = vunpack.c.l.b16 %v196
      %v272 = vunpack.c.l.b16 %v197
      %v273 = vunpack.c.l.b16 %v198
      %v274 = vunpack.c.l.b16 %v199
      %v275 = vunpack.c.l.b16 %v200
      %v276 = vunpack.c.l.b16 %v201
      %v277 = vunpack.c.l.b16 %v202
      %v278 = vunpack.c.l.b16 %v203
      %v279 = vunpack.c.l.b16 %v204
      %v280 = vunpack.c.l.b16 %v205
      %v281 = vunpack.c.l.b16 %v206
      %v282 = vpack.c.b16 %v251, %v250
      %v283 = vpack.c.b16 %v253, %v252
      %v284 = vpack.c.b16 %v255, %v254
      %v285 = vpack.c.b16 %v257, %v256
      %v286 = vpack.c.b16 %v259, %v258
      %v287 = vpack.c.b16 %v261, %v260
      %v288 = vpack.c.b16 %v263, %v262
      %v289 = vpack.c.b16 %v265, %v264
      %v290 = vpack.c.b16 %v267, %v266
      %v291 = vpack.c.b16 %v269, %v268
      %v292 = vpack.c.b16 %v271, %v270
      %v293 = vpack.c.b16 %v273, %v272
      %v294 = vpack.c.b16 %v275, %v274
      %v295 = vpack.c.b16 %v277, %v276
      %v296 = vpack.c.b16 %v279, %v278
      %v297 = vpack.c.b16 %v281, %v280
      %v302 = vunpack.c.l.b16 %v207
      %v303 = vunpack.c.l.b16 %v208
      %v304 = vunpack.c.l.b16 %v209
      %v305 = vunpack.c.l.b16 %v210
      %v306 = vpack.c.b16 %v303, %v302
      %v307 = vpack.c.b16 %v305, %v304
      %vm310 = vcmask 261120
      %v312 = vsel %vm310, %v282, 0
      %v315 = vsel %vm310, %v283, 0
      %v318 = vsel %vm310, %v284, 0
      %v321 = vsel %vm310, %v285, 0
      %v324 = vsel %vm310, %v286, 0
      %v327 = vsel %vm310, %v287, 0
      %v330 = vsel %vm310, %v288, 0
      %v333 = vsel %vm310, %v289, 0
      %v336 = vsel %vm310, %v290, 0
      %v339 = vsel %vm310, %v291, 0
      %v342 = vsel %vm310, %v292, 0
      %v345 = vsel %vm310, %v293, 0
      %v348 = vsel %vm310, %v294, 0
      %v351 = vsel %vm310, %v295, 0
      %v354 = vsel %vm310, %v296, 0
      %v357 = vsel %vm310, %v297, 0
      %359 = vmatprep.subr.bf16.mxu0 0
      %360 = vmatpush1.bf16.msra.mxu0 %v306
      %361 = vmatprep.subr.bf16.mxu0 0
      %362 = vmatpush1.bf16.msra.mxu0 %v307
      %363 = vmatprep.subr.bf16.mxu0 0
      %364 = vmatpush1.bf16.msra.mxu0 0
      %365 = vmatprep.subr.bf16.mxu0 0
      %366 = vmatpush1.bf16.msra.mxu0 0
      %367 = vmatprep.subr.bf16.mxu0 0
      %368 = vmatpush1.bf16.msra.mxu0 0
      %369 = vmatprep.subr.bf16.mxu0 0
      %370 = vmatpush1.bf16.msra.mxu0 0
      %371 = vmatprep.subr.bf16.mxu0 0
      %372 = vmatpush1.bf16.msra.mxu0 0
      %373 = vmatprep.subr.bf16.mxu0 0
      %374 = vmatpush1.bf16.msra.mxu0 0
      %375 = vmatprep.subr.bf16.mxu0 0
      %376 = vmatpush1.bf16.msra.mxu0 0
      %377 = vmatprep.subr.bf16.mxu0 0
      %378 = vmatpush1.bf16.msra.mxu0 0
      %379 = vmatprep.subr.bf16.mxu0 0
      %380 = vmatpush1.bf16.msra.mxu0 0
      %381 = vmatprep.subr.bf16.mxu0 0
      %382 = vmatpush1.bf16.msra.mxu0 0
      %383 = vmatprep.subr.bf16.mxu0 0
      %384 = vmatpush1.bf16.msra.mxu0 0
      %385 = vmatprep.subr.bf16.mxu0 0
      %386 = vmatpush1.bf16.msra.mxu0 0
      %387 = vmatprep.subr.bf16.mxu0 0
      %388 = vmatpush1.bf16.msra.mxu0 0
      %389 = vmatprep.subr.bf16.mxu0 0
      %390 = vmatpush1.bf16.msra.mxu0 0
      %391 = vmatprep.mubr.bf16.mxu0 0
      %392 = vmatmul.mubr.bf16.gmra.mrb[0].mxu0 %v312
      %v393 = vpop.f32.mrb[0].mxu0
      %v394 = vadd.f32 %v216, %v393
      %v395 = vpop.f32.mrb[0].mxu0
      %v396 = vpop.f32.mrb[0].mxu0
      %v397 = vadd.f32 %v216, %v396
      %v398 = vpop.f32.mrb[0].mxu0
      %399 = vmatprep.mubr.bf16.mxu0 0
      %400 = vmatmul.mubr.bf16.gmra.mrb[0].mxu0 %v315
      %v401 = vpop.f32.mrb[0].mxu0
      %v402 = vadd.f32 %v216, %v401
      %v403 = vpop.f32.mrb[0].mxu0
      %v404 = vpop.f32.mrb[0].mxu0
      %v405 = vadd.f32 %v216, %v404
      %v406 = vpop.f32.mrb[0].mxu0
      %407 = vmatprep.mubr.bf16.mxu0 0
      %408 = vmatmul.mubr.bf16.gmra.mrb[0].mxu0 %v318
      %v409 = vpop.f32.mrb[0].mxu0
      %v410 = vadd.f32 %v216, %v409
      %v411 = vpop.f32.mrb[0].mxu0
      %v412 = vpop.f32.mrb[0].mxu0
      %v413 = vadd.f32 %v216, %v412
      %v414 = vpop.f32.mrb[0].mxu0
      %415 = vmatprep.mubr.bf16.mxu0 0
      %416 = vmatmul.mubr.bf16.gmra.mrb[0].mxu0 %v321
      %v417 = vpop.f32.mrb[0].mxu0
      %v418 = vadd.f32 %v216, %v417
      %v419 = vpop.f32.mrb[0].mxu0
      %v420 = vpop.f32.mrb[0].mxu0
      %v421 = vadd.f32 %v216, %v420
      %v422 = vpop.f32.mrb[0].mxu0
      %423 = vmatprep.mubr.bf16.mxu0 0
      %424 = vmatmul.mubr.bf16.gmra.mrb[0].mxu0 %v324
      %v425 = vpop.f32.mrb[0].mxu0
      %v426 = vadd.f32 %v216, %v425
      %v427 = vpop.f32.mrb[0].mxu0
      %v428 = vpop.f32.mrb[0].mxu0
      %v429 = vadd.f32 %v216, %v428
      %v430 = vpop.f32.mrb[0].mxu0
      %431 = vmatprep.mubr.bf16.mxu0 0
      %432 = vmatmul.mubr.bf16.gmra.mrb[0].mxu0 %v327
      %v433 = vpop.f32.mrb[0].mxu0
      %v434 = vadd.f32 %v216, %v433
      %v435 = vpop.f32.mrb[0].mxu0
      %v436 = vpop.f32.mrb[0].mxu0
      %v437 = vadd.f32 %v216, %v436
      %v438 = vpop.f32.mrb[0].mxu0
      %439 = vmatprep.mubr.bf16.mxu0 0
      %440 = vmatmul.mubr.bf16.gmra.mrb[0].mxu0 %v330
      %v441 = vpop.f32.mrb[0].mxu0
      %v442 = vadd.f32 %v216, %v441
      %v443 = vpop.f32.mrb[0].mxu0
      %v444 = vpop.f32.mrb[0].mxu0
      %v445 = vadd.f32 %v216, %v444
      %v446 = vpop.f32.mrb[0].mxu0
      %447 = vmatprep.mubr.bf16.mxu0 0
      %448 = vmatmul.mubr.bf16.gmra.mrb[0].mxu0 %v333
      %v449 = vpop.f32.mrb[0].mxu0
      %v450 = vadd.f32 %v216, %v449
      %v451 = vpop.f32.mrb[0].mxu0
      %v452 = vpop.f32.mrb[0].mxu0
      %v453 = vadd.f32 %v216, %v452
      %v454 = vpop.f32.mrb[0].mxu0
      %455 = vmatprep.mubr.bf16.mxu0 0
      %456 = vmatmul.mubr.bf16.gmra.mrb[0].mxu0 %v336
      %v457 = vpop.f32.mrb[0].mxu0
      %v458 = vadd.f32 %v216, %v457
      %v459 = vpop.f32.mrb[0].mxu0
      %v460 = vpop.f32.mrb[0].mxu0
      %v461 = vadd.f32 %v216, %v460
      %v462 = vpop.f32.mrb[0].mxu0
      %463 = vmatprep.mubr.bf16.mxu0 0
      %464 = vmatmul.mubr.bf16.gmra.mrb[0].mxu0 %v339
      %v465 = vpop.f32.mrb[0].mxu0
      %v466 = vadd.f32 %v216, %v465
      %v467 = vpop.f32.mrb[0].mxu0
      %v468 = vpop.f32.mrb[0].mxu0
      %v469 = vadd.f32 %v216, %v468
      %v470 = vpop.f32.mrb[0].mxu0
      %471 = vmatprep.mubr.bf16.mxu0 0
      %472 = vmatmul.mubr.bf16.gmra.mrb[0].mxu0 %v342
      %v473 = vpop.f32.mrb[0].mxu0
      %v474 = vadd.f32 %v216, %v473
      %v475 = vpop.f32.mrb[0].mxu0
      %v476 = vpop.f32.mrb[0].mxu0
      %v477 = vadd.f32 %v216, %v476
      %v478 = vpop.f32.mrb[0].mxu0
      %479 = vmatprep.mubr.bf16.mxu0 0
      %480 = vmatmul.mubr.bf16.gmra.mrb[0].mxu0 %v345
      %v481 = vpop.f32.mrb[0].mxu0
      %v482 = vadd.f32 %v216, %v481
      %v483 = vpop.f32.mrb[0].mxu0
      %v484 = vpop.f32.mrb[0].mxu0
      %v485 = vadd.f32 %v216, %v484
      %v486 = vpop.f32.mrb[0].mxu0
      %487 = vmatprep.mubr.bf16.mxu0 0
      %488 = vmatmul.mubr.bf16.gmra.mrb[0].mxu0 %v348
      %v489 = vpop.f32.mrb[0].mxu0
      %v490 = vadd.f32 %v216, %v489
      %v491 = vpop.f32.mrb[0].mxu0
      %v492 = vpop.f32.mrb[0].mxu0
      %v493 = vadd.f32 %v216, %v492
      %v494 = vpop.f32.mrb[0].mxu0
      %495 = vmatprep.mubr.bf16.mxu0 0
      %496 = vmatmul.mubr.bf16.gmra.mrb[0].mxu0 %v351
      %v497 = vpop.f32.mrb[0].mxu0
      %v498 = vadd.f32 %v216, %v497
      %v499 = vpop.f32.mrb[0].mxu0
      %v500 = vpop.f32.mrb[0].mxu0
      %v501 = vadd.f32 %v216, %v500
      %v502 = vpop.f32.mrb[0].mxu0
      %503 = vmatprep.mubr.bf16.mxu0 0
      %504 = vmatmul.mubr.bf16.gmra.mrb[0].mxu0 %v354
      %v505 = vpop.f32.mrb[0].mxu0
      %v506 = vadd.f32 %v216, %v505
      %v507 = vpop.f32.mrb[0].mxu0
      %v508 = vpop.f32.mrb[0].mxu0
      %v509 = vadd.f32 %v216, %v508
      %v510 = vpop.f32.mrb[0].mxu0
      %511 = vmatprep.mubr.bf16.mxu0 0
      %512 = vmatmul.mubr.bf16.gmra.mrb[0].mxu0 %v357
      %v513 = vpop.f32.mrb[0].mxu0
      %v514 = vadd.f32 %v216, %v513
      %v515 = vpop.f32.mrb[0].mxu0
      %v516 = vpop.f32.mrb[0].mxu0
      %v517 = vadd.f32 %v216, %v516
      %v518 = vpop.f32.mrb[0].mxu0
      %519 = vdwg.mxu0
      %v520 = vpack.c.bf16 %v397, %v394
      %v521 = vpack.c.bf16 %v405, %v402
      %v522 = vpack.c.bf16 %v413, %v410
      %v523 = vpack.c.bf16 %v421, %v418
      %v524 = vpack.c.bf16 %v429, %v426
      %v525 = vpack.c.bf16 %v437, %v434
      %v526 = vpack.c.bf16 %v445, %v442
      %v527 = vpack.c.bf16 %v453, %v450
      %v528 = vpack.c.bf16 %v461, %v458
      %v529 = vpack.c.bf16 %v469, %v466
      %v530 = vpack.c.bf16 %v477, %v474
      %v531 = vpack.c.bf16 %v485, %v482
      %v532 = vpack.c.bf16 %v493, %v490
      %v533 = vpack.c.bf16 %v501, %v498
      %v534 = vpack.c.bf16 %v509, %v506
      %v535 = vpack.c.bf16 %v517, %v514
      %v552 = vunpack.c.l.b16 %v520
      %v553 = vunpack.c.h.b16 %v520
      %v554 = vunpack.c.l.b16 %v521
      %v555 = vunpack.c.h.b16 %v521
      %v556 = vunpack.c.l.b16 %v522
      %v557 = vunpack.c.h.b16 %v522
      %v558 = vunpack.c.l.b16 %v523
      %v559 = vunpack.c.h.b16 %v523
      %v560 = vunpack.c.l.b16 %v524
      %v561 = vunpack.c.h.b16 %v524
      %v562 = vunpack.c.l.b16 %v525
      %v563 = vunpack.c.h.b16 %v525
      %v564 = vunpack.c.l.b16 %v526
      %v565 = vunpack.c.h.b16 %v526
      %v566 = vunpack.c.l.b16 %v527
      %v567 = vunpack.c.h.b16 %v527
      %v568 = vunpack.c.l.b16 %v528
      %v569 = vunpack.c.h.b16 %v528
      %v570 = vunpack.c.l.b16 %v529
      %v571 = vunpack.c.h.b16 %v529
      %v572 = vunpack.c.l.b16 %v530
      %v573 = vunpack.c.h.b16 %v530
      %v574 = vunpack.c.l.b16 %v531
      %v575 = vunpack.c.h.b16 %v531
      %v576 = vunpack.c.l.b16 %v532
      %v577 = vunpack.c.h.b16 %v532
      %v578 = vunpack.c.l.b16 %v533
      %v579 = vunpack.c.h.b16 %v533
      %v580 = vunpack.c.l.b16 %v534
      %v581 = vunpack.c.h.b16 %v534
      %v582 = vunpack.c.l.b16 %v535
      %v583 = vunpack.c.h.b16 %v535
      %v584 = vpack.c.b16 %v552, %v552
      %v585 = vpack.c.b16 %v553, %v553
      %v586 = vpack.c.b16 %v554, %v554
      %v587 = vpack.c.b16 %v555, %v555
      %v588 = vpack.c.b16 %v556, %v556
      %v589 = vpack.c.b16 %v557, %v557
      %v590 = vpack.c.b16 %v558, %v558
      %v591 = vpack.c.b16 %v559, %v559
      %v592 = vpack.c.b16 %v560, %v560
      %v593 = vpack.c.b16 %v561, %v561
      %v594 = vpack.c.b16 %v562, %v562
      %v595 = vpack.c.b16 %v563, %v563
      %v596 = vpack.c.b16 %v564, %v564
      %v597 = vpack.c.b16 %v565, %v565
      %v598 = vpack.c.b16 %v566, %v566
      %v599 = vpack.c.b16 %v567, %v567
      %v600 = vpack.c.b16 %v568, %v568
      %v601 = vpack.c.b16 %v569, %v569
      %v602 = vpack.c.b16 %v570, %v570
      %v603 = vpack.c.b16 %v571, %v571
      %v604 = vpack.c.b16 %v572, %v572
      %v605 = vpack.c.b16 %v573, %v573
      %v606 = vpack.c.b16 %v574, %v574
      %v607 = vpack.c.b16 %v575, %v575
      %v608 = vpack.c.b16 %v576, %v576
      %v609 = vpack.c.b16 %v577, %v577
      %v610 = vpack.c.b16 %v578, %v578
      %v611 = vpack.c.b16 %v579, %v579
      %v612 = vpack.c.b16 %v580, %v580
      %v613 = vpack.c.b16 %v581, %v581
      %v614 = vpack.c.b16 %v582, %v582
      %v615 = vpack.c.b16 %v583, %v583
      %648 = vst [vmem:[%s172] sm:$0xf] %v584
      %649 = vst [vmem:[%s172 + $0x4] sm:$0xf] %v585
      %650 = vst [vmem:[%s172 + $0x8] sm:$0xf] %v586
      %651 = vst [vmem:[%s172 + $0xc] sm:$0xf] %v587
      %652 = vst [vmem:[%s172 + $0x10] sm:$0xf] %v588
      %653 = vst [vmem:[%s172 + $0x14] sm:$0xf] %v589
      %654 = vst [vmem:[%s172 + $0x18] sm:$0xf] %v590
      %655 = vst [vmem:[%s172 + $0x1c] sm:$0xf] %v591
      %656 = vst [vmem:[%s172 + $0x20] sm:$0xf] %v592
      %657 = vst [vmem:[%s172 + $0x24] sm:$0xf] %v593
      %658 = vst [vmem:[%s172 + $0x28] sm:$0xf] %v594
      %659 = vst [vmem:[%s172 + $0x2c] sm:$0xf] %v595
      %660 = vst [vmem:[%s172 + $0x30] sm:$0xf] %v596
      %661 = vst [vmem:[%s172 + $0x34] sm:$0xf] %v597
      %662 = vst [vmem:[%s172 + $0x38] sm:$0xf] %v598
      %663 = vst [vmem:[%s172 + $0x3c] sm:$0xf] %v599
      %664 = vst [vmem:[%s172 + $0x40] sm:$0xf] %v600
      %665 = vst [vmem:[%s172 + $0x44] sm:$0xf] %v601
      %666 = vst [vmem:[%s172 + $0x48] sm:$0xf] %v602
      %667 = vst [vmem:[%s172 + $0x4c] sm:$0xf] %v603
      %668 = vst [vmem:[%s172 + $0x50] sm:$0xf] %v604
      %669 = vst [vmem:[%s172 + $0x54] sm:$0xf] %v605
      %670 = vst [vmem:[%s172 + $0x58] sm:$0xf] %v606
      %671 = vst [vmem:[%s172 + $0x5c] sm:$0xf] %v607
      %672 = vst [vmem:[%s172 + $0x60] sm:$0xf] %v608
      %673 = vst [vmem:[%s172 + $0x64] sm:$0xf] %v609
      %674 = vst [vmem:[%s172 + $0x68] sm:$0xf] %v610
      %675 = vst [vmem:[%s172 + $0x6c] sm:$0xf] %v611
      %676 = vst [vmem:[%s172 + $0x70] sm:$0xf] %v612
      %677 = vst [vmem:[%s172 + $0x74] sm:$0xf] %v613
      %678 = vst [vmem:[%s172 + $0x78] sm:$0xf] %v614
      %679 = vst [vmem:[%s172 + $0x7c] sm:$0xf] %v615
      %s680 = smul.u32 32, %s14
      %p681 = scmp.lt.s32.totalorder %s680, 63
      %s682 = scalar_select %p681, %s680, 63
      %s683 = smul.addr %s682, 4
      %s684 = scalar_lea.vmem %s3, %s683
      // Predicated region
      $region33: #{_lambda_.3} parent=31 // pred_check
        %p685 = pneg %p100
      $region34: #{_lambda_.3} parent=31 // pred_check_branch
        %687 = sbr.rel (%p685) target = $region36
      $region35: #{_lambda_.3} parent=31 // pred_region
        %s688 = smul.u32 32, %s14
      $region36: #{_lambda_.3} parent=31 // pred_fallthru
        _
    $region32: #{_lambda_.3} parent=5 // pred_fallthru
      _
    %p689 = scmp.le.s32.totalorder 2, %s9
    // Predicated region
    $region37: #{_lambda_.3} parent=5 // pred_check
      %p690 = pneg %p689
    $region38: #{_lambda_.3} parent=5 // pred_check_branch
      %692 = sbr.rel (%p690) target = $region40
    $region39: #{_lambda_.3} parent=5 // pred_region
      %s693 = ssub.s32 %s9, 2
      // Predicated region
      $region41: #{_lambda_.3} parent=39 // pred_check
        %p694 = pneg %p106
      $region42: #{_lambda_.3} parent=39 // pred_check_branch
        %696 = sbr.rel (%p694) target = $region44
      $region43: #{_lambda_.3} parent=39 // pred_region
        %s697 = smul.u32 32, %s15
        %p698 = scmp.lt.s32.totalorder %s697, 63
        %s699 = scalar_select %p698, %s697, 63
        %s700 = smul.addr %s699, 4
        %s701 = scalar_lea.vmem %s3, %s700
      $region44: #{_lambda_.3} parent=39 // pred_fallthru
        _
    $region40: #{_lambda_.3} parent=5 // pred_fallthru
      _
  $region6: #{_lambda_.3} parent=0 // loop_footer
    %s13 = sadd.s32 1, %s9
  $region7: #{_lambda_.3} parent=0 // loop_footer_branch
    %8 = sbr.rel target = $region3
  $region8: #{_lambda_.3} parent=0 // loop_exit
    _

// kernel: _lambda_.5
$region0: #{_lambda_.5}
  #allocation0 [shape = 'u32[]', space=smem, size = 0x4, offset = 0x4, fixed_abs, tag = 'smem constant byte address 0x4 - core index']
  #allocation1 [shape = 'u32[144,128]{1,0:T(1,128)}', space=vmem, size = 0x12000, scoped, tag = 'internal scratch']
  %s0 = inlined_call_operand.vmem [shape: bf16[512,32], index: 0, kind: input, shape index: {}]
  %s1 = inlined_call_operand.vmem [shape: bf16[32,32], index: 1, kind: input, shape index: {}]
  %s2 = inlined_call_operand.vmem [shape: f32[1,32], index: 2, kind: input, shape index: {}]
  %s3 = inlined_call_operand.hbm [shape: f32[512,32], index: 3, kind: output, shape index: {}]
  %s4 = sld [smem:[#allocation0]]
  $region45: #{_lambda_.5} parent=0
    _
  %s6 = ssub.s32 1, %s4
  %s7 = scalar_select 0, %s6, %s4
  $region1: #{_lambda_.5} parent=0
    #allocation2 [shape = 'u8[262144]{0}', space=vmem, size = 0x40000, scoped, tag = 'output window, operand 0']
    #allocation3 [shape = 's32[2]{0}', space=sflag, size = 0x8, scoped, tag = 'scoped memory for _lambda_.5']
    %8 = vsyncpa [#allocation3], 0
    %s9 = scalar_lea.sflag [#allocation3], 1
    %10 = vsyncpa %s9, 0
    loop: start=0, step=1, limit=4
    $region2: #{_lambda_.5} parent=1 // loop_pre_header
      _
    $region3: #{_lambda_.5} parent=1 // loop_header
      %s12 = sphi 0, %s16
      %p13 = scmp.ge.s32.totalorder %s12, 4
      %s22 = sphi 0, %s24
      %s25 = sphi 0, %s22
      %s26 = sphi 0, %s25
      %s42 = sphi 0, %s26
      %s46 = sphi 0, %s46
      %s48 = sphi 0, %s46
      %s49 = sphi 0, %s48
      %s63 = sphi 0, %s49
      %s67 = sphi 0, %s67
      %s69 = sphi 0, %s67
      %s70 = sphi 0, %s69
      %s84 = sphi 0, %s70
      %s90 = sphi 0, %s92
      %s93 = sphi 0, %s90
      %s94 = sphi 0, %s93
      %s110 = sphi 0, %s94
    $region4: #{_lambda_.5} parent=1 // loop_header_branch
      %15 = sbr.rel (%p13) target = $region8
    $region5: #{_lambda_.5} parent=1 // loop_body
      %s17 = ssub.s32 %s12, 1
      %s18 = ssub.s32 %s12, 2
      %s19 = sadd.s32 %s12, 1
      %s20 = ssub.s32 %s12, %s19
      %p21 = scmp.eq.s32.totalorder %s20, 0
      %s23 = sadd.s32 %s22, 1
      %s24 = scalar_select %p21, %s22, %s23
      %p27 = pneg %p21
      %p28 = scmp.eq.s32.totalorder %s12, 1
      %p29 = por %p27, %p28
      %p30 = scmp.ne.s32.totalorder %s22, %s25
      %p31 = scmp.eq.s32.totalorder %s12, 0
      %p32 = por %p30, %p31
      %p33 = scmp.ne.s32.totalorder %s22, %s25
      %p34 = scmp.eq.s32.totalorder %s17, 1
      %p35 = por %p33, %p34
      %p36 = scmp.ne.s32.totalorder %s25, %s26
      %p37 = scmp.eq.s32.totalorder %s17, 0
      %p38 = por %p36, %p37
      %p39 = scmp.ne.s32.totalorder %s25, %s26
      %p40 = scmp.eq.s32.totalorder %s18, 1
      %p41 = por %p39, %p40
      %p43 = scmp.ne.s32.totalorder %s26, %s42
      %p44 = scmp.eq.s32.totalorder %s18, 0
      %p45 = por %p43, %p44
      %s47 = sadd.s32 %s46, 1
      %p50 = scmp.eq.s32.totalorder %s12, 1
      %p51 = scmp.ne.s32.totalorder %s46, %s48
      %p52 = scmp.eq.s32.totalorder %s12, 0
      %p53 = por %p51, %p52
      %p54 = scmp.ne.s32.totalorder %s46, %s48
      %p55 = scmp.eq.s32.totalorder %s17, 1
      %p56 = por %p54, %p55
      %p57 = scmp.ne.s32.totalorder %s48, %s49
      %p58 = scmp.eq.s32.totalorder %s17, 0
      %p59 = por %p57, %p58
      %p60 = scmp.ne.s32.totalorder %s48, %s49
      %p61 = scmp.eq.s32.totalorder %s18, 1
      %p62 = por %p60, %p61
      %p64 = scmp.ne.s32.totalorder %s49, %s63
      %p65 = scmp.eq.s32.totalorder %s18, 0
      %p66 = por %p64, %p65
      %s68 = sadd.s32 %s67, 1
      %p71 = scmp.eq.s32.totalorder %s12, 1
      %p72 = scmp.ne.s32.totalorder %s67, %s69
      %p73 = scmp.eq.s32.totalorder %s12, 0
      %p74 = por %p72, %p73
      %p75 = scmp.ne.s32.totalorder %s67, %s69
      %p76 = scmp.eq.s32.totalorder %s17, 1
      %p77 = por %p75, %p76
      %p78 = scmp.ne.s32.totalorder %s69, %s70
      %p79 = scmp.eq.s32.totalorder %s17, 0
      %p80 = por %p78, %p79
      %p81 = scmp.ne.s32.totalorder %s69, %s70
      %p82 = scmp.eq.s32.totalorder %s18, 1
      %p83 = por %p81, %p82
      %p85 = scmp.ne.s32.totalorder %s70, %s84
      %p86 = scmp.eq.s32.totalorder %s18, 0
      %p87 = por %p85, %p86
      %s88 = ssub.s32 %s12, %s19
      %p89 = scmp.eq.s32.totalorder %s88, 0
      %s91 = sadd.s32 %s90, 1
      %s92 = scalar_select %p89, %s90, %s91
      %p95 = pneg %p89
      %p96 = scmp.eq.s32.totalorder %s12, 1
      %p97 = por %p95, %p96
      %p98 = scmp.ne.s32.totalorder %s90, %s93
      %p99 = scmp.eq.s32.totalorder %s12, 0
      %p100 = por %p98, %p99
      %p101 = scmp.ne.s32.totalorder %s90, %s93
      %p102 = scmp.eq.s32.totalorder %s17, 1
      %p103 = por %p101, %p102
      %p104 = scmp.ne.s32.totalorder %s93, %s94
      %p105 = scmp.eq.s32.totalorder %s17, 0
      %p106 = por %p104, %p105
      %p107 = scmp.ne.s32.totalorder %s93, %s94
      %p108 = scmp.eq.s32.totalorder %s18, 1
      %p109 = por %p107, %p108
      %p111 = scmp.ne.s32.totalorder %s94, %s110
      %p112 = scmp.eq.s32.totalorder %s18, 0
      %p113 = por %p111, %p112
      %p114 = scmp.le.s32.totalorder 1, %s12
      %p115 = scmp.lt.s32.totalorder %s12, 3
      %p116 = pnand %p114, %p115
      %p117 = pneg %p116
      // Predicated region
      $region9: #{_lambda_.5} parent=5 // pred_check
        _
      $region10: #{_lambda_.5} parent=5 // pred_check_branch
        %119 = sbr.rel (%p116) target = $region12
      $region11: #{_lambda_.5} parent=5 // pred_region
        %s120 = ssub.s32 %s12, 1
        // Predicated region
        $region13: #{_lambda_.5} parent=11 // pred_check
          %p121 = pneg %p59
        $region14: #{_lambda_.5} parent=11 // pred_check_branch
          %123 = sbr.rel (%p121) target = $region16
        $region15: #{_lambda_.5} parent=11 // pred_region
          _
        $region16: #{_lambda_.5} parent=11 // pred_fallthru
          _
        // Predicated region
        $region17: #{_lambda_.5} parent=11 // pred_check
          %p124 = pneg %p80
        $region18: #{_lambda_.5} parent=11 // pred_check_branch
          %126 = sbr.rel (%p124) target = $region20
        $region19: #{_lambda_.5} parent=11 // pred_region
          _
        $region20: #{_lambda_.5} parent=11 // pred_fallthru
          _
      $region12: #{_lambda_.5} parent=5 // pred_fallthru
        _
      %p127 = scmp.lt.s32.totalorder %s12, 2
      // Predicated region
      $region21: #{_lambda_.5} parent=5 // pred_check
        %p128 = pneg %p127
      $region22: #{_lambda_.5} parent=5 // pred_check_branch
        %130 = sbr.rel (%p128) target = $region24
      $region23: #{_lambda_.5} parent=5 // pred_region
        // Predicated region
        $region25: #{_lambda_.5} parent=23 // pred_check
          %p131 = pneg %p32
        $region26: #{_lambda_.5} parent=23 // pred_check_branch
          %133 = sbr.rel (%p131) target = $region28
        $region27: #{_lambda_.5} parent=23 // pred_region
          %s134 = smul.u32 32, %s12
          %p135 = scmp.lt.s32.totalorder %s134, 63
          %s136 = scalar_select %p135, %s134, 63
          %s137 = smul.addr %s136, 4
          %s138 = scalar_lea.vmem %s0, %s137
          %s139 = smul.u32 32, %s12
        $region28: #{_lambda_.5} parent=23 // pred_fallthru
          _
      $region24: #{_lambda_.5} parent=5 // pred_fallthru
        _
      %p140 = scmp.le.s32.totalorder 1, %s12
      %p141 = scmp.lt.s32.totalorder %s12, 3
      %p142 = pnand %p140, %p141
      %p143 = pneg %p142
      // Predicated region
      $region29: #{_lambda_.5} parent=5 // pred_check
        _
      $region30: #{_lambda_.5} parent=5 // pred_check_branch
        %145 = sbr.rel (%p142) target = $region32
      $region31: #{_lambda_.5} parent=5 // pred_region
        %s146 = ssub.s32 %s12, 1
        %s147 = smul.u32 32, %s17
        %p148 = scmp.lt.s32.totalorder %s147, 63
        %s149 = scalar_select %p148, %s147, 63
        %s150 = smul.addr %s149, 4
        %s151 = scalar_lea.vmem %s0, %s150
        %p152 = pneg %p38
        %p153 = pneg %p35
        %p154 = pneg %p59
        %p155 = pneg %p56
        %p156 = pneg %p80
        %p157 = pneg %p77
        %p158 = pneg %p106
        %p159 = pneg %p103
        %s160 = sand.u32 %s93, 1
        %s161 = scalar_lea.sflag [#allocation3], %s160
        %s162 = sand.u32 %s93, 1
        %s163 = smul.addr %s162, 256
        %s164 = scalar_lea.vmem [#allocation2], %s163
        %s165 = smul.u32 32, %s17
        %p166 = scmp.lt.s32.totalorder %s165, 63
        %s167 = scalar_select %p166, %s165, 63
        %s168 = smul.addr %s167, 4
        %s169 = scalar_lea.vmem %s0, %s168
        %s170 = smul.u32 32, %s17
        %s171 = smul.u32 32, %s17
        %v173 = vld [vmem:[%s169] sm:$0xf]
        %v174 = vld [vmem:[%s169 + $0x4] sm:$0xf]
        %v175 = vld [vmem:[%s169 + $0x8] sm:$0xf]
        %v176 = vld [vmem:[%s169 + $0xc] sm:$0xf]
        %v177 = vld [vmem:[%s169 + $0x10] sm:$0xf]
        %v178 = vld [vmem:[%s169 + $0x14] sm:$0xf]
        %v179 = vld [vmem:[%s169 + $0x18] sm:$0xf]
        %v180 = vld [vmem:[%s169 + $0x1c] sm:$0xf]
        %v181 = vld [vmem:[%s169 + $0x20] sm:$0xf]
        %v182 = vld [vmem:[%s169 + $0x24] sm:$0xf]
        %v183 = vld [vmem:[%s169 + $0x28] sm:$0xf]
        %v184 = vld [vmem:[%s169 + $0x2c] sm:$0xf]
        %v185 = vld [vmem:[%s169 + $0x30] sm:$0xf]
        %v186 = vld [vmem:[%s169 + $0x34] sm:$0xf]
        %v187 = vld [vmem:[%s169 + $0x38] sm:$0xf]
        %v188 = vld [vmem:[%s169 + $0x3c] sm:$0xf]
        %v189 = vld [vmem:[%s169 + $0x40] sm:$0xf]
        %v190 = vld [vmem:[%s169 + $0x44] sm:$0xf]
        %v191 = vld [vmem:[%s169 + $0x48] sm:$0xf]
        %v192 = vld [vmem:[%s169 + $0x4c] sm:$0xf]
        %v193 = vld [vmem:[%s169 + $0x50] sm:$0xf]
        %v194 = vld [vmem:[%s169 + $0x54] sm:$0xf]
        %v195 = vld [vmem:[%s169 + $0x58] sm:$0xf]
        %v196 = vld [vmem:[%s169 + $0x5c] sm:$0xf]
        %v197 = vld [vmem:[%s169 + $0x60] sm:$0xf]
        %v198 = vld [vmem:[%s169 + $0x64] sm:$0xf]
        %v199 = vld [vmem:[%s169 + $0x68] sm:$0xf]
        %v200 = vld [vmem:[%s169 + $0x6c] sm:$0xf]
        %v201 = vld [vmem:[%s169 + $0x70] sm:$0xf]
        %v202 = vld [vmem:[%s169 + $0x74] sm:$0xf]
        %v203 = vld [vmem:[%s169 + $0x78] sm:$0xf]
        %v204 = vld [vmem:[%s169 + $0x7c] sm:$0xf]
        %v205 = vld [vmem:[%s1] sm:$0xf]
        %v206 = vld [vmem:[%s1 + $0x4] sm:$0xf]
        %v207 = vld [vmem:[%s1 + $0x8] sm:$0xf]
        %v208 = vld [vmem:[%s1 + $0xc] sm:$0xf]
        %v209 = vld [vmem:[%s2] sm:$0x1]
        %v211 = vlaneseq
        %v212 = vshrl.u32 %v211, 7
        %v213 = vsub.s32 0, %v212
        %v214 = vrot.slane %v209, %v213
        %v248 = vunpack.c.l.b16 %v173
        %v249 = vunpack.c.l.b16 %v174
        %v250 = vunpack.c.l.b16 %v175
        %v251 = vunpack.c.l.b16 %v176
        %v252 = vunpack.c.l.b16 %v177
        %v253 = vunpack.c.l.b16 %v178
        %v254 = vunpack.c.l.b16 %v179
        %v255 = vunpack.c.l.b16 %v180
        %v256 = vunpack.c.l.b16 %v181
        %v257 = vunpack.c.l.b16 %v182
        %v258 = vunpack.c.l.b16 %v183
        %v259 = vunpack.c.l.b16 %v184
        %v260 = vunpack.c.l.b16 %v185
        %v261 = vunpack.c.l.b16 %v186
        %v262 = vunpack.c.l.b16 %v187
        %v263 = vunpack.c.l.b16 %v188
        %v264 = vunpack.c.l.b16 %v189
        %v265 = vunpack.c.l.b16 %v190
        %v266 = vunpack.c.l.b16 %v191
        %v267 = vunpack.c.l.b16 %v192
        %v268 = vunpack.c.l.b16 %v193
        %v269 = vunpack.c.l.b16 %v194
        %v270 = vunpack.c.l.b16 %v195
        %v271 = vunpack.c.l.b16 %v196
        %v272 = vunpack.c.l.b16 %v197
        %v273 = vunpack.c.l.b16 %v198
        %v274 = vunpack.c.l.b16 %v199
        %v275 = vunpack.c.l.b16 %v200
        %v276 = vunpack.c.l.b16 %v201
        %v277 = vunpack.c.l.b16 %v202
        %v278 = vunpack.c.l.b16 %v203
        %v279 = vunpack.c.l.b16 %v204
        %v280 = vpack.c.b16 %v249, %v248
        %v281 = vpack.c.b16 %v251, %v250
        %v282 = vpack.c.b16 %v253, %v252
        %v283 = vpack.c.b16 %v255, %v254
        %v284 = vpack.c.b16 %v257, %v256
        %v285 = vpack.c.b16 %v259, %v258
        %v286 = vpack.c.b16 %v261, %v260
        %v287 = vpack.c.b16 %v263, %v262
        %v288 = vpack.c.b16 %v265, %v264
        %v289 = vpack.c.b16 %v267, %v266
        %v290 = vpack.c.b16 %v269, %v268
        %v291 = vpack.c.b16 %v271, %v270
        %v292 = vpack.c.b16 %v273, %v272
        %v293 = vpack.c.b16 %v275, %v274
        %v294 = vpack.c.b16 %v277, %v276
        %v295 = vpack.c.b16 %v279, %v278
        %v300 = vunpack.c.l.b16 %v205
        %v301 = vunpack.c.l.b16 %v206
        %v302 = vunpack.c.l.b16 %v207
        %v303 = vunpack.c.l.b16 %v208
        %v304 = vpack.c.b16 %v301, %v300
        %v305 = vpack.c.b16 %v303, %v302
        %vm308 = vcmask 261120
        %v310 = vsel %vm308, %v280, 0
        %v313 = vsel %vm308, %v281, 0
        %v316 = vsel %vm308, %v282, 0
        %v319 = vsel %vm308, %v283, 0
        %v322 = vsel %vm308, %v284, 0
        %v325 = vsel %vm308, %v285, 0
        %v328 = vsel %vm308, %v286, 0
        %v331 = vsel %vm308, %v287, 0
        %v334 = vsel %vm308, %v288, 0
        %v337 = vsel %vm308, %v289, 0
        %v340 = vsel %vm308, %v290, 0
        %v343 = vsel %vm308, %v291, 0
        %v346 = vsel %vm308, %v292, 0
        %v349 = vsel %vm308, %v293, 0
        %v352 = vsel %vm308, %v294, 0
        %v355 = vsel %vm308, %v295, 0
        %357 = vmatprep.subr.bf16.mxu0 0
        %358 = vmatpush1.bf16.msra.mxu0 %v304
        %359 = vmatprep.subr.bf16.mxu0 0
        %360 = vmatpush1.bf16.msra.mxu0 %v305
        %361 = vmatprep.subr.bf16.mxu0 0
        %362 = vmatpush1.bf16.msra.mxu0 0
        %363 = vmatprep.subr.bf16.mxu0 0
        %364 = vmatpush1.bf16.msra.mxu0 0
        %365 = vmatprep.subr.bf16.mxu0 0
        %366 = vmatpush1.bf16.msra.mxu0 0
        %367 = vmatprep.subr.bf16.mxu0 0
        %368 = vmatpush1.bf16.msra.mxu0 0
        %369 = vmatprep.subr.bf16.mxu0 0
        %370 = vmatpush1.bf16.msra.mxu0 0
        %371 = vmatprep.subr.bf16.mxu0 0
        %372 = vmatpush1.bf16.msra.mxu0 0
        %373 = vmatprep.subr.bf16.mxu0 0
        %374 = vmatpush1.bf16.msra.mxu0 0
        %375 = vmatprep.subr.bf16.mxu0 0
        %376 = vmatpush1.bf16.msra.mxu0 0
        %377 = vmatprep.subr.bf16.mxu0 0
        %378 = vmatpush1.bf16.msra.mxu0 0
        %379 = vmatprep.subr.bf16.mxu0 0
        %380 = vmatpush1.bf16.msra.mxu0 0
        %381 = vmatprep.subr.bf16.mxu0 0
        %382 = vmatpush1.bf16.msra.mxu0 0
        %383 = vmatprep.subr.bf16.mxu0 0
        %384 = vmatpush1.bf16.msra.mxu0 0
        %385 = vmatprep.subr.bf16.mxu0 0
        %386 = vmatpush1.bf16.msra.mxu0 0
        %387 = vmatprep.subr.bf16.mxu0 0
        %388 = vmatpush1.bf16.msra.mxu0 0
        %389 = vmatprep.mubr.bf16.mxu0 0
        %390 = vmatmul.mubr.bf16.gmra.mrb[0].mxu0 %v310
        %v391 = vpop.f32.mrb[0].mxu0
        %v392 = vadd.f32 %v214, %v391
        %v393 = vpop.f32.mrb[0].mxu0
        %v394 = vpop.f32.mrb[0].mxu0
        %v395 = vadd.f32 %v214, %v394
        %v396 = vpop.f32.mrb[0].mxu0
        %397 = vmatprep.mubr.bf16.mxu0 0
        %398 = vmatmul.mubr.bf16.gmra.mrb[0].mxu0 %v313
        %v399 = vpop.f32.mrb[0].mxu0
        %v400 = vadd.f32 %v214, %v399
        %v401 = vpop.f32.mrb[0].mxu0
        %v402 = vpop.f32.mrb[0].mxu0
        %v403 = vadd.f32 %v214, %v402
        %v404 = vpop.f32.mrb[0].mxu0
        %405 = vmatprep.mubr.bf16.mxu0 0
        %406 = vmatmul.mubr.bf16.gmra.mrb[0].mxu0 %v316
        %v407 = vpop.f32.mrb[0].mxu0
        %v408 = vadd.f32 %v214, %v407
        %v409 = vpop.f32.mrb[0].mxu0
        %v410 = vpop.f32.mrb[0].mxu0
        %v411 = vadd.f32 %v214, %v410
        %v412 = vpop.f32.mrb[0].mxu0
        %413 = vmatprep.mubr.bf16.mxu0 0
        %414 = vmatmul.mubr.bf16.gmra.mrb[0].mxu0 %v319
        %v415 = vpop.f32.mrb[0].mxu0
        %v416 = vadd.f32 %v214, %v415
        %v417 = vpop.f32.mrb[0].mxu0
        %v418 = vpop.f32.mrb[0].mxu0
        %v419 = vadd.f32 %v214, %v418
        %v420 = vpop.f32.mrb[0].mxu0
        %421 = vmatprep.mubr.bf16.mxu0 0
        %422 = vmatmul.mubr.bf16.gmra.mrb[0].mxu0 %v322
        %v423 = vpop.f32.mrb[0].mxu0
        %v424 = vadd.f32 %v214, %v423
        %v425 = vpop.f32.mrb[0].mxu0
        %v426 = vpop.f32.mrb[0].mxu0
        %v427 = vadd.f32 %v214, %v426
        %v428 = vpop.f32.mrb[0].mxu0
        %429 = vmatprep.mubr.bf16.mxu0 0
        %430 = vmatmul.mubr.bf16.gmra.mrb[0].mxu0 %v325
        %v431 = vpop.f32.mrb[0].mxu0
        %v432 = vadd.f32 %v214, %v431
        %v433 = vpop.f32.mrb[0].mxu0
        %v434 = vpop.f32.mrb[0].mxu0
        %v435 = vadd.f32 %v214, %v434
        %v436 = vpop.f32.mrb[0].mxu0
        %437 = vmatprep.mubr.bf16.mxu0 0
        %438 = vmatmul.mubr.bf16.gmra.mrb[0].mxu0 %v328
        %v439 = vpop.f32.mrb[0].mxu0
        %v440 = vadd.f32 %v214, %v439
        %v441 = vpop.f32.mrb[0].mxu0
        %v442 = vpop.f32.mrb[0].mxu0
        %v443 = vadd.f32 %v214, %v442
        %v444 = vpop.f32.mrb[0].mxu0
        %445 = vmatprep.mubr.bf16.mxu0 0
        %446 = vmatmul.mubr.bf16.gmra.mrb[0].mxu0 %v331
        %v447 = vpop.f32.mrb[0].mxu0
        %v448 = vadd.f32 %v214, %v447
        %v449 = vpop.f32.mrb[0].mxu0
        %v450 = vpop.f32.mrb[0].mxu0
        %v451 = vadd.f32 %v214, %v450
        %v452 = vpop.f32.mrb[0].mxu0
        %453 = vmatprep.mubr.bf16.mxu0 0
        %454 = vmatmul.mubr.bf16.gmra.mrb[0].mxu0 %v334
        %v455 = vpop.f32.mrb[0].mxu0
        %v456 = vadd.f32 %v214, %v455
        %v457 = vpop.f32.mrb[0].mxu0
        %v458 = vpop.f32.mrb[0].mxu0
        %v459 = vadd.f32 %v214, %v458
        %v460 = vpop.f32.mrb[0].mxu0
        %461 = vmatprep.mubr.bf16.mxu0 0
        %462 = vmatmul.mubr.bf16.gmra.mrb[0].mxu0 %v337
        %v463 = vpop.f32.mrb[0].mxu0
        %v464 = vadd.f32 %v214, %v463
        %v465 = vpop.f32.mrb[0].mxu0
        %v466 = vpop.f32.mrb[0].mxu0
        %v467 = vadd.f32 %v214, %v466
        %v468 = vpop.f32.mrb[0].mxu0
        %469 = vmatprep.mubr.bf16.mxu0 0
        %470 = vmatmul.mubr.bf16.gmra.mrb[0].mxu0 %v340
        %v471 = vpop.f32.mrb[0].mxu0
        %v472 = vadd.f32 %v214, %v471
        %v473 = vpop.f32.mrb[0].mxu0
        %v474 = vpop.f32.mrb[0].mxu0
        %v475 = vadd.f32 %v214, %v474
        %v476 = vpop.f32.mrb[0].mxu0
        %477 = vmatprep.mubr.bf16.mxu0 0
        %478 = vmatmul.mubr.bf16.gmra.mrb[0].mxu0 %v343
        %v479 = vpop.f32.mrb[0].mxu0
        %v480 = vadd.f32 %v214, %v479
        %v481 = vpop.f32.mrb[0].mxu0
        %v482 = vpop.f32.mrb[0].mxu0
        %v483 = vadd.f32 %v214, %v482
        %v484 = vpop.f32.mrb[0].mxu0
        %485 = vmatprep.mubr.bf16.mxu0 0
        %486 = vmatmul.mubr.bf16.gmra.mrb[0].mxu0 %v346
        %v487 = vpop.f32.mrb[0].mxu0
        %v488 = vadd.f32 %v214, %v487
        %v489 = vpop.f32.mrb[0].mxu0
        %v490 = vpop.f32.mrb[0].mxu0
        %v491 = vadd.f32 %v214, %v490
        %v492 = vpop.f32.mrb[0].mxu0
        %493 = vmatprep.mubr.bf16.mxu0 0
        %494 = vmatmul.mubr.bf16.gmra.mrb[0].mxu0 %v349
        %v495 = vpop.f32.mrb[0].mxu0
        %v496 = vadd.f32 %v214, %v495
        %v497 = vpop.f32.mrb[0].mxu0
        %v498 = vpop.f32.mrb[0].mxu0
        %v499 = vadd.f32 %v214, %v498
        %v500 = vpop.f32.mrb[0].mxu0
        %501 = vmatprep.mubr.bf16.mxu0 0
        %502 = vmatmul.mubr.bf16.gmra.mrb[0].mxu0 %v352
        %v503 = vpop.f32.mrb[0].mxu0
        %v504 = vadd.f32 %v214, %v503
        %v505 = vpop.f32.mrb[0].mxu0
        %v506 = vpop.f32.mrb[0].mxu0
        %v507 = vadd.f32 %v214, %v506
        %v508 = vpop.f32.mrb[0].mxu0
        %509 = vmatprep.mubr.bf16.mxu0 0
        %510 = vmatmul.mubr.bf16.gmra.mrb[0].mxu0 %v355
        %v511 = vpop.f32.mrb[0].mxu0
        %v512 = vadd.f32 %v214, %v511
        %v513 = vpop.f32.mrb[0].mxu0
        %v514 = vpop.f32.mrb[0].mxu0
        %v515 = vadd.f32 %v214, %v514
        %v516 = vpop.f32.mrb[0].mxu0
        %517 = vdwg.mxu0
        %518 = vst.msk [vmem:[%s164] sm:$0xff] %vm308, %v392
        %519 = vst.msk [vmem:[%s164 + $0x8] sm:$0xff] %vm308, %v395
        %520 = vst.msk [vmem:[%s164 + $0x10] sm:$0xff] %vm308, %v400
        %521 = vst.msk [vmem:[%s164 + $0x18] sm:$0xff] %vm308, %v403
        %522 = vst.msk [vmem:[%s164 + $0x20] sm:$0xff] %vm308, %v408
        %523 = vst.msk [vmem:[%s164 + $0x28] sm:$0xff] %vm308, %v411
        %524 = vst.msk [vmem:[%s164 + $0x30] sm:$0xff] %vm308, %v416
        %525 = vst.msk [vmem:[%s164 + $0x38] sm:$0xff] %vm308, %v419
        %526 = vst.msk [vmem:[%s164 + $0x40] sm:$0xff] %vm308, %v424
        %527 = vst.msk [vmem:[%s164 + $0x48] sm:$0xff] %vm308, %v427
        %528 = vst.msk [vmem:[%s164 + $0x50] sm:$0xff] %vm308, %v432
        %529 = vst.msk [vmem:[%s164 + $0x58] sm:$0xff] %vm308, %v435
        %530 = vst.msk [vmem:[%s164 + $0x60] sm:$0xff] %vm308, %v440
        %531 = vst.msk [vmem:[%s164 + $0x68] sm:$0xff] %vm308, %v443
        %532 = vst.msk [vmem:[%s164 + $0x70] sm:$0xff] %vm308, %v448
        %533 = vst.msk [vmem:[%s164 + $0x78] sm:$0xff] %vm308, %v451
        %534 = vst.msk [vmem:[%s164 + $0x80] sm:$0xff] %vm308, %v456
        %535 = vst.msk [vmem:[%s164 + $0x88] sm:$0xff] %vm308, %v459
        %536 = vst.msk [vmem:[%s164 + $0x90] sm:$0xff] %vm308, %v464
        %537 = vst.msk [vmem:[%s164 + $0x98] sm:$0xff] %vm308, %v467
        %538 = vst.msk [vmem:[%s164 + $0xa0] sm:$0xff] %vm308, %v472
        %539 = vst.msk [vmem:[%s164 + $0xa8] sm:$0xff] %vm308, %v475
        %540 = vst.msk [vmem:[%s164 + $0xb0] sm:$0xff] %vm308, %v480
        %541 = vst.msk [vmem:[%s164 + $0xb8] sm:$0xff] %vm308, %v483
        %542 = vst.msk [vmem:[%s164 + $0xc0] sm:$0xff] %vm308, %v488
        %543 = vst.msk [vmem:[%s164 + $0xc8] sm:$0xff] %vm308, %v491
        %544 = vst.msk [vmem:[%s164 + $0xd0] sm:$0xff] %vm308, %v496
        %545 = vst.msk [vmem:[%s164 + $0xd8] sm:$0xff] %vm308, %v499
        %546 = vst.msk [vmem:[%s164 + $0xe0] sm:$0xff] %vm308, %v504
        %547 = vst.msk [vmem:[%s164 + $0xe8] sm:$0xff] %vm308, %v507
        %548 = vst.msk [vmem:[%s164 + $0xf0] sm:$0xff] %vm308, %v512
        %549 = vst.msk [vmem:[%s164 + $0xf8] sm:$0xff] %vm308, %v515
        %s550 = sand.u32 %s93, 1
        %s551 = scalar_lea.sflag [#allocation3], %s550
        %s552 = sand.u32 %s93, 1
        %s553 = smul.addr %s552, 256
        %s554 = scalar_lea.vmem [#allocation2], %s553
        // Predicated region
        $region33: #{_lambda_.5} parent=31 // pred_check
          %p555 = pneg %p103
        $region34: #{_lambda_.5} parent=31 // pred_check_branch
          %557 = sbr.rel (%p555) target = $region36
        $region35: #{_lambda_.5} parent=31 // pred_region
          %s558 = smul.u32 32, %s17
          %s560 = ssub.s32 4096, 4096
          %561 = vsyncadd %s551, %s560
          %s562 = smul.addr %s558, 128
          %s563 = scalar_lea.hbm %s3, %s562
          %s564 = sshll.u32 %s554, 4
          %s565 = int_to_ptr.vmem [resolvable:$true] %s564
          %570 = dma.vmem_to_hbm [thread:$0]  %s565, 4096, %s563, %s551, 128, 128, 8
        $region36: #{_lambda_.5} parent=31 // pred_fallthru
          _
      $region32: #{_lambda_.5} parent=5 // pred_fallthru
        _
      %p571 = scmp.le.s32.totalorder 2, %s12
      // Predicated region
      $region37: #{_lambda_.5} parent=5 // pred_check
        %p572 = pneg %p571
      $region38: #{_lambda_.5} parent=5 // pred_check_branch
        %574 = sbr.rel (%p572) target = $region40
      $region39: #{_lambda_.5} parent=5 // pred_region
        %s575 = ssub.s32 %s12, 2
        // Predicated region
        $region41: #{_lambda_.5} parent=39 // pred_check
          %p576 = pneg %p109
        $region42: #{_lambda_.5} parent=39 // pred_check_branch
          %578 = sbr.rel (%p576) target = $region44
        $region43: #{_lambda_.5} parent=39 // pred_region
          %s579 = sand.u32 %s94, 1
          %s580 = scalar_lea.sflag [#allocation3], %s579
          %s581 = sand.u32 %s94, 1
          %s582 = smul.addr %s581, 256
          %s583 = scalar_lea.vmem [#allocation2], %s582
          %584 = dma.done %s580, 4096
        $region44: #{_lambda_.5} parent=39 // pred_fallthru
          _
      $region40: #{_lambda_.5} parent=5 // pred_fallthru
        _
    $region6: #{_lambda_.5} parent=1 // loop_footer
      %s16 = sadd.s32 1, %s12
    $region7: #{_lambda_.5} parent=1 // loop_footer_branch
      %11 = sbr.rel target = $region3
    $region8: #{_lambda_.5} parent=1 // loop_exit
      _
    %585 = vsyncpa [#allocation3], 1
    %s586 = scalar_lea.sflag [#allocation3], 1
    %587 = vsyncpa %s586, 1

// kernel: _lambda_.4
$region0: #{_lambda_.4}
  #allocation0 [shape = 'u32[]', space=smem, size = 0x4, offset = 0x4, fixed_abs, tag = 'smem constant byte address 0x4 - core index']
  #allocation1 [shape = 'u32[144,128]{1,0:T(1,128)}', space=vmem, size = 0x12000, scoped, tag = 'internal scratch']
  %s0 = inlined_call_operand.vmem [shape: bf16[8,64,32], index: 0, kind: input, shape index: {}]
  %s1 = inlined_call_operand.vmem [shape: bf16[8,144,32], index: 1, kind: input, shape index: {}]
  %s2 = inlined_call_operand.vmem [shape: bf16[8,144,32], index: 2, kind: input, shape index: {}]
  %s3 = inlined_call_operand.vmem [shape: f32[8,2,64,24], index: 3, kind: input, shape index: {}]
  %s4 = inlined_call_operand.vmem [shape: f32[24,144], index: 4, kind: input, shape index: {}]
  %s5 = inlined_call_operand.vmem [shape: bf16[8,64,32], index: 5, kind: output, shape index: {}]
  %s6 = sld [smem:[#allocation0]]
  $region53: #{_lambda_.4} parent=0
    _
  %s8 = ssub.s32 1, %s6
  %s9 = scalar_select 0, %s8, %s6
  loop: start=0, step=1, limit=6
  $region2: #{_lambda_.4} parent=0 // loop_pre_header
    _
  $region3: #{_lambda_.4} parent=0 // loop_header
    %s11 = sphi 0, %s15
    %p12 = scmp.ge.s32.totalorder %s11, 6
    %s21 = sphi 0, %s23
    %s24 = sphi 0, %s21
    %s25 = sphi 0, %s24
    %s41 = sphi 0, %s25
    %s47 = sphi 0, %s49
    %s50 = sphi 0, %s47
    %s51 = sphi 0, %s50
    %s67 = sphi 0, %s51
    %s73 = sphi 0, %s75
    %s76 = sphi 0, %s73
    %s77 = sphi 0, %s76
    %s93 = sphi 0, %s77
    %s99 = sphi 0, %s101
    %s102 = sphi 0, %s99
    %s103 = sphi 0, %s102
    %s119 = sphi 0, %s103
    %s123 = sphi 0, %s123
    %s125 = sphi 0, %s123
    %s126 = sphi 0, %s125
    %s140 = sphi 0, %s126
    %s146 = sphi 0, %s148
    %s149 = sphi 0, %s146
    %s150 = sphi 0, %s149
    %s166 = sphi 0, %s150
  $region4: #{_lambda_.4} parent=0 // loop_header_branch
    %14 = sbr.rel (%p12) target = $region8
  $region5: #{_lambda_.4} parent=0 // loop_body
    %s16 = ssub.s32 %s11, 1
    %s17 = ssub.s32 %s11, 2
    %s18 = sadd.s32 %s11, 1
    %s19 = ssub.s32 %s11, %s18
    %p20 = scmp.eq.s32.totalorder %s19, 0
    %s22 = sadd.s32 %s21, 1
    %s23 = scalar_select %p20, %s21, %s22
    %p26 = pneg %p20
    %p27 = scmp.eq.s32.totalorder %s11, 3
    %p28 = por %p26, %p27
    %p29 = scmp.ne.s32.totalorder %s21, %s24
    %p30 = scmp.eq.s32.totalorder %s11, 0
    %p31 = por %p29, %p30
    %p32 = scmp.ne.s32.totalorder %s21, %s24
    %p33 = scmp.eq.s32.totalorder %s16, 3
    %p34 = por %p32, %p33
    %p35 = scmp.ne.s32.totalorder %s24, %s25
    %p36 = scmp.eq.s32.totalorder %s16, 0
    %p37 = por %p35, %p36
    %p38 = scmp.ne.s32.totalorder %s24, %s25
    %p39 = scmp.eq.s32.totalorder %s17, 3
    %p40 = por %p38, %p39
    %p42 = scmp.ne.s32.totalorder %s25, %s41
    %p43 = scmp.eq.s32.totalorder %s17, 0
    %p44 = por %p42, %p43
    %s45 = ssub.s32 %s11, %s18
    %p46 = scmp.eq.s32.totalorder %s45, 0
    %s48 = sadd.s32 %s47, 1
    %s49 = scalar_select %p46, %s47, %s48
    %p52 = pneg %p46
    %p53 = scmp.eq.s32.totalorder %s11, 3
    %p54 = por %p52, %p53
    %p55 = scmp.ne.s32.totalorder %s47, %s50
    %p56 = scmp.eq.s32.totalorder %s11, 0
    %p57 = por %p55, %p56
    %p58 = scmp.ne.s32.totalorder %s47, %s50
    %p59 = scmp.eq.s32.totalorder %s16, 3
    %p60 = por %p58, %p59
    %p61 = scmp.ne.s32.totalorder %s50, %s51
    %p62 = scmp.eq.s32.totalorder %s16, 0
    %p63 = por %p61, %p62
    %p64 = scmp.ne.s32.totalorder %s50, %s51
    %p65 = scmp.eq.s32.totalorder %s17, 3
    %p66 = por %p64, %p65
    %p68 = scmp.ne.s32.totalorder %s51, %s67
    %p69 = scmp.eq.s32.totalorder %s17, 0
    %p70 = por %p68, %p69
    %s71 = ssub.s32 %s11, %s18
    %p72 = scmp.eq.s32.totalorder %s71, 0
    %s74 = sadd.s32 %s73, 1
    %s75 = scalar_select %p72, %s73, %s74
    %p78 = pneg %p72
    %p79 = scmp.eq.s32.totalorder %s11, 3
    %p80 = por %p78, %p79
    %p81 = scmp.ne.s32.totalorder %s73, %s76
    %p82 = scmp.eq.s32.totalorder %s11, 0
    %p83 = por %p81, %p82
    %p84 = scmp.ne.s32.totalorder %s73, %s76
    %p85 = scmp.eq.s32.totalorder %s16, 3
    %p86 = por %p84, %p85
    %p87 = scmp.ne.s32.totalorder %s76, %s77
    %p88 = scmp.eq.s32.totalorder %s16, 0
    %p89 = por %p87, %p88
    %p90 = scmp.ne.s32.totalorder %s76, %s77
    %p91 = scmp.eq.s32.totalorder %s17, 3
    %p92 = por %p90, %p91
    %p94 = scmp.ne.s32.totalorder %s77, %s93
    %p95 = scmp.eq.s32.totalorder %s17, 0
    %p96 = por %p94, %p95
    %s97 = ssub.s32 %s11, %s18
    %p98 = scmp.eq.s32.totalorder %s97, 0
    %s100 = sadd.s32 %s99, 1
    %s101 = scalar_select %p98, %s99, %s100
    %p104 = pneg %p98
    %p105 = scmp.eq.s32.totalorder %s11, 3
    %p106 = por %p104, %p105
    %p107 = scmp.ne.s32.totalorder %s99, %s102
    %p108 = scmp.eq.s32.totalorder %s11, 0
    %p109 = por %p107, %p108
    %p110 = scmp.ne.s32.totalorder %s99, %s102
    %p111 = scmp.eq.s32.totalorder %s16, 3
    %p112 = por %p110, %p111
    %p113 = scmp.ne.s32.totalorder %s102, %s103
    %p114 = scmp.eq.s32.totalorder %s16, 0
    %p115 = por %p113, %p114
    %p116 = scmp.ne.s32.totalorder %s102, %s103
    %p117 = scmp.eq.s32.totalorder %s17, 3
    %p118 = por %p116, %p117
    %p120 = scmp.ne.s32.totalorder %s103, %s119
    %p121 = scmp.eq.s32.totalorder %s17, 0
    %p122 = por %p120, %p121
    %s124 = sadd.s32 %s123, 1
    %p127 = scmp.eq.s32.totalorder %s11, 3
    %p128 = scmp.ne.s32.totalorder %s123, %s125
    %p129 = scmp.eq.s32.totalorder %s11, 0
    %p130 = por %p128, %p129
    %p131 = scmp.ne.s32.totalorder %s123, %s125
    %p132 = scmp.eq.s32.totalorder %s16, 3
    %p133 = por %p131, %p132
    %p134 = scmp.ne.s32.totalorder %s125, %s126
    %p135 = scmp.eq.s32.totalorder %s16, 0
    %p136 = por %p134, %p135
    %p137 = scmp.ne.s32.totalorder %s125, %s126
    %p138 = scmp.eq.s32.totalorder %s17, 3
    %p139 = por %p137, %p138
    %p141 = scmp.ne.s32.totalorder %s126, %s140
    %p142 = scmp.eq.s32.totalorder %s17, 0
    %p143 = por %p141, %p142
    %s144 = ssub.s32 %s11, %s18
    %p145 = scmp.eq.s32.totalorder %s144, 0
    %s147 = sadd.s32 %s146, 1
    %s148 = scalar_select %p145, %s146, %s147
    %p151 = pneg %p145
    %p152 = scmp.eq.s32.totalorder %s11, 3
    %p153 = por %p151, %p152
    %p154 = scmp.ne.s32.totalorder %s146, %s149
    %p155 = scmp.eq.s32.totalorder %s11, 0
    %p156 = por %p154, %p155
    %p157 = scmp.ne.s32.totalorder %s146, %s149
    %p158 = scmp.eq.s32.totalorder %s16, 3
    %p159 = por %p157, %p158
    %p160 = scmp.ne.s32.totalorder %s149, %s150
    %p161 = scmp.eq.s32.totalorder %s16, 0
    %p162 = por %p160, %p161
    %p163 = scmp.ne.s32.totalorder %s149, %s150
    %p164 = scmp.eq.s32.totalorder %s17, 3
    %p165 = por %p163, %p164
    %p167 = scmp.ne.s32.totalorder %s150, %s166
    %p168 = scmp.eq.s32.totalorder %s17, 0
    %p169 = por %p167, %p168
    %p170 = scmp.le.s32.totalorder 1, %s11
    %p171 = scmp.lt.s32.totalorder %s11, 5
    %p172 = pnand %p170, %p171
    %p173 = pneg %p172
    // Predicated region
    $region9: #{_lambda_.4} parent=5 // pred_check
      _
    $region10: #{_lambda_.4} parent=5 // pred_check_branch
      %175 = sbr.rel (%p172) target = $region12
    $region11: #{_lambda_.4} parent=5 // pred_region
      %s176 = ssub.s32 %s11, 1
      // Predicated region
      $region13: #{_lambda_.4} parent=11 // pred_check
        %p177 = pneg %p136
      $region14: #{_lambda_.4} parent=11 // pred_check_branch
        %179 = sbr.rel (%p177) target = $region16
      $region15: #{_lambda_.4} parent=11 // pred_region
        _
      $region16: #{_lambda_.4} parent=11 // pred_fallthru
        _
    $region12: #{_lambda_.4} parent=5 // pred_fallthru
      _
    %p180 = scmp.lt.s32.totalorder %s11, 4
    // Predicated region
    $region17: #{_lambda_.4} parent=5 // pred_check
      %p181 = pneg %p180
    $region18: #{_lambda_.4} parent=5 // pred_check_branch
      %183 = sbr.rel (%p181) target = $region20
    $region19: #{_lambda_.4} parent=5 // pred_region
      // Predicated region
      $region21: #{_lambda_.4} parent=19 // pred_check
        %p184 = pneg %p31
      $region22: #{_lambda_.4} parent=19 // pred_check_branch
        %186 = sbr.rel (%p184) target = $region24
      $region23: #{_lambda_.4} parent=19 // pred_region
        %s187 = smul.u32 2, %s11
        %p188 = scmp.lt.s32.totalorder %s187, 7
        %s189 = scalar_select %p188, %s187, 7
        %s190 = smul.addr %s189, 8
        %s191 = smul.addr %s190, 4
        %s192 = scalar_lea.vmem %s0, %s191
        %s193 = smul.u32 2, %s11
      $region24: #{_lambda_.4} parent=19 // pred_fallthru
        _
      // Predicated region
      $region25: #{_lambda_.4} parent=19 // pred_check
        %p194 = pneg %p57
      $region26: #{_lambda_.4} parent=19 // pred_check_branch
        %196 = sbr.rel (%p194) target = $region28
      $region27: #{_lambda_.4} parent=19 // pred_region
        %s197 = smul.u32 2, %s11
        %p198 = scmp.lt.s32.totalorder %s197, 7
        %s199 = scalar_select %p198, %s197, 7
        %s200 = smul.addr %s199, 18
        %s201 = smul.addr %s200, 4
        %s202 = scalar_lea.vmem %s1, %s201
        %s203 = smul.u32 2, %s11
      $region28: #{_lambda_.4} parent=19 // pred_fallthru
        _
      // Predicated region
      $region29: #{_lambda_.4} parent=19 // pred_check
        %p204 = pneg %p83
      $region30: #{_lambda_.4} parent=19 // pred_check_branch
        %206 = sbr.rel (%p204) target = $region32
      $region31: #{_lambda_.4} parent=19 // pred_region
        %s207 = smul.u32 2, %s11
        %p208 = scmp.lt.s32.totalorder %s207, 7
        %s209 = scalar_select %p208, %s207, 7
        %s210 = smul.addr %s209, 18
        %s211 = smul.addr %s210, 4
        %s212 = scalar_lea.vmem %s2, %s211
        %s213 = smul.u32 2, %s11
      $region32: #{_lambda_.4} parent=19 // pred_fallthru
        _
      // Predicated region
      $region33: #{_lambda_.4} parent=19 // pred_check
        %p214 = pneg %p109
      $region34: #{_lambda_.4} parent=19 // pred_check_branch
        %216 = sbr.rel (%p214) target = $region36
      $region35: #{_lambda_.4} parent=19 // pred_region
        %s217 = smul.u32 2, %s11
        %p218 = scmp.lt.s32.totalorder %s217, 7
        %s219 = scalar_select %p218, %s217, 7
        %s220 = smul.addr %s219, 16
        %s221 = smul.addr %s220, 8
        %s222 = scalar_lea.vmem %s3, %s221
        %s223 = smul.u32 2, %s11
      $region36: #{_lambda_.4} parent=19 // pred_fallthru
        _
    $region20: #{_lambda_.4} parent=5 // pred_fallthru
      _
    %p224 = scmp.le.s32.totalorder 1, %s11
    %p225 = scmp.lt.s32.totalorder %s11, 5
    %p226 = pnand %p224, %p225
    %p227 = pneg %p226
    // Predicated region
    $region37: #{_lambda_.4} parent=5 // pred_check
      _
    $region38: #{_lambda_.4} parent=5 // pred_check_branch
      %229 = sbr.rel (%p226) target = $region40
    $region39: #{_lambda_.4} parent=5 // pred_region
      %s230 = ssub.s32 %s11, 1
      %s231 = smul.u32 2, %s16
      %p232 = scmp.lt.s32.totalorder %s231, 7
      %s233 = scalar_select %p232, %s231, 7
      %s234 = smul.addr %s233, 8
      %s235 = smul.addr %s234, 4
      %s236 = scalar_lea.vmem %s0, %s235
      %p237 = pneg %p37
      %p238 = pneg %p34
      %s239 = smul.u32 2, %s16
      %p240 = scmp.lt.s32.totalorder %s239, 7
      %s241 = scalar_select %p240, %s239, 7
      %s242 = smul.addr %s241, 18
      %s243 = smul.addr %s242, 4
      %s244 = scalar_lea.vmem %s1, %s243
      %p245 = pneg %p63
      %p246 = pneg %p60
      %s247 = smul.u32 2, %s16
      %p248 = scmp.lt.s32.totalorder %s247, 7
      %s249 = scalar_select %p248, %s247, 7
      %s250 = smul.addr %s249, 18
      %s251 = smul.addr %s250, 4
      %s252 = scalar_lea.vmem %s2, %s251
      %p253 = pneg %p89
      %p254 = pneg %p86
      %s255 = smul.u32 2, %s16
      %p256 = scmp.lt.s32.totalorder %s255, 7
      %s257 = scalar_select %p256, %s255, 7
      %s258 = smul.addr %s257, 16
      %s259 = smul.addr %s258, 8
      %s260 = scalar_lea.vmem %s3, %s259
      %p261 = pneg %p115
      %p262 = pneg %p112
      %p263 = pneg %p136
      %p264 = pneg %p133
      %p265 = pneg %p162
      %p266 = pneg %p159
      %s267 = smul.u32 2, %s16
      %p268 = scmp.lt.s32.totalorder %s267, 7
      %s269 = scalar_select %p268, %s267, 7
      %s270 = smul.addr %s269, 8
      %s271 = smul.addr %s270, 4
      %s272 = scalar_lea.vmem %s5, %s271
      %s273 = smul.u32 2, %s16
      %p274 = scmp.lt.s32.totalorder %s273, 7
      %s275 = scalar_select %p274, %s273, 7
      %s276 = smul.addr %s275, 8
      %s277 = smul.addr %s276, 4
      %s278 = scalar_lea.vmem %s0, %s277
      %s279 = smul.u32 2, %s16
      %s280 = smul.u32 2, %s16
      %p281 = scmp.lt.s32.totalorder %s280, 7
      %s282 = scalar_select %p281, %s280, 7
      %s283 = smul.addr %s282, 18
      %s284 = smul.addr %s283, 4
      %s285 = scalar_lea.vmem %s1, %s284
      %s286 = smul.u32 2, %s16
      %s287 = smul.u32 2, %s16
      %p288 = scmp.lt.s32.totalorder %s287, 7
      %s289 = scalar_select %p288, %s287, 7
      %s290 = smul.addr %s289, 18
      %s291 = smul.addr %s290, 4
      %s292 = scalar_lea.vmem %s2, %s291
      %s293 = smul.u32 2, %s16
      %s294 = smul.u32 2, %s16
      %p295 = scmp.lt.s32.totalorder %s294, 7
      %s296 = scalar_select %p295, %s294, 7
      %s297 = smul.addr %s296, 16
      %s298 = smul.addr %s297, 8
      %s299 = scalar_lea.vmem %s3, %s298
      %s300 = smul.u32 2, %s16
      %s301 = smul.u32 2, %s16
      %p302 = scmp.lt.s32.totalorder %s301, 7
      %s303 = scalar_select %p302, %s301, 7
      %s304 = smul.addr %s303, 8
      %s305 = smul.addr %s304, 4
      %s306 = scalar_lea.vmem %s5, %s305
      %s307 = smul.u32 2, %s16
      %v309 = vld [vmem:[%s278] sm:$0xf]
      %v310 = vld [vmem:[%s278 + $0x4] sm:$0xf]
      %v311 = vld [vmem:[%s278 + $0x8] sm:$0xf]
      %v312 = vld [vmem:[%s278 + $0xc] sm:$0xf]
      %v313 = vld [vmem:[%s278 + $0x10] sm:$0xf]
      %v314 = vld [vmem:[%s278 + $0x14] sm:$0xf]
      %v315 = vld [vmem:[%s278 + $0x18] sm:$0xf]
      %v316 = vld [vmem:[%s278 + $0x1c] sm:$0xf]
      %v317 = vld [vmem:[%s278 + $0x20] sm:$0xf]
      %v318 = vld [vmem:[%s278 + $0x24] sm:$0xf]
      %v319 = vld [vmem:[%s278 + $0x28] sm:$0xf]
      %v320 = vld [vmem:[%s278 + $0x2c] sm:$0xf]
      %v321 = vld [vmem:[%s278 + $0x30] sm:$0xf]
      %v322 = vld [vmem:[%s278 + $0x34] sm:$0xf]
      %v323 = vld [vmem:[%s278 + $0x38] sm:$0xf]
      %v324 = vld [vmem:[%s278 + $0x3c] sm:$0xf]
      %v325 = vld [vmem:[%s285] sm:$0xf]
      %v326 = vld [vmem:[%s285 + $0x4] sm:$0xf]
      %v327 = vld [vmem:[%s285 + $0x8] sm:$0xf]
      %v328 = vld [vmem:[%s285 + $0xc] sm:$0xf]
      %v329 = vld [vmem:[%s285 + $0x10] sm:$0xf]
      %v330 = vld [vmem:[%s285 + $0x14] sm:$0xf]
      %v331 = vld [vmem:[%s285 + $0x18] sm:$0xf]
      %v332 = vld [vmem:[%s285 + $0x1c] sm:$0xf]
      %v333 = vld [vmem:[%s285 + $0x20] sm:$0xf]
      %v334 = vld [vmem:[%s285 + $0x24] sm:$0xf]
      %v335 = vld [vmem:[%s285 + $0x28] sm:$0xf]
      %v336 = vld [vmem:[%s285 + $0x2c] sm:$0xf]
      %v337 = vld [vmem:[%s285 + $0x30] sm:$0xf]
      %v338 = vld [vmem:[%s285 + $0x34] sm:$0xf]
      %v339 = vld [vmem:[%s285 + $0x38] sm:$0xf]
      %v340 = vld [vmem:[%s285 + $0x3c] sm:$0xf]
      %v341 = vld [vmem:[%s285 + $0x40] sm:$0xf]
      %v342 = vld [vmem:[%s285 + $0x44] sm:$0xf]
      %v343 = vld [vmem:[%s285 + $0x48] sm:$0xf]
      %v344 = vld [vmem:[%s285 + $0x4c] sm:$0xf]
      %v345 = vld [vmem:[%s285 + $0x50] sm:$0xf]
      %v346 = vld [vmem:[%s285 + $0x54] sm:$0xf]
      %v347 = vld [vmem:[%s285 + $0x58] sm:$0xf]
      %v348 = vld [vmem:[%s285 + $0x5c] sm:$0xf]
      %v349 = vld [vmem:[%s285 + $0x60] sm:$0xf]
      %v350 = vld [vmem:[%s285 + $0x64] sm:$0xf]
      %v351 = vld [vmem:[%s285 + $0x68] sm:$0xf]
      %v352 = vld [vmem:[%s285 + $0x6c] sm:$0xf]
      %v353 = vld [vmem:[%s285 + $0x70] sm:$0xf]
      %v354 = vld [vmem:[%s285 + $0x74] sm:$0xf]
      %v355 = vld [vmem:[%s285 + $0x78] sm:$0xf]
      %v356 = vld [vmem:[%s285 + $0x7c] sm:$0xf]
      %v357 = vld [vmem:[%s285 + $0x80] sm:$0xf]
      %v358 = vld [vmem:[%s285 + $0x84] sm:$0xf]
      %v359 = vld [vmem:[%s285 + $0x88] sm:$0xf]
      %v360 = vld [vmem:[%s285 + $0x8c] sm:$0xf]
      %v361 = vld [vmem:[%s292] sm:$0xf]
      %v362 = vld [vmem:[%s292 + $0x4] sm:$0xf]
      %v363 = vld [vmem:[%s292 + $0x8] sm:$0xf]
      %v364 = vld [vmem:[%s292 + $0xc] sm:$0xf]
      %v365 = vld [vmem:[%s292 + $0x10] sm:$0xf]
      %v366 = vld [vmem:[%s292 + $0x14] sm:$0xf]
      %v367 = vld [vmem:[%s292 + $0x18] sm:$0xf]
      %v368 = vld [vmem:[%s292 + $0x1c] sm:$0xf]
      %v369 = vld [vmem:[%s292 + $0x20] sm:$0xf]
      %v370 = vld [vmem:[%s292 + $0x24] sm:$0xf]
      %v371 = vld [vmem:[%s292 + $0x28] sm:$0xf]
      %v372 = vld [vmem:[%s292 + $0x2c] sm:$0xf]
      %v373 = vld [vmem:[%s292 + $0x30] sm:$0xf]
      %v374 = vld [vmem:[%s292 + $0x34] sm:$0xf]
      %v375 = vld [vmem:[%s292 + $0x38] sm:$0xf]
      %v376 = vld [vmem:[%s292 + $0x3c] sm:$0xf]
      %v377 = vld [vmem:[%s292 + $0x40] sm:$0xf]
      %v378 = vld [vmem:[%s292 + $0x44] sm:$0xf]
      %v379 = vld [vmem:[%s292 + $0x48] sm:$0xf]
      %v380 = vld [vmem:[%s292 + $0x4c] sm:$0xf]
      %v381 = vld [vmem:[%s292 + $0x50] sm:$0xf]
      %v382 = vld [vmem:[%s292 + $0x54] sm:$0xf]
      %v383 = vld [vmem:[%s292 + $0x58] sm:$0xf]
      %v384 = vld [vmem:[%s292 + $0x5c] sm:$0xf]
      %v385 = vld [vmem:[%s292 + $0x60] sm:$0xf]
      %v386 = vld [vmem:[%s292 + $0x64] sm:$0xf]
      %v387 = vld [vmem:[%s292 + $0x68] sm:$0xf]
      %v388 = vld [vmem:[%s292 + $0x6c] sm:$0xf]
      %v389 = vld [vmem:[%s292 + $0x70] sm:$0xf]
      %v390 = vld [vmem:[%s292 + $0x74] sm:$0xf]
      %v391 = vld [vmem:[%s292 + $0x78] sm:$0xf]
      %v392 = vld [vmem:[%s292 + $0x7c] sm:$0xf]
      %v393 = vld [vmem:[%s292 + $0x80] sm:$0xf]
      %v394 = vld [vmem:[%s292 + $0x84] sm:$0xf]
      %v395 = vld [vmem:[%s292 + $0x88] sm:$0xf]
      %v396 = vld [vmem:[%s292 + $0x8c] sm:$0xf]
      %v397 = vld [vmem:[%s299] sm:$0xff]
      %v398 = vld [vmem:[%s299 + $0x8] sm:$0xff]
      %v399 = vld [vmem:[%s299 + $0x10] sm:$0xff]
      %v400 = vld [vmem:[%s299 + $0x18] sm:$0xff]
      %v401 = vld [vmem:[%s299 + $0x20] sm:$0xff]
      %v402 = vld [vmem:[%s299 + $0x28] sm:$0xff]
      %v403 = vld [vmem:[%s299 + $0x30] sm:$0xff]
      %v404 = vld [vmem:[%s299 + $0x38] sm:$0xff]
      %v405 = vld [vmem:[%s299 + $0x40] sm:$0xff]
      %v406 = vld [vmem:[%s299 + $0x48] sm:$0xff]
      %v407 = vld [vmem:[%s299 + $0x50] sm:$0xff]
      %v408 = vld [vmem:[%s299 + $0x58] sm:$0xff]
      %v409 = vld [vmem:[%s299 + $0x60] sm:$0xff]
      %v410 = vld [vmem:[%s299 + $0x68] sm:$0xff]
      %v411 = vld [vmem:[%s299 + $0x70] sm:$0xff]
      %v412 = vld [vmem:[%s299 + $0x78] sm:$0xff]
      %v413 = vld [vmem:[%s299 + $0x80] sm:$0xff]
      %v414 = vld [vmem:[%s299 + $0x88] sm:$0xff]
      %v415 = vld [vmem:[%s299 + $0x90] sm:$0xff]
      %v416 = vld [vmem:[%s299 + $0x98] sm:$0xff]
      %v417 = vld [vmem:[%s299 + $0xa0] sm:$0xff]
      %v418 = vld [vmem:[%s299 + $0xa8] sm:$0xff]
      %v419 = vld [vmem:[%s299 + $0xb0] sm:$0xff]
      %v420 = vld [vmem:[%s299 + $0xb8] sm:$0xff]
      %v421 = vld [vmem:[%s299 + $0xc0] sm:$0xff]
      %v422 = vld [vmem:[%s299 + $0xc8] sm:$0xff]
      %v423 = vld [vmem:[%s299 + $0xd0] sm:$0xff]
      %v424 = vld [vmem:[%s299 + $0xd8] sm:$0xff]
      %v425 = vld [vmem:[%s299 + $0xe0] sm:$0xff]
      %v426 = vld [vmem:[%s299 + $0xe8] sm:$0xff]
      %v427 = vld [vmem:[%s299 + $0xf0] sm:$0xff]
      %v428 = vld [vmem:[%s299 + $0xf8] sm:$0xff]
      %v429 = vld [vmem:[%s4] sm:$0xff]
      %v430 = vld [vmem:[%s4 + $0x8] sm:$0xff]
      %v431 = vld [vmem:[%s4 + $0x10] sm:$0xff]
      %v432 = vld [vmem:[%s4 + $0x18] sm:$0xff]
      %v433 = vld [vmem:[%s4 + $0x20] sm:$0xff]
      %v434 = vld [vmem:[%s4 + $0x28] sm:$0xff]
      %vm435 = vcmask 195584
      %v437 = vsel %vm435, %v397, 0
      %v440 = vsel %vm435, %v398, 0
      %v443 = vsel %vm435, %v399, 0
      %v446 = vsel %vm435, %v400, 0
      %v449 = vsel %vm435, %v401, 0
      %v452 = vsel %vm435, %v402, 0
      %v455 = vsel %vm435, %v403, 0
      %v458 = vsel %vm435, %v404, 0
      %v461 = vsel %vm435, %v413, 0
      %v464 = vsel %vm435, %v414, 0
      %v467 = vsel %vm435, %v415, 0
      %v470 = vsel %vm435, %v416, 0
      %v473 = vsel %vm435, %v417, 0
      %v476 = vsel %vm435, %v418, 0
      %v479 = vsel %vm435, %v419, 0
      %v482 = vsel %vm435, %v420, 0
      %484 = vmatprep.subr.mxu0 %v430
      %485 = vmatpush1.msra.mxu0 %v429
      %486 = vmatprep.subr.mxu0 %v432
      %487 = vmatpush1.msra.mxu0 %v431
      %488 = vmatprep.subr.mxu0 %v434
      %489 = vmatpush1.msra.mxu0 %v433
      %490 = vmatprep.subr.mxu0 0.0
      %491 = vmatpush1.msra.mxu0 0.0
      %492 = vmatprep.subr.mxu0 0.0
      %493 = vmatpush1.msra.mxu0 0.0
      %494 = vmatprep.subr.mxu0 0.0
      %495 = vmatpush1.msra.mxu0 0.0
      %496 = vmatprep.subr.mxu0 0.0
      %497 = vmatpush1.msra.mxu0 0.0
      %498 = vmatprep.subr.mxu0 0.0
      %499 = vmatpush1.msra.mxu0 0.0
      %500 = vmatprep.subr.mxu0 0.0
      %501 = vmatpush1.msra.mxu0 0.0
      %502 = vmatprep.subr.mxu0 0.0
      %503 = vmatpush1.msra.mxu0 0.0
      %504 = vmatprep.subr.mxu0 0.0
      %505 = vmatpush1.msra.mxu0 0.0
      %506 = vmatprep.subr.mxu0 0.0
      %507 = vmatpush1.msra.mxu0 0.0
      %508 = vmatprep.subr.mxu0 0.0
      %509 = vmatpush1.msra.mxu0 0.0
      %510 = vmatprep.subr.mxu0 0.0
      %511 = vmatpush1.msra.mxu0 0.0
      %512 = vmatprep.subr.mxu0 0.0
      %513 = vmatpush1.msra.mxu0 0.0
      %514 = vmatprep.subr.mxu0 0.0
      %515 = vmatpush1.msra.mxu0 0.0
      %516 = vmatprep.subr.mxu0 0.0
      %517 = vmatpush1.msra.mxu0 0.0
      %518 = vmatprep.subr.mxu0 0.0
      %519 = vmatpush1.msra.mxu0 0.0
      %520 = vmatprep.subr.mxu0 0.0
      %521 = vmatpush1.msra.mxu0 0.0
      %522 = vmatprep.subr.mxu0 0.0
      %523 = vmatpush1.msra.mxu0 0.0
      %524 = vmatprep.subr.mxu0 0.0
      %525 = vmatpush1.msra.mxu0 0.0
      %526 = vmatprep.subr.mxu0 0.0
      %527 = vmatpush1.msra.mxu0 0.0
      %528 = vmatprep.subr.mxu0 0.0
      %529 = vmatpush1.msra.mxu0 0.0
      %530 = vmatprep.subr.mxu0 0.0
      %531 = vmatpush1.msra.mxu0 0.0
      %532 = vmatprep.subr.mxu0 0.0
      %533 = vmatpush1.msra.mxu0 0.0
      %534 = vmatprep.subr.mxu0 0.0
      %535 = vmatpush1.msra.mxu0 0.0
      %536 = vmatprep.subr.mxu0 0.0
      %537 = vmatpush1.msra.mxu0 0.0
      %538 = vmatprep.subr.mxu0 0.0
      %539 = vmatpush1.msra.mxu0 0.0
      %540 = vmatprep.subr.mxu0 0.0
      %541 = vmatpush1.msra.mxu0 0.0
      %542 = vmatprep.subr.mxu0 0.0
      %543 = vmatpush1.msra.mxu0 0.0
      %544 = vmatprep.subr.mxu0 0.0
      %545 = vmatpush1.msra.mxu0 0.0
      %546 = vmatprep.subr.mxu0 0.0
      %547 = vmatpush1.msra.mxu0 0.0
      %548 = vmatprep.mubr.f32.mxu0 0.0
      %549 = vmatmul.mubr.f32.gmra.mrb[0].mxu0 %v437
      %v550 = vpop.f32.mrb[0].mxu0
      %v551 = vadd.f32 0.0, %v550
      %v552 = vpop.f32.mrb[0].mxu0
      %v553 = vadd.f32 0.0, %v552
      %554 = vmatprep.mubr.f32.mxu0 0.0
      %555 = vmatmul.mubr.f32.gmra.mrb[0].mxu0 %v440
      %v556 = vpop.f32.mrb[0].mxu0
      %v557 = vadd.f32 0.0, %v556
      %v558 = vpop.f32.mrb[0].mxu0
      %v559 = vadd.f32 0.0, %v558
      %560 = vmatprep.mubr.f32.mxu0 0.0
      %561 = vmatmul.mubr.f32.gmra.mrb[0].mxu0 %v443
      %v562 = vpop.f32.mrb[0].mxu0
      %v563 = vadd.f32 0.0, %v562
      %v564 = vpop.f32.mrb[0].mxu0
      %v565 = vadd.f32 0.0, %v564
      %566 = vmatprep.mubr.f32.mxu0 0.0
      %567 = vmatmul.mubr.f32.gmra.mrb[0].mxu0 %v446
      %v568 = vpop.f32.mrb[0].mxu0
      %v569 = vadd.f32 0.0, %v568
      %v570 = vpop.f32.mrb[0].mxu0
      %v571 = vadd.f32 0.0, %v570
      %572 = vmatprep.mubr.f32.mxu0 0.0
      %573 = vmatmul.mubr.f32.gmra.mrb[0].mxu0 %v449
      %v574 = vpop.f32.mrb[0].mxu0
      %v575 = vadd.f32 0.0, %v574
      %v576 = vpop.f32.mrb[0].mxu0
      %v577 = vadd.f32 0.0, %v576
      %578 = vmatprep.mubr.f32.mxu0 0.0
      %579 = vmatmul.mubr.f32.gmra.mrb[0].mxu0 %v452
      %v580 = vpop.f32.mrb[0].mxu0
      %v581 = vadd.f32 0.0, %v580
      %v582 = vpop.f32.mrb[0].mxu0
      %v583 = vadd.f32 0.0, %v582
      %584 = vmatprep.mubr.f32.mxu0 0.0
      %585 = vmatmul.mubr.f32.gmra.mrb[0].mxu0 %v455
      %v586 = vpop.f32.mrb[0].mxu0
      %v587 = vadd.f32 0.0, %v586
      %v588 = vpop.f32.mrb[0].mxu0
      %v589 = vadd.f32 0.0, %v588
      %590 = vmatprep.mubr.f32.mxu0 0.0
      %591 = vmatmul.mubr.f32.gmra.mrb[0].mxu0 %v458
      %v592 = vpop.f32.mrb[0].mxu0
      %v593 = vadd.f32 0.0, %v592
      %v594 = vpop.f32.mrb[0].mxu0
      %v595 = vadd.f32 0.0, %v594
      %596 = vmatprep.mubr.f32.mxu0 0.0
      %597 = vmatmul.mubr.f32.gmra.mrb[0].mxu0 %v461
      %v598 = vpop.f32.mrb[0].mxu0
      %v599 = vadd.f32 0.0, %v598
      %v600 = vpop.f32.mrb[0].mxu0
      %v601 = vadd.f32 0.0, %v600
      %602 = vmatprep.mubr.f32.mxu0 0.0
      %603 = vmatmul.mubr.f32.gmra.mrb[0].mxu0 %v464
      %v604 = vpop.f32.mrb[0].mxu0
      %v605 = vadd.f32 0.0, %v604
      %v606 = vpop.f32.mrb[0].mxu0
      %v607 = vadd.f32 0.0, %v606
      %608 = vmatprep.mubr.f32.mxu0 0.0
      %609 = vmatmul.mubr.f32.gmra.mrb[0].mxu0 %v467
      %v610 = vpop.f32.mrb[0].mxu0
      %v611 = vadd.f32 0.0, %v610
      %v612 = vpop.f32.mrb[0].mxu0
      %v613 = vadd.f32 0.0, %v612
      %614 = vmatprep.mubr.f32.mxu0 0.0
      %615 = vmatmul.mubr.f32.gmra.mrb[0].mxu0 %v470
      %v616 = vpop.f32.mrb[0].mxu0
      %v617 = vadd.f32 0.0, %v616
      %v618 = vpop.f32.mrb[0].mxu0
      %v619 = vadd.f32 0.0, %v618
      %620 = vmatprep.mubr.f32.mxu0 0.0
      %621 = vmatmul.mubr.f32.gmra.mrb[0].mxu0 %v473
      %v622 = vpop.f32.mrb[0].mxu0
      %v623 = vadd.f32 0.0, %v622
      %v624 = vpop.f32.mrb[0].mxu0
      %v625 = vadd.f32 0.0, %v624
      %626 = vmatprep.mubr.f32.mxu0 0.0
      %627 = vmatmul.mubr.f32.gmra.mrb[0].mxu0 %v476
      %v628 = vpop.f32.mrb[0].mxu0
      %v629 = vadd.f32 0.0, %v628
      %v630 = vpop.f32.mrb[0].mxu0
      %v631 = vadd.f32 0.0, %v630
      %632 = vmatprep.mubr.f32.mxu0 0.0
      %633 = vmatmul.mubr.f32.gmra.mrb[0].mxu0 %v479
      %v634 = vpop.f32.mrb[0].mxu0
      %v635 = vadd.f32 0.0, %v634
      %v636 = vpop.f32.mrb[0].mxu0
      %v637 = vadd.f32 0.0, %v636
      %638 = vmatprep.mubr.f32.mxu0 0.0
      %639 = vmatmul.mubr.f32.gmra.mrb[0].mxu0 %v482
      %v640 = vpop.f32.mrb[0].mxu0
      %v641 = vadd.f32 0.0, %v640
      %v642 = vpop.f32.mrb[0].mxu0
      %v643 = vadd.f32 0.0, %v642
      %644 = vdwg.mxu0
      %v653 = vunpack.c.l.b16 %v309
      %v654 = vunpack.c.l.b16 %v310
      %v655 = vunpack.c.l.b16 %v311
      %v656 = vunpack.c.l.b16 %v312
      %v657 = vunpack.c.l.b16 %v313
      %v658 = vunpack.c.l.b16 %v314
      %v659 = vunpack.c.l.b16 %v315
      %v660 = vunpack.c.l.b16 %v316
      %v661 = vpack.c.b16 %v654, %v653
      %v662 = vpack.c.b16 %v656, %v655
      %v663 = vpack.c.b16 %v658, %v657
      %v664 = vpack.c.b16 %v660, %v659
      %v683 = vunpack.c.l.b16 %v325
      %v684 = vunpack.c.l.b16 %v326
      %v685 = vunpack.c.l.b16 %v327
      %v686 = vunpack.c.l.b16 %v328
      %v687 = vunpack.c.l.b16 %v329
      %v688 = vunpack.c.l.b16 %v330
      %v689 = vunpack.c.l.b16 %v331
      %v690 = vunpack.c.l.b16 %v332
      %v691 = vunpack.c.l.b16 %v333
      %v692 = vunpack.c.l.b16 %v334
      %v693 = vunpack.c.l.b16 %v335
      %v694 = vunpack.c.l.b16 %v336
      %v695 = vunpack.c.l.b16 %v337
      %v696 = vunpack.c.l.b16 %v338
      %v697 = vunpack.c.l.b16 %v339
      %v698 = vunpack.c.l.b16 %v340
      %v699 = vunpack.c.l.b16 %v341
      %v700 = vunpack.c.l.b16 %v342
      %v701 = vpack.c.b16 %v684, %v683
      %v702 = vpack.c.b16 %v686, %v685
      %v703 = vpack.c.b16 %v688, %v687
      %v704 = vpack.c.b16 %v690, %v689
      %v705 = vpack.c.b16 %v692, %v691
      %v706 = vpack.c.b16 %v694, %v693
      %v707 = vpack.c.b16 %v696, %v695
      %v708 = vpack.c.b16 %v698, %v697
      %v709 = vpack.c.b16 %v700, %v699
      %vm710 = vcmask 130048
      %v712 = vsel %vm710, %v661, 0
      %v715 = vsel %vm710, %v662, 0
      %v718 = vsel %vm710, %v663, 0
      %v721 = vsel %vm710, %v664, 0
      %v724 = vsel %vm710, %v701, 0
      %v727 = vsel %vm710, %v702, 0
      %v730 = vsel %vm710, %v703, 0
      %v733 = vsel %vm710, %v704, 0
      %v736 = vsel %vm710, %v705, 0
      %v739 = vsel %vm710, %v706, 0
      %v742 = vsel %vm710, %v707, 0
      %v745 = vsel %vm710, %v708, 0
      %v748 = vsel %vm710, %v709, 0
      %750 = vmatprep.subr.bf16.mxu0 0
      %751 = vmatpush1.bf16.xpose.msra.mxu0 %v724
      %752 = vmatprep.subr.bf16.mxu0 0
      %753 = vmatpush1.bf16.xpose.msra.mxu0 %v727
      %754 = vmatprep.subr.bf16.mxu0 0
      %755 = vmatpush1.bf16.xpose.msra.mxu0 %v730
      %756 = vmatprep.subr.bf16.mxu0 0
      %757 = vmatpush1.bf16.xpose.msra.mxu0 %v733
      %758 = vmatprep.subr.bf16.mxu0 0
      %759 = vmatpush1.bf16.xpose.msra.mxu0 %v736
      %760 = vmatprep.subr.bf16.mxu0 0
      %761 = vmatpush1.bf16.xpose.msra.mxu0 %v739
      %762 = vmatprep.subr.bf16.mxu0 0
      %763 = vmatpush1.bf16.xpose.msra.mxu0 %v742
      %764 = vmatprep.subr.bf16.mxu0 0
      %765 = vmatpush1.bf16.xpose.msra.mxu0 %v745
      %766 = vmatprep.subr.bf16.mxu0 0
      %767 = vmatpush1.bf16.xpose.msra.mxu0 %v748
      %768 = vmatprep.subr.bf16.mxu0 0
      %769 = vmatpush1.bf16.xpose.msra.mxu0 0
      %770 = vmatprep.subr.bf16.mxu0 0
      %771 = vmatpush1.bf16.xpose.msra.mxu0 0
      %772 = vmatprep.subr.bf16.mxu0 0
      %773 = vmatpush1.bf16.xpose.msra.mxu0 0
      %774 = vmatprep.subr.bf16.mxu0 0
      %775 = vmatpush1.bf16.xpose.msra.mxu0 0
      %776 = vmatprep.subr.bf16.mxu0 0
      %777 = vmatpush1.bf16.xpose.msra.mxu0 0
      %778 = vmatprep.subr.bf16.mxu0 0
      %779 = vmatpush1.bf16.xpose.msra.mxu0 0
      %780 = vmatprep.subr.bf16.mxu0 0
      %781 = vmatpush1.bf16.xpose.msra.mxu0 0
      %782 = vmatprep.mubr.bf16.mxu0 0
      %783 = vmatmul.mubr.bf16.gmra.mrb[0].mxu0 %v712
      %v784 = vpop.f32.mrb[0].mxu0
      %v785 = vadd.f32 %v551, %v784
      %v786 = vpop.f32.mrb[0].mxu0
      %v787 = vadd.f32 %v553, %v786
      %v788 = vpop.f32.mrb[0].mxu0
      %v789 = vadd.f32 %v557, %v788
      %v790 = vpop.f32.mrb[0].mxu0
      %v791 = vadd.f32 %v559, %v790
      %792 = vmatprep.mubr.bf16.mxu0 0
      %793 = vmatmul.mubr.bf16.gmra.mrb[0].mxu0 %v715
      %v794 = vpop.f32.mrb[0].mxu0
      %v795 = vadd.f32 %v563, %v794
      %v796 = vpop.f32.mrb[0].mxu0
      %v797 = vadd.f32 %v565, %v796
      %v798 = vpop.f32.mrb[0].mxu0
      %v799 = vadd.f32 %v569, %v798
      %v800 = vpop.f32.mrb[0].mxu0
      %v801 = vadd.f32 %v571, %v800
      %802 = vmatprep.mubr.bf16.mxu0 0
      %803 = vmatmul.mubr.bf16.gmra.mrb[0].mxu0 %v718
      %v804 = vpop.f32.mrb[0].mxu0
      %v805 = vadd.f32 %v575, %v804
      %v806 = vpop.f32.mrb[0].mxu0
      %v807 = vadd.f32 %v577, %v806
      %v808 = vpop.f32.mrb[0].mxu0
      %v809 = vadd.f32 %v581, %v808
      %v810 = vpop.f32.mrb[0].mxu0
      %v811 = vadd.f32 %v583, %v810
      %812 = vmatprep.mubr.bf16.mxu0 0
      %813 = vmatmul.mubr.bf16.gmra.mrb[0].mxu0 %v721
      %v814 = vpop.f32.mrb[0].mxu0
      %v815 = vadd.f32 %v587, %v814
      %v816 = vpop.f32.mrb[0].mxu0
      %v817 = vadd.f32 %v589, %v816
      %v818 = vpop.f32.mrb[0].mxu0
      %v819 = vadd.f32 %v593, %v818
      %v820 = vpop.f32.mrb[0].mxu0
      %v821 = vadd.f32 %v595, %v820
      %822 = vdwg.mxu0
      %v831 = vunpack.c.l.b16 %v317
      %v832 = vunpack.c.l.b16 %v318
      %v833 = vunpack.c.l.b16 %v319
      %v834 = vunpack.c.l.b16 %v320
      %v835 = vunpack.c.l.b16 %v321
      %v836 = vunpack.c.l.b16 %v322
      %v837 = vunpack.c.l.b16 %v323
      %v838 = vunpack.c.l.b16 %v324
      %v839 = vpack.c.b16 %v832, %v831
      %v840 = vpack.c.b16 %v834, %v833
      %v841 = vpack.c.b16 %v836, %v835
      %v842 = vpack.c.b16 %v838, %v837
      %v861 = vunpack.c.l.b16 %v343
      %v862 = vunpack.c.l.b16 %v344
      %v863 = vunpack.c.l.b16 %v345
      %v864 = vunpack.c.l.b16 %v346
      %v865 = vunpack.c.l.b16 %v347
      %v866 = vunpack.c.l.b16 %v348
      %v867 = vunpack.c.l.b16 %v349
      %v868 = vunpack.c.l.b16 %v350
      %v869 = vunpack.c.l.b16 %v351
      %v870 = vunpack.c.l.b16 %v352
      %v871 = vunpack.c.l.b16 %v353
      %v872 = vunpack.c.l.b16 %v354
      %v873 = vunpack.c.l.b16 %v355
      %v874 = vunpack.c.l.b16 %v356
      %v875 = vunpack.c.l.b16 %v357
      %v876 = vunpack.c.l.b16 %v358
      %v877 = vunpack.c.l.b16 %v359
      %v878 = vunpack.c.l.b16 %v360
      %v879 = vpack.c.b16 %v862, %v861
      %v880 = vpack.c.b16 %v864, %v863
      %v881 = vpack.c.b16 %v866, %v865
      %v882 = vpack.c.b16 %v868, %v867
      %v883 = vpack.c.b16 %v870, %v869
      %v884 = vpack.c.b16 %v872, %v871
      %v885 = vpack.c.b16 %v874, %v873
      %v886 = vpack.c.b16 %v876, %v875
      %v887 = vpack.c.b16 %v878, %v877
      %v889 = vsel %vm710, %v839, 0
      %v892 = vsel %vm710, %v840, 0
      %v895 = vsel %vm710, %v841, 0
      %v898 = vsel %vm710, %v842, 0
      %v901 = vsel %vm710, %v879, 0
      %v904 = vsel %vm710, %v880, 0
      %v907 = vsel %vm710, %v881, 0
      %v910 = vsel %vm710, %v882, 0
      %v913 = vsel %vm710, %v883, 0
      %v916 = vsel %vm710, %v884, 0
      %v919 = vsel %vm710, %v885, 0
      %v922 = vsel %vm710, %v886, 0
      %v925 = vsel %vm710, %v887, 0
      %927 = vmatprep.subr.bf16.mxu0 0
      %928 = vmatpush1.bf16.xpose.msra.mxu0 %v901
      %929 = vmatprep.subr.bf16.mxu0 0
      %930 = vmatpush1.bf16.xpose.msra.mxu0 %v904
      %931 = vmatprep.subr.bf16.mxu0 0
      %932 = vmatpush1.bf16.xpose.msra.mxu0 %v907
      %933 = vmatprep.subr.bf16.mxu0 0
      %934 = vmatpush1.bf16.xpose.msra.mxu0 %v910
      %935 = vmatprep.subr.bf16.mxu0 0
      %936 = vmatpush1.bf16.xpose.msra.mxu0 %v913
      %937 = vmatprep.subr.bf16.mxu0 0
      %938 = vmatpush1.bf16.xpose.msra.mxu0 %v916
      %939 = vmatprep.subr.bf16.mxu0 0
      %940 = vmatpush1.bf16.xpose.msra.mxu0 %v919
      %941 = vmatprep.subr.bf16.mxu0 0
      %942 = vmatpush1.bf16.xpose.msra.mxu0 %v922
      %943 = vmatprep.subr.bf16.mxu0 0
      %944 = vmatpush1.bf16.xpose.msra.mxu0 %v925
      %945 = vmatprep.subr.bf16.mxu0 0
      %946 = vmatpush1.bf16.xpose.msra.mxu0 0
      %947 = vmatprep.subr.bf16.mxu0 0
      %948 = vmatpush1.bf16.xpose.msra.mxu0 0
      %949 = vmatprep.subr.bf16.mxu0 0
      %950 = vmatpush1.bf16.xpose.msra.mxu0 0
      %951 = vmatprep.subr.bf16.mxu0 0
      %952 = vmatpush1.bf16.xpose.msra.mxu0 0
      %953 = vmatprep.subr.bf16.mxu0 0
      %954 = vmatpush1.bf16.xpose.msra.mxu0 0
      %955 = vmatprep.subr.bf16.mxu0 0
      %956 = vmatpush1.bf16.xpose.msra.mxu0 0
      %957 = vmatprep.subr.bf16.mxu0 0
      %958 = vmatpush1.bf16.xpose.msra.mxu0 0
      %959 = vmatprep.mubr.bf16.mxu0 0
      %960 = vmatmul.mubr.bf16.gmra.mrb[0].mxu0 %v889
      %v961 = vpop.f32.mrb[0].mxu0
      %v962 = vadd.f32 %v599, %v961
      %v963 = vpop.f32.mrb[0].mxu0
      %v964 = vadd.f32 %v601, %v963
      %v965 = vpop.f32.mrb[0].mxu0
      %v966 = vadd.f32 %v605, %v965
      %v967 = vpop.f32.mrb[0].mxu0
      %v968 = vadd.f32 %v607, %v967
      %969 = vmatprep.mubr.bf16.mxu0 0
      %970 = vmatmul.mubr.bf16.gmra.mrb[0].mxu0 %v892
      %v971 = vpop.f32.mrb[0].mxu0
      %v972 = vadd.f32 %v611, %v971
      %v973 = vpop.f32.mrb[0].mxu0
      %v974 = vadd.f32 %v613, %v973
      %v975 = vpop.f32.mrb[0].mxu0
      %v976 = vadd.f32 %v617, %v975
      %v977 = vpop.f32.mrb[0].mxu0
      %v978 = vadd.f32 %v619, %v977
      %979 = vmatprep.mubr.bf16.mxu0 0
      %980 = vmatmul.mubr.bf16.gmra.mrb[0].mxu0 %v895
      %v981 = vpop.f32.mrb[0].mxu0
      %v982 = vadd.f32 %v623, %v981
      %v983 = vpop.f32.mrb[0].mxu0
      %v984 = vadd.f32 %v625, %v983
      %v985 = vpop.f32.mrb[0].mxu0
      %v986 = vadd.f32 %v629, %v985
      %v987 = vpop.f32.mrb[0].mxu0
      %v988 = vadd.f32 %v631, %v987
      %989 = vmatprep.mubr.bf16.mxu0 0
      %990 = vmatmul.mubr.bf16.gmra.mrb[0].mxu0 %v898
      %v991 = vpop.f32.mrb[0].mxu0
      %v992 = vadd.f32 %v635, %v991
      %v993 = vpop.f32.mrb[0].mxu0
      %v994 = vadd.f32 %v637, %v993
      %v995 = vpop.f32.mrb[0].mxu0
      %v996 = vadd.f32 %v641, %v995
      %v997 = vpop.f32.mrb[0].mxu0
      %v998 = vadd.f32 %v643, %v997
      %999 = vdwg.mxu0
      %v1000 = vsel %vm710, %v787, -inf
      %v1001 = vmax.f32 %v785, %v1000
      %1002 = vmax.xlane.f32.xlu0 %v1001
      %v1003 = vpop.xlane.xlu0 %1002
      %v1004 = vsel %vm710, %v791, -inf
      %v1005 = vmax.f32 %v789, %v1004
      %1006 = vmax.xlane.f32.xlu0 %v1005
      %v1007 = vpop.xlane.xlu0 %1006
      %v1008 = vsel %vm710, %v797, -inf
      %v1009 = vmax.f32 %v795, %v1008
      %1010 = vmax.xlane.f32.xlu0 %v1009
      %v1011 = vpop.xlane.xlu0 %1010
      %v1012 = vsel %vm710, %v801, -inf
      %v1013 = vmax.f32 %v799, %v1012
      %1014 = vmax.xlane.f32.xlu0 %v1013
      %v1015 = vpop.xlane.xlu0 %1014
      %v1016 = vsel %vm710, %v807, -inf
      %v1017 = vmax.f32 %v805, %v1016
      %1018 = vmax.xlane.f32.xlu0 %v1017
      %v1019 = vpop.xlane.xlu0 %1018
      %v1020 = vsel %vm710, %v811, -inf
      %v1021 = vmax.f32 %v809, %v1020
      %1022 = vmax.xlane.f32.xlu0 %v1021
      %v1023 = vpop.xlane.xlu0 %1022
      %v1024 = vsel %vm710, %v817, -inf
      %v1025 = vmax.f32 %v815, %v1024
      %1026 = vmax.xlane.f32.xlu0 %v1025
      %v1027 = vpop.xlane.xlu0 %1026
      %v1028 = vsel %vm710, %v821, -inf
      %v1029 = vmax.f32 %v819, %v1028
      %1030 = vmax.xlane.f32.xlu0 %v1029
      %v1031 = vpop.xlane.xlu0 %1030
      %v1032 = vsel %vm710, %v964, -inf
      %v1033 = vmax.f32 %v962, %v1032
      %1034 = vmax.xlane.f32.xlu0 %v1033
      %v1035 = vpop.xlane.xlu0 %1034
      %v1036 = vsel %vm710, %v968, -inf
      %v1037 = vmax.f32 %v966, %v1036
      %1038 = vmax.xlane.f32.xlu0 %v1037
      %v1039 = vpop.xlane.xlu0 %1038
      %v1040 = vsel %vm710, %v974, -inf
      %v1041 = vmax.f32 %v972, %v1040
      %1042 = vmax.xlane.f32.xlu0 %v1041
      %v1043 = vpop.xlane.xlu0 %1042
      %v1044 = vsel %vm710, %v978, -inf
      %v1045 = vmax.f32 %v976, %v1044
      %1046 = vmax.xlane.f32.xlu0 %v1045
      %v1047 = vpop.xlane.xlu0 %1046
      %v1048 = vsel %vm710, %v984, -inf
      %v1049 = vmax.f32 %v982, %v1048
      %1050 = vmax.xlane.f32.xlu0 %v1049
      %v1051 = vpop.xlane.xlu0 %1050
      %v1052 = vsel %vm710, %v988, -inf
      %v1053 = vmax.f32 %v986, %v1052
      %1054 = vmax.xlane.f32.xlu0 %v1053
      %v1055 = vpop.xlane.xlu0 %1054
      %v1056 = vsel %vm710, %v994, -inf
      %v1057 = vmax.f32 %v992, %v1056
      %1058 = vmax.xlane.f32.xlu0 %v1057
      %v1059 = vpop.xlane.xlu0 %1058
      %v1060 = vsel %vm710, %v998, -inf
      %v1061 = vmax.f32 %v996, %v1060
      %1062 = vmax.xlane.f32.xlu0 %v1061
      %v1063 = vpop.xlane.xlu0 %1062
      %v1064 = vsub.f32 %v785, %v1003
      %v1065 = vsub.f32 %v787, %v1003
      %v1066 = vsub.f32 %v789, %v1007
      %v1067 = vsub.f32 %v791, %v1007
      %v1068 = vsub.f32 %v795, %v1011
      %v1069 = vsub.f32 %v797, %v1011
      %v1070 = vsub.f32 %v799, %v1015
      %v1071 = vsub.f32 %v801, %v1015
      %v1072 = vsub.f32 %v805, %v1019
      %v1073 = vsub.f32 %v807, %v1019
      %v1074 = vsub.f32 %v809, %v1023
      %v1075 = vsub.f32 %v811, %v1023
      %v1076 = vsub.f32 %v815, %v1027
      %v1077 = vsub.f32 %v817, %v1027
      %v1078 = vsub.f32 %v819, %v1031
      %v1079 = vsub.f32 %v821, %v1031
      %v1080 = vsub.f32 %v962, %v1035
      %v1081 = vsub.f32 %v964, %v1035
      %v1082 = vsub.f32 %v966, %v1039
      %v1083 = vsub.f32 %v968, %v1039
      %v1084 = vsub.f32 %v972, %v1043
      %v1085 = vsub.f32 %v974, %v1043
      %v1086 = vsub.f32 %v976, %v1047
      %v1087 = vsub.f32 %v978, %v1047
      %v1088 = vsub.f32 %v982, %v1051
      %v1089 = vsub.f32 %v984, %v1051
      %v1090 = vsub.f32 %v986, %v1055
      %v1091 = vsub.f32 %v988, %v1055
      %v1092 = vsub.f32 %v992, %v1059
      %v1093 = vsub.f32 %v994, %v1059
      %v1094 = vsub.f32 %v996, %v1063
      %v1095 = vsub.f32 %v998, %v1063
      %v1096 = vmul.f32 %v1064, 1.442695
      %v1097 = vpow.pop %v1096
      %v1098 = vmul.f32 %v1065, 1.442695
      %v1099 = vpow.pop %v1098
      %v1100 = vmul.f32 %v1066, 1.442695
      %v1101 = vpow.pop %v1100
      %v1102 = vmul.f32 %v1067, 1.442695
      %v1103 = vpow.pop %v1102
      %v1104 = vmul.f32 %v1068, 1.442695
      %v1105 = vpow.pop %v1104
      %v1106 = vmul.f32 %v1069, 1.442695
      %v1107 = vpow.pop %v1106
      %v1108 = vmul.f32 %v1070, 1.442695
      %v1109 = vpow.pop %v1108
      %v1110 = vmul.f32 %v1071, 1.442695
      %v1111 = vpow.pop %v1110
      %v1112 = vmul.f32 %v1072, 1.442695
      %v1113 = vpow.pop %v1112
      %v1114 = vmul.f32 %v1073, 1.442695
      %v1115 = vpow.pop %v1114
      %v1116 = vmul.f32 %v1074, 1.442695
      %v1117 = vpow.pop %v1116
      %v1118 = vmul.f32 %v1075, 1.442695
      %v1119 = vpow.pop %v1118
      %v1120 = vmul.f32 %v1076, 1.442695
      %v1121 = vpow.pop %v1120
      %v1122 = vmul.f32 %v1077, 1.442695
      %v1123 = vpow.pop %v1122
      %v1124 = vmul.f32 %v1078, 1.442695
      %v1125 = vpow.pop %v1124
      %v1126 = vmul.f32 %v1079, 1.442695
      %v1127 = vpow.pop %v1126
      %v1128 = vmul.f32 %v1080, 1.442695
      %v1129 = vpow.pop %v1128
      %v1130 = vmul.f32 %v1081, 1.442695
      %v1131 = vpow.pop %v1130
      %v1132 = vmul.f32 %v1082, 1.442695
      %v1133 = vpow.pop %v1132
      %v1134 = vmul.f32 %v1083, 1.442695
      %v1135 = vpow.pop %v1134
      %v1136 = vmul.f32 %v1084, 1.442695
      %v1137 = vpow.pop %v1136
      %v1138 = vmul.f32 %v1085, 1.442695
      %v1139 = vpow.pop %v1138
      %v1140 = vmul.f32 %v1086, 1.442695
      %v1141 = vpow.pop %v1140
      %v1142 = vmul.f32 %v1087, 1.442695
      %v1143 = vpow.pop %v1142
      %v1144 = vmul.f32 %v1088, 1.442695
      %v1145 = vpow.pop %v1144
      %v1146 = vmul.f32 %v1089, 1.442695
      %v1147 = vpow.pop %v1146
      %v1148 = vmul.f32 %v1090, 1.442695
      %v1149 = vpow.pop %v1148
      %v1150 = vmul.f32 %v1091, 1.442695
      %v1151 = vpow.pop %v1150
      %v1152 = vmul.f32 %v1092, 1.442695
      %v1153 = vpow.pop %v1152
      %v1154 = vmul.f32 %v1093, 1.442695
      %v1155 = vpow.pop %v1154
      %v1156 = vmul.f32 %v1094, 1.442695
      %v1157 = vpow.pop %v1156
      %v1158 = vmul.f32 %v1095, 1.442695
      %v1159 = vpow.pop %v1158
      %v1161 = vsel %vm710, %v1099, 0
      %v1164 = vsel %vm710, %v1103, 0
      %v1167 = vsel %vm710, %v1107, 0
      %v1170 = vsel %vm710, %v1111, 0
      %v1173 = vsel %vm710, %v1115, 0
      %v1176 = vsel %vm710, %v1119, 0
      %v1179 = vsel %vm710, %v1123, 0
      %v1182 = vsel %vm710, %v1127, 0
      %v1185 = vsel %vm710, %v1131, 0
      %v1188 = vsel %vm710, %v1135, 0
      %v1191 = vsel %vm710, %v1139, 0
      %v1194 = vsel %vm710, %v1143, 0
      %v1197 = vsel %vm710, %v1147, 0
      %v1200 = vsel %vm710, %v1151, 0
      %v1203 = vsel %vm710, %v1155, 0
      %v1206 = vsel %vm710, %v1159, 0
      %1208 = vmatprep.subr.mxu0 0.0
      %1209 = vmatpush1.msra.mxu0 1.0
      %1210 = vmatprep.subr.mxu0 0.0
      %1211 = vmatpush1.msra.mxu0 1.0
      %1212 = vmatprep.subr.mxu0 0.0
      %1213 = vmatpush1.msra.mxu0 1.0
      %1214 = vmatprep.subr.mxu0 0.0
      %1215 = vmatpush1.msra.mxu0 1.0
      %1216 = vmatprep.subr.mxu0 0.0
      %1217 = vmatpush1.msra.mxu0 1.0
      %1218 = vmatprep.subr.mxu0 0.0
      %1219 = vmatpush1.msra.mxu0 1.0
      %1220 = vmatprep.subr.mxu0 0.0
      %1221 = vmatpush1.msra.mxu0 1.0
      %1222 = vmatprep.subr.mxu0 0.0
      %1223 = vmatpush1.msra.mxu0 1.0
      %1224 = vmatprep.subr.mxu0 0.0
      %1225 = vmatpush1.msra.mxu0 1.0
      %1226 = vmatprep.subr.mxu0 0.0
      %1227 = vmatpush1.msra.mxu0 1.0
      %1228 = vmatprep.subr.mxu0 0.0
      %1229 = vmatpush1.msra.mxu0 1.0
      %1230 = vmatprep.subr.mxu0 0.0
      %1231 = vmatpush1.msra.mxu0 1.0
      %1232 = vmatprep.subr.mxu0 0.0
      %1233 = vmatpush1.msra.mxu0 1.0
      %1234 = vmatprep.subr.mxu0 0.0
      %1235 = vmatpush1.msra.mxu0 1.0
      %1236 = vmatprep.subr.mxu0 0.0
      %1237 = vmatpush1.msra.mxu0 1.0
      %1238 = vmatprep.subr.mxu0 0.0
      %1239 = vmatpush1.msra.mxu0 1.0
      %1240 = vmatprep.subr.mxu0 0.0
      %1241 = vmatpush1.msra.mxu0 1.0
      %1242 = vmatprep.subr.mxu0 0.0
      %1243 = vmatpush1.msra.mxu0 1.0
      %1244 = vmatprep.subr.mxu0 0.0
      %1245 = vmatpush1.msra.mxu0 0.0
      %1246 = vmatprep.subr.mxu0 0.0
      %1247 = vmatpush1.msra.mxu0 0.0
      %1248 = vmatprep.subr.mxu0 0.0
      %1249 = vmatpush1.msra.mxu0 0.0
      %1250 = vmatprep.subr.mxu0 0.0
      %1251 = vmatpush1.msra.mxu0 0.0
      %1252 = vmatprep.subr.mxu0 0.0
      %1253 = vmatpush1.msra.mxu0 0.0
      %1254 = vmatprep.subr.mxu0 0.0
      %1255 = vmatpush1.msra.mxu0 0.0
      %1256 = vmatprep.subr.mxu0 0.0
      %1257 = vmatpush1.msra.mxu0 0.0
      %1258 = vmatprep.subr.mxu0 0.0
      %1259 = vmatpush1.msra.mxu0 0.0
      %1260 = vmatprep.subr.mxu0 0.0
      %1261 = vmatpush1.msra.mxu0 0.0
      %1262 = vmatprep.subr.mxu0 0.0
      %1263 = vmatpush1.msra.mxu0 0.0
      %1264 = vmatprep.subr.mxu0 0.0
      %1265 = vmatpush1.msra.mxu0 0.0
      %1266 = vmatprep.subr.mxu0 0.0
      %1267 = vmatpush1.msra.mxu0 0.0
      %1268 = vmatprep.subr.mxu0 0.0
      %1269 = vmatpush1.msra.mxu0 0.0
      %1270 = vmatprep.subr.mxu0 0.0
      %1271 = vmatpush1.msra.mxu0 0.0
      %1272 = vmatprep.mubr.f32.mxu0 %v1161
      %1273 = vmatmul.mubr.f32.gmra.mrb[0].mxu0 %v1097
      %v1274 = vpop.f32.mrb[0].mxu0
      %v1275 = vadd.f32 0.0, %v1274
      %v1276 = vpop.f32.mrb[0].mxu0
      %1277 = vmatprep.mubr.f32.mxu0 %v1164
      %1278 = vmatmul.mubr.f32.gmra.mrb[0].mxu0 %v1101
      %v1279 = vpop.f32.mrb[0].mxu0
      %v1280 = vadd.f32 0.0, %v1279
      %v1281 = vpop.f32.mrb[0].mxu0
      %1282 = vmatprep.mubr.f32.mxu0 %v1167
      %1283 = vmatmul.mubr.f32.gmra.mrb[0].mxu0 %v1105
      %v1284 = vpop.f32.mrb[0].mxu0
      %v1285 = vadd.f32 0.0, %v1284
      %v1286 = vpop.f32.mrb[0].mxu0
      %1287 = vmatprep.mubr.f32.mxu0 %v1170
      %1288 = vmatmul.mubr.f32.gmra.mrb[0].mxu0 %v1109
      %v1289 = vpop.f32.mrb[0].mxu0
      %v1290 = vadd.f32 0.0, %v1289
      %v1291 = vpop.f32.mrb[0].mxu0
      %1292 = vmatprep.mubr.f32.mxu0 %v1173
      %1293 = vmatmul.mubr.f32.gmra.mrb[0].mxu0 %v1113
      %v1294 = vpop.f32.mrb[0].mxu0
      %v1295 = vadd.f32 0.0, %v1294
      %v1296 = vpop.f32.mrb[0].mxu0
      %1297 = vmatprep.mubr.f32.mxu0 %v1176
      %1298 = vmatmul.mubr.f32.gmra.mrb[0].mxu0 %v1117
      %v1299 = vpop.f32.mrb[0].mxu0
      %v1300 = vadd.f32 0.0, %v1299
      %v1301 = vpop.f32.mrb[0].mxu0
      %1302 = vmatprep.mubr.f32.mxu0 %v1179
      %1303 = vmatmul.mubr.f32.gmra.mrb[0].mxu0 %v1121
      %v1304 = vpop.f32.mrb[0].mxu0
      %v1305 = vadd.f32 0.0, %v1304
      %v1306 = vpop.f32.mrb[0].mxu0
      %1307 = vmatprep.mubr.f32.mxu0 %v1182
      %1308 = vmatmul.mubr.f32.gmra.mrb[0].mxu0 %v1125
      %v1309 = vpop.f32.mrb[0].mxu0
      %v1310 = vadd.f32 0.0, %v1309
      %v1311 = vpop.f32.mrb[0].mxu0
      %1312 = vmatprep.mubr.f32.mxu0 %v1185
      %1313 = vmatmul.mubr.f32.gmra.mrb[0].mxu0 %v1129
      %v1314 = vpop.f32.mrb[0].mxu0
      %v1315 = vadd.f32 0.0, %v1314
      %v1316 = vpop.f32.mrb[0].mxu0
      %1317 = vmatprep.mubr.f32.mxu0 %v1188
      %1318 = vmatmul.mubr.f32.gmra.mrb[0].mxu0 %v1133
      %v1319 = vpop.f32.mrb[0].mxu0
      %v1320 = vadd.f32 0.0, %v1319
      %v1321 = vpop.f32.mrb[0].mxu0
      %1322 = vmatprep.mubr.f32.mxu0 %v1191
      %1323 = vmatmul.mubr.f32.gmra.mrb[0].mxu0 %v1137
      %v1324 = vpop.f32.mrb[0].mxu0
      %v1325 = vadd.f32 0.0, %v1324
      %v1326 = vpop.f32.mrb[0].mxu0
      %1327 = vmatprep.mubr.f32.mxu0 %v1194
      %1328 = vmatmul.mubr.f32.gmra.mrb[0].mxu0 %v1141
      %v1329 = vpop.f32.mrb[0].mxu0
      %v1330 = vadd.f32 0.0, %v1329
      %v1331 = vpop.f32.mrb[0].mxu0
      %1332 = vmatprep.mubr.f32.mxu0 %v1197
      %1333 = vmatmul.mubr.f32.gmra.mrb[0].mxu0 %v1145
      %v1334 = vpop.f32.mrb[0].mxu0
      %v1335 = vadd.f32 0.0, %v1334
      %v1336 = vpop.f32.mrb[0].mxu0
      %1337 = vmatprep.mubr.f32.mxu0 %v1200
      %1338 = vmatmul.mubr.f32.gmra.mrb[0].mxu0 %v1149
      %v1339 = vpop.f32.mrb[0].mxu0
      %v1340 = vadd.f32 0.0, %v1339
      %v1341 = vpop.f32.mrb[0].mxu0
      %1342 = vmatprep.mubr.f32.mxu0 %v1203
      %1343 = vmatmul.mubr.f32.gmra.mrb[0].mxu0 %v1153
      %v1344 = vpop.f32.mrb[0].mxu0
      %v1345 = vadd.f32 0.0, %v1344
      %v1346 = vpop.f32.mrb[0].mxu0
      %1347 = vmatprep.mubr.f32.mxu0 %v1206
      %1348 = vmatmul.mubr.f32.gmra.mrb[0].mxu0 %v1157
      %v1349 = vpop.f32.mrb[0].mxu0
      %v1350 = vadd.f32 0.0, %v1349
      %v1351 = vpop.f32.mrb[0].mxu0
      %1352 = vdwg.mxu0
      %v1353 = vrcp.pop %v1275
      %v1354 = vrcp.pop %v1280
      %v1355 = vrcp.pop %v1285
      %v1356 = vrcp.pop %v1290
      %v1357 = vrcp.pop %v1295
      %v1358 = vrcp.pop %v1300
      %v1359 = vrcp.pop %v1305
      %v1360 = vrcp.pop %v1310
      %v1361 = vrcp.pop %v1315
      %v1362 = vrcp.pop %v1320
      %v1363 = vrcp.pop %v1325
      %v1364 = vrcp.pop %v1330
      %v1365 = vrcp.pop %v1335
      %v1366 = vrcp.pop %v1340
      %v1367 = vrcp.pop %v1345
      %v1368 = vrcp.pop %v1350
      %1370 = vset.pattern.permute.xlu0 0
      %1371 = vperm.xlu0 %1370, %v1353
      %v1372 = vpop.permute.xlu0 %1371
      %1375 = vset.pattern.permute.xlu0 0
      %1376 = vperm.xlu0 %1375, %v1354
      %v1377 = vpop.permute.xlu0 %1376
      %1380 = vset.pattern.permute.xlu0 0
      %1381 = vperm.xlu0 %1380, %v1355
      %v1382 = vpop.permute.xlu0 %1381
      %1385 = vset.pattern.permute.xlu0 0
      %1386 = vperm.xlu0 %1385, %v1356
      %v1387 = vpop.permute.xlu0 %1386
      %1390 = vset.pattern.permute.xlu0 0
      %1391 = vperm.xlu0 %1390, %v1357
      %v1392 = vpop.permute.xlu0 %1391
      %1395 = vset.pattern.permute.xlu0 0
      %1396 = vperm.xlu0 %1395, %v1358
      %v1397 = vpop.permute.xlu0 %1396
      %1400 = vset.pattern.permute.xlu0 0
      %1401 = vperm.xlu0 %1400, %v1359
      %v1402 = vpop.permute.xlu0 %1401
      %1405 = vset.pattern.permute.xlu0 0
      %1406 = vperm.xlu0 %1405, %v1360
      %v1407 = vpop.permute.xlu0 %1406
      %1410 = vset.pattern.permute.xlu0 0
      %1411 = vperm.xlu0 %1410, %v1361
      %v1412 = vpop.permute.xlu0 %1411
      %1415 = vset.pattern.permute.xlu0 0
      %1416 = vperm.xlu0 %1415, %v1362
      %v1417 = vpop.permute.xlu0 %1416
      %1420 = vset.pattern.permute.xlu0 0
      %1421 = vperm.xlu0 %1420, %v1363
      %v1422 = vpop.permute.xlu0 %1421
      %1425 = vset.pattern.permute.xlu0 0
      %1426 = vperm.xlu0 %1425, %v1364
      %v1427 = vpop.permute.xlu0 %1426
      %1430 = vset.pattern.permute.xlu0 0
      %1431 = vperm.xlu0 %1430, %v1365
      %v1432 = vpop.permute.xlu0 %1431
      %1435 = vset.pattern.permute.xlu0 0
      %1436 = vperm.xlu0 %1435, %v1366
      %v1437 = vpop.permute.xlu0 %1436
      %1440 = vset.pattern.permute.xlu0 0
      %1441 = vperm.xlu0 %1440, %v1367
      %v1442 = vpop.permute.xlu0 %1441
      %1445 = vset.pattern.permute.xlu0 0
      %1446 = vperm.xlu0 %1445, %v1368
      %v1447 = vpop.permute.xlu0 %1446
      %v1449 = vmul.f32 %v1097, %v1372
      %v1450 = vmul.f32 %v1099, %v1372
      %v1451 = vmul.f32 %v1101, %v1377
      %v1452 = vmul.f32 %v1103, %v1377
      %v1453 = vmul.f32 %v1105, %v1382
      %v1454 = vmul.f32 %v1107, %v1382
      %v1455 = vmul.f32 %v1109, %v1387
      %v1456 = vmul.f32 %v1111, %v1387
      %v1457 = vmul.f32 %v1113, %v1392
      %v1458 = vmul.f32 %v1115, %v1392
      %v1459 = vmul.f32 %v1117, %v1397
      %v1460 = vmul.f32 %v1119, %v1397
      %v1461 = vmul.f32 %v1121, %v1402
      %v1462 = vmul.f32 %v1123, %v1402
      %v1463 = vmul.f32 %v1125, %v1407
      %v1464 = vmul.f32 %v1127, %v1407
      %v1465 = vmul.f32 %v1129, %v1412
      %v1466 = vmul.f32 %v1131, %v1412
      %v1467 = vmul.f32 %v1133, %v1417
      %v1468 = vmul.f32 %v1135, %v1417
      %v1469 = vmul.f32 %v1137, %v1422
      %v1470 = vmul.f32 %v1139, %v1422
      %v1471 = vmul.f32 %v1141, %v1427
      %v1472 = vmul.f32 %v1143, %v1427
      %v1473 = vmul.f32 %v1145, %v1432
      %v1474 = vmul.f32 %v1147, %v1432
      %v1475 = vmul.f32 %v1149, %v1437
      %v1476 = vmul.f32 %v1151, %v1437
      %v1477 = vmul.f32 %v1153, %v1442
      %v1478 = vmul.f32 %v1155, %v1442
      %v1479 = vmul.f32 %v1157, %v1447
      %v1480 = vmul.f32 %v1159, %v1447
      %v1481 = vpack.c.bf16 %v1451, %v1449
      %v1482 = vpack.c.bf16 %v1452, %v1450
      %v1483 = vpack.c.bf16 %v1455, %v1453
      %v1484 = vpack.c.bf16 %v1456, %v1454
      %v1485 = vpack.c.bf16 %v1459, %v1457
      %v1486 = vpack.c.bf16 %v1460, %v1458
      %v1487 = vpack.c.bf16 %v1463, %v1461
      %v1488 = vpack.c.bf16 %v1464, %v1462
      %v1489 = vpack.c.bf16 %v1467, %v1465
      %v1490 = vpack.c.bf16 %v1468, %v1466
      %v1491 = vpack.c.bf16 %v1471, %v1469
      %v1492 = vpack.c.bf16 %v1472, %v1470
      %v1493 = vpack.c.bf16 %v1475, %v1473
      %v1494 = vpack.c.bf16 %v1476, %v1474
      %v1495 = vpack.c.bf16 %v1479, %v1477
      %v1496 = vpack.c.bf16 %v1480, %v1478
      %v1515 = vunpack.c.l.b16 %v361
      %v1516 = vunpack.c.l.b16 %v362
      %v1517 = vunpack.c.l.b16 %v363
      %v1518 = vunpack.c.l.b16 %v364
      %v1519 = vunpack.c.l.b16 %v365
      %v1520 = vunpack.c.l.b16 %v366
      %v1521 = vunpack.c.l.b16 %v367
      %v1522 = vunpack.c.l.b16 %v368
      %v1523 = vunpack.c.l.b16 %v369
      %v1524 = vunpack.c.l.b16 %v370
      %v1525 = vunpack.c.l.b16 %v371
      %v1526 = vunpack.c.l.b16 %v372
      %v1527 = vunpack.c.l.b16 %v373
      %v1528 = vunpack.c.l.b16 %v374
      %v1529 = vunpack.c.l.b16 %v375
      %v1530 = vunpack.c.l.b16 %v376
      %v1531 = vunpack.c.l.b16 %v377
      %v1532 = vunpack.c.l.b16 %v378
      %v1533 = vpack.c.b16 %v1516, %v1515
      %v1534 = vpack.c.b16 %v1518, %v1517
      %v1535 = vpack.c.b16 %v1520, %v1519
      %v1536 = vpack.c.b16 %v1522, %v1521
      %v1537 = vpack.c.b16 %v1524, %v1523
      %v1538 = vpack.c.b16 %v1526, %v1525
      %v1539 = vpack.c.b16 %v1528, %v1527
      %v1540 = vpack.c.b16 %v1530, %v1529
      %v1541 = vpack.c.b16 %v1532, %v1531
      %v1552 = vsel %vm710, %v1482, 0
      %v1555 = vsel %vm710, %v1484, 0
      %v1558 = vsel %vm710, %v1486, 0
      %v1561 = vsel %vm710, %v1488, 0
      %1563 = vmatprep.subr.bf16.mxu0 0
      %1564 = vmatpush1.bf16.msra.mxu0 %v1533
      %1565 = vmatprep.subr.bf16.mxu0 0
      %1566 = vmatpush1.bf16.msra.mxu0 %v1534
      %1567 = vmatprep.subr.bf16.mxu0 0
      %1568 = vmatpush1.bf16.msra.mxu0 %v1535
      %1569 = vmatprep.subr.bf16.mxu0 0
      %1570 = vmatpush1.bf16.msra.mxu0 %v1536
      %1571 = vmatprep.subr.bf16.mxu0 0
      %1572 = vmatpush1.bf16.msra.mxu0 %v1537
      %1573 = vmatprep.subr.bf16.mxu0 0
      %1574 = vmatpush1.bf16.msra.mxu0 %v1538
      %1575 = vmatprep.subr.bf16.mxu0 0
      %1576 = vmatpush1.bf16.msra.mxu0 %v1539
      %1577 = vmatprep.subr.bf16.mxu0 0
      %1578 = vmatpush1.bf16.msra.mxu0 %v1540
      %1579 = vmatprep.subr.bf16.mxu0 0
      %1580 = vmatpush1.bf16.msra.mxu0 %v1541
      %1581 = vmatprep.subr.bf16.mxu0 0
      %1582 = vmatpush1.bf16.msra.mxu0 0
      %1583 = vmatprep.subr.bf16.mxu0 0
      %1584 = vmatpush1.bf16.msra.mxu0 0
      %1585 = vmatprep.subr.bf16.mxu0 0
      %1586 = vmatpush1.bf16.msra.mxu0 0
      %1587 = vmatprep.subr.bf16.mxu0 0
      %1588 = vmatpush1.bf16.msra.mxu0 0
      %1589 = vmatprep.subr.bf16.mxu0 0
      %1590 = vmatpush1.bf16.msra.mxu0 0
      %1591 = vmatprep.subr.bf16.mxu0 0
      %1592 = vmatpush1.bf16.msra.mxu0 0
      %1593 = vmatprep.subr.bf16.mxu0 0
      %1594 = vmatpush1.bf16.msra.mxu0 0
      %1595 = vmatprep.mubr.bf16.mxu0 %v1552
      %1596 = vmatmul.mubr.bf16.gmra.mrb[0].mxu0 %v1481
      %v1597 = vpop.f32.mrb[0].mxu0
      %v1598 = vadd.f32 0.0, %v1597
      %v1599 = vpop.f32.mrb[0].mxu0
      %v1600 = vpop.f32.mrb[0].mxu0
      %v1601 = vadd.f32 0.0, %v1600
      %v1602 = vpop.f32.mrb[0].mxu0
      %1603 = vmatprep.mubr.bf16.mxu0 %v1555
      %1604 = vmatmul.mubr.bf16.gmra.mrb[0].mxu0 %v1483
      %v1605 = vpop.f32.mrb[0].mxu0
      %v1606 = vadd.f32 0.0, %v1605
      %v1607 = vpop.f32.mrb[0].mxu0
      %v1608 = vpop.f32.mrb[0].mxu0
      %v1609 = vadd.f32 0.0, %v1608
      %v1610 = vpop.f32.mrb[0].mxu0
      %1611 = vmatprep.mubr.bf16.mxu0 %v1558
      %1612 = vmatmul.mubr.bf16.gmra.mrb[0].mxu0 %v1485
      %v1613 = vpop.f32.mrb[0].mxu0
      %v1614 = vadd.f32 0.0, %v1613
      %v1615 = vpop.f32.mrb[0].mxu0
      %v1616 = vpop.f32.mrb[0].mxu0
      %v1617 = vadd.f32 0.0, %v1616
      %v1618 = vpop.f32.mrb[0].mxu0
      %1619 = vmatprep.mubr.bf16.mxu0 %v1561
      %1620 = vmatmul.mubr.bf16.gmra.mrb[0].mxu0 %v1487
      %v1621 = vpop.f32.mrb[0].mxu0
      %v1622 = vadd.f32 0.0, %v1621
      %v1623 = vpop.f32.mrb[0].mxu0
      %v1624 = vpop.f32.mrb[0].mxu0
      %v1625 = vadd.f32 0.0, %v1624
      %v1626 = vpop.f32.mrb[0].mxu0
      %1627 = vdwg.mxu0
      %v1646 = vunpack.c.l.b16 %v379
      %v1647 = vunpack.c.l.b16 %v380
      %v1648 = vunpack.c.l.b16 %v381
      %v1649 = vunpack.c.l.b16 %v382
      %v1650 = vunpack.c.l.b16 %v383
      %v1651 = vunpack.c.l.b16 %v384
      %v1652 = vunpack.c.l.b16 %v385
      %v1653 = vunpack.c.l.b16 %v386
      %v1654 = vunpack.c.l.b16 %v387
      %v1655 = vunpack.c.l.b16 %v388
      %v1656 = vunpack.c.l.b16 %v389
      %v1657 = vunpack.c.l.b16 %v390
      %v1658 = vunpack.c.l.b16 %v391
      %v1659 = vunpack.c.l.b16 %v392
      %v1660 = vunpack.c.l.b16 %v393
      %v1661 = vunpack.c.l.b16 %v394
      %v1662 = vunpack.c.l.b16 %v395
      %v1663 = vunpack.c.l.b16 %v396
      %v1664 = vpack.c.b16 %v1647, %v1646
      %v1665 = vpack.c.b16 %v1649, %v1648
      %v1666 = vpack.c.b16 %v1651, %v1650
      %v1667 = vpack.c.b16 %v1653, %v1652
      %v1668 = vpack.c.b16 %v1655, %v1654
      %v1669 = vpack.c.b16 %v1657, %v1656
      %v1670 = vpack.c.b16 %v1659, %v1658
      %v1671 = vpack.c.b16 %v1661, %v1660
      %v1672 = vpack.c.b16 %v1663, %v1662
      %v1683 = vsel %vm710, %v1490, 0
      %v1686 = vsel %vm710, %v1492, 0
      %v1689 = vsel %vm710, %v1494, 0
      %v1692 = vsel %vm710, %v1496, 0
      %1694 = vmatprep.subr.bf16.mxu0 0
      %1695 = vmatpush1.bf16.msra.mxu0 %v1664
      %1696 = vmatprep.subr.bf16.mxu0 0
      %1697 = vmatpush1.bf16.msra.mxu0 %v1665
      %1698 = vmatprep.subr.bf16.mxu0 0
      %1699 = vmatpush1.bf16.msra.mxu0 %v1666
      %1700 = vmatprep.subr.bf16.mxu0 0
      %1701 = vmatpush1.bf16.msra.mxu0 %v1667
      %1702 = vmatprep.subr.bf16.mxu0 0
      %1703 = vmatpush1.bf16.msra.mxu0 %v1668
      %1704 = vmatprep.subr.bf16.mxu0 0
      %1705 = vmatpush1.bf16.msra.mxu0 %v1669
      %1706 = vmatprep.subr.bf16.mxu0 0
      %1707 = vmatpush1.bf16.msra.mxu0 %v1670
      %1708 = vmatprep.subr.bf16.mxu0 0
      %1709 = vmatpush1.bf16.msra.mxu0 %v1671
      %1710 = vmatprep.subr.bf16.mxu0 0
      %1711 = vmatpush1.bf16.msra.mxu0 %v1672
      %1712 = vmatprep.subr.bf16.mxu0 0
      %1713 = vmatpush1.bf16.msra.mxu0 0
      %1714 = vmatprep.subr.bf16.mxu0 0
      %1715 = vmatpush1.bf16.msra.mxu0 0
      %1716 = vmatprep.subr.bf16.mxu0 0
      %1717 = vmatpush1.bf16.msra.mxu0 0
      %1718 = vmatprep.subr.bf16.mxu0 0
      %1719 = vmatpush1.bf16.msra.mxu0 0
      %1720 = vmatprep.subr.bf16.mxu0 0
      %1721 = vmatpush1.bf16.msra.mxu0 0
      %1722 = vmatprep.subr.bf16.mxu0 0
      %1723 = vmatpush1.bf16.msra.mxu0 0
      %1724 = vmatprep.subr.bf16.mxu0 0
      %1725 = vmatpush1.bf16.msra.mxu0 0
      %1726 = vmatprep.mubr.bf16.mxu0 %v1683
      %1727 = vmatmul.mubr.bf16.gmra.mrb[0].mxu0 %v1489
      %v1728 = vpop.f32.mrb[0].mxu0
      %v1729 = vadd.f32 0.0, %v1728
      %v1730 = vpop.f32.mrb[0].mxu0
      %v1731 = vpop.f32.mrb[0].mxu0
      %v1732 = vadd.f32 0.0, %v1731
      %v1733 = vpop.f32.mrb[0].mxu0
      %1734 = vmatprep.mubr.bf16.mxu0 %v1686
      %1735 = vmatmul.mubr.bf16.gmra.mrb[0].mxu0 %v1491
      %v1736 = vpop.f32.mrb[0].mxu0
      %v1737 = vadd.f32 0.0, %v1736
      %v1738 = vpop.f32.mrb[0].mxu0
      %v1739 = vpop.f32.mrb[0].mxu0
      %v1740 = vadd.f32 0.0, %v1739
      %v1741 = vpop.f32.mrb[0].mxu0
      %1742 = vmatprep.mubr.bf16.mxu0 %v1689
      %1743 = vmatmul.mubr.bf16.gmra.mrb[0].mxu0 %v1493
      %v1744 = vpop.f32.mrb[0].mxu0
      %v1745 = vadd.f32 0.0, %v1744
      %v1746 = vpop.f32.mrb[0].mxu0
      %v1747 = vpop.f32.mrb[0].mxu0
      %v1748 = vadd.f32 0.0, %v1747
      %v1749 = vpop.f32.mrb[0].mxu0
      %1750 = vmatprep.mubr.bf16.mxu0 %v1692
      %1751 = vmatmul.mubr.bf16.gmra.mrb[0].mxu0 %v1495
      %v1752 = vpop.f32.mrb[0].mxu0
      %v1753 = vadd.f32 0.0, %v1752
      %v1754 = vpop.f32.mrb[0].mxu0
      %v1755 = vpop.f32.mrb[0].mxu0
      %v1756 = vadd.f32 0.0, %v1755
      %v1757 = vpop.f32.mrb[0].mxu0
      %1758 = vdwg.mxu0
      %v1759 = vpack.c.bf16 %v1601, %v1598
      %v1760 = vpack.c.bf16 %v1609, %v1606
      %v1761 = vpack.c.bf16 %v1617, %v1614
      %v1762 = vpack.c.bf16 %v1625, %v1622
      %v1763 = vpack.c.bf16 %v1732, %v1729
      %v1764 = vpack.c.bf16 %v1740, %v1737
      %v1765 = vpack.c.bf16 %v1748, %v1745
      %v1766 = vpack.c.bf16 %v1756, %v1753
      %v1775 = vunpack.c.l.b16 %v1759
      %v1776 = vunpack.c.h.b16 %v1759
      %v1777 = vunpack.c.l.b16 %v1760
      %v1778 = vunpack.c.h.b16 %v1760
      %v1779 = vunpack.c.l.b16 %v1761
      %v1780 = vunpack.c.h.b16 %v1761
      %v1781 = vunpack.c.l.b16 %v1762
      %v1782 = vunpack.c.h.b16 %v1762
      %v1783 = vunpack.c.l.b16 %v1763
      %v1784 = vunpack.c.h.b16 %v1763
      %v1785 = vunpack.c.l.b16 %v1764
      %v1786 = vunpack.c.h.b16 %v1764
      %v1787 = vunpack.c.l.b16 %v1765
      %v1788 = vunpack.c.h.b16 %v1765
      %v1789 = vunpack.c.l.b16 %v1766
      %v1790 = vunpack.c.h.b16 %v1766
      %v1791 = vpack.c.b16 %v1775, %v1775
      %v1792 = vpack.c.b16 %v1776, %v1776
      %v1793 = vpack.c.b16 %v1777, %v1777
      %v1794 = vpack.c.b16 %v1778, %v1778
      %v1795 = vpack.c.b16 %v1779, %v1779
      %v1796 = vpack.c.b16 %v1780, %v1780
      %v1797 = vpack.c.b16 %v1781, %v1781
      %v1798 = vpack.c.b16 %v1782, %v1782
      %v1799 = vpack.c.b16 %v1783, %v1783
      %v1800 = vpack.c.b16 %v1784, %v1784
      %v1801 = vpack.c.b16 %v1785, %v1785
      %v1802 = vpack.c.b16 %v1786, %v1786
      %v1803 = vpack.c.b16 %v1787, %v1787
      %v1804 = vpack.c.b16 %v1788, %v1788
      %v1805 = vpack.c.b16 %v1789, %v1789
      %v1806 = vpack.c.b16 %v1790, %v1790
      %vm1823 = vcmask 125952
      %1824 = vst.msk [vmem:[%s306] sm:$0xf] %vm1823, %v1791
      %1825 = vst.msk [vmem:[%s306 + $0x4] sm:$0xf] %vm1823, %v1792
      %1826 = vst.msk [vmem:[%s306 + $0x8] sm:$0xf] %vm1823, %v1793
      %1827 = vst.msk [vmem:[%s306 + $0xc] sm:$0xf] %vm1823, %v1794
      %1828 = vst.msk [vmem:[%s306 + $0x10] sm:$0xf] %vm1823, %v1795
      %1829 = vst.msk [vmem:[%s306 + $0x14] sm:$0xf] %vm1823, %v1796
      %1830 = vst.msk [vmem:[%s306 + $0x18] sm:$0xf] %vm1823, %v1797
      %1831 = vst.msk [vmem:[%s306 + $0x1c] sm:$0xf] %vm1823, %v1798
      %1832 = vst.msk [vmem:[%s306 + $0x20] sm:$0xf] %vm1823, %v1799
      %1833 = vst.msk [vmem:[%s306 + $0x24] sm:$0xf] %vm1823, %v1800
      %1834 = vst.msk [vmem:[%s306 + $0x28] sm:$0xf] %vm1823, %v1801
      %1835 = vst.msk [vmem:[%s306 + $0x2c] sm:$0xf] %vm1823, %v1802
      %1836 = vst.msk [vmem:[%s306 + $0x30] sm:$0xf] %vm1823, %v1803
      %1837 = vst.msk [vmem:[%s306 + $0x34] sm:$0xf] %vm1823, %v1804
      %1838 = vst.msk [vmem:[%s306 + $0x38] sm:$0xf] %vm1823, %v1805
      %1839 = vst.msk [vmem:[%s306 + $0x3c] sm:$0xf] %vm1823, %v1806
      %v1841 = vsel %vm435, %v405, 0
      %v1844 = vsel %vm435, %v406, 0
      %v1847 = vsel %vm435, %v407, 0
      %v1850 = vsel %vm435, %v408, 0
      %v1853 = vsel %vm435, %v409, 0
      %v1856 = vsel %vm435, %v410, 0
      %v1859 = vsel %vm435, %v411, 0
      %v1862 = vsel %vm435, %v412, 0
      %v1865 = vsel %vm435, %v421, 0
      %v1868 = vsel %vm435, %v422, 0
      %v1871 = vsel %vm435, %v423, 0
      %v1874 = vsel %vm435, %v424, 0
      %v1877 = vsel %vm435, %v425, 0
      %v1880 = vsel %vm435, %v426, 0
      %v1883 = vsel %vm435, %v427, 0
      %v1886 = vsel %vm435, %v428, 0
      %1888 = vmatprep.subr.mxu0 %v430
      %1889 = vmatpush1.msra.mxu0 %v429
      %1890 = vmatprep.subr.mxu0 %v432
      %1891 = vmatpush1.msra.mxu0 %v431
      %1892 = vmatprep.subr.mxu0 %v434
      %1893 = vmatpush1.msra.mxu0 %v433
      %1894 = vmatprep.subr.mxu0 0.0
      %1895 = vmatpush1.msra.mxu0 0.0
      %1896 = vmatprep.subr.mxu0 0.0
      %1897 = vmatpush1.msra.mxu0 0.0
      %1898 = vmatprep.subr.mxu0 0.0
      %1899 = vmatpush1.msra.mxu0 0.0
      %1900 = vmatprep.subr.mxu0 0.0
      %1901 = vmatpush1.msra.mxu0 0.0
      %1902 = vmatprep.subr.mxu0 0.0
      %1903 = vmatpush1.msra.mxu0 0.0
      %1904 = vmatprep.subr.mxu0 0.0
      %1905 = vmatpush1.msra.mxu0 0.0
      %1906 = vmatprep.subr.mxu0 0.0
      %1907 = vmatpush1.msra.mxu0 0.0
      %1908 = vmatprep.subr.mxu0 0.0
      %1909 = vmatpush1.msra.mxu0 0.0
      %1910 = vmatprep.subr.mxu0 0.0
      %1911 = vmatpush1.msra.mxu0 0.0
      %1912 = vmatprep.subr.mxu0 0.0
      %1913 = vmatpush1.msra.mxu0 0.0
      %1914 = vmatprep.subr.mxu0 0.0
      %1915 = vmatpush1.msra.mxu0 0.0
      %1916 = vmatprep.subr.mxu0 0.0
      %1917 = vmatpush1.msra.mxu0 0.0
      %1918 = vmatprep.subr.mxu0 0.0
      %1919 = vmatpush1.msra.mxu0 0.0
      %1920 = vmatprep.subr.mxu0 0.0
      %1921 = vmatpush1.msra.mxu0 0.0
      %1922 = vmatprep.subr.mxu0 0.0
      %1923 = vmatpush1.msra.mxu0 0.0
      %1924 = vmatprep.subr.mxu0 0.0
      %1925 = vmatpush1.msra.mxu0 0.0
      %1926 = vmatprep.subr.mxu0 0.0
      %1927 = vmatpush1.msra.mxu0 0.0
      %1928 = vmatprep.subr.mxu0 0.0
      %1929 = vmatpush1.msra.mxu0 0.0
      %1930 = vmatprep.subr.mxu0 0.0
      %1931 = vmatpush1.msra.mxu0 0.0
      %1932 = vmatprep.subr.mxu0 0.0
      %1933 = vmatpush1.msra.mxu0 0.0
      %1934 = vmatprep.subr.mxu0 0.0
      %1935 = vmatpush1.msra.mxu0 0.0
      %1936 = vmatprep.subr.mxu0 0.0
      %1937 = vmatpush1.msra.mxu0 0.0
      %1938 = vmatprep.subr.mxu0 0.0
      %1939 = vmatpush1.msra.mxu0 0.0
      %1940 = vmatprep.subr.mxu0 0.0
      %1941 = vmatpush1.msra.mxu0 0.0
      %1942 = vmatprep.subr.mxu0 0.0
      %1943 = vmatpush1.msra.mxu0 0.0
      %1944 = vmatprep.subr.mxu0 0.0
      %1945 = vmatpush1.msra.mxu0 0.0
      %1946 = vmatprep.subr.mxu0 0.0
      %1947 = vmatpush1.msra.mxu0 0.0
      %1948 = vmatprep.subr.mxu0 0.0
      %1949 = vmatpush1.msra.mxu0 0.0
      %1950 = vmatprep.subr.mxu0 0.0
      %1951 = vmatpush1.msra.mxu0 0.0
      %1952 = vmatprep.mubr.f32.mxu0 0.0
      %1953 = vmatmul.mubr.f32.gmra.mrb[0].mxu0 %v1841
      %v1954 = vpop.f32.mrb[0].mxu0
      %v1955 = vadd.f32 0.0, %v1954
      %v1956 = vpop.f32.mrb[0].mxu0
      %v1957 = vadd.f32 0.0, %v1956
      %1958 = vmatprep.mubr.f32.mxu0 0.0
      %1959 = vmatmul.mubr.f32.gmra.mrb[0].mxu0 %v1844
      %v1960 = vpop.f32.mrb[0].mxu0
      %v1961 = vadd.f32 0.0, %v1960
      %v1962 = vpop.f32.mrb[0].mxu0
      %v1963 = vadd.f32 0.0, %v1962
      %1964 = vmatprep.mubr.f32.mxu0 0.0
      %1965 = vmatmul.mubr.f32.gmra.mrb[0].mxu0 %v1847
      %v1966 = vpop.f32.mrb[0].mxu0
      %v1967 = vadd.f32 0.0, %v1966
      %v1968 = vpop.f32.mrb[0].mxu0
      %v1969 = vadd.f32 0.0, %v1968
      %1970 = vmatprep.mubr.f32.mxu0 0.0
      %1971 = vmatmul.mubr.f32.gmra.mrb[0].mxu0 %v1850
      %v1972 = vpop.f32.mrb[0].mxu0
      %v1973 = vadd.f32 0.0, %v1972
      %v1974 = vpop.f32.mrb[0].mxu0
      %v1975 = vadd.f32 0.0, %v1974
      %1976 = vmatprep.mubr.f32.mxu0 0.0
      %1977 = vmatmul.mubr.f32.gmra.mrb[0].mxu0 %v1853
      %v1978 = vpop.f32.mrb[0].mxu0
      %v1979 = vadd.f32 0.0, %v1978
      %v1980 = vpop.f32.mrb[0].mxu0
      %v1981 = vadd.f32 0.0, %v1980
      %1982 = vmatprep.mubr.f32.mxu0 0.0
      %1983 = vmatmul.mubr.f32.gmra.mrb[0].mxu0 %v1856
      %v1984 = vpop.f32.mrb[0].mxu0
      %v1985 = vadd.f32 0.0, %v1984
      %v1986 = vpop.f32.mrb[0].mxu0
      %v1987 = vadd.f32 0.0, %v1986
      %1988 = vmatprep.mubr.f32.mxu0 0.0
      %1989 = vmatmul.mubr.f32.gmra.mrb[0].mxu0 %v1859
      %v1990 = vpop.f32.mrb[0].mxu0
      %v1991 = vadd.f32 0.0, %v1990
      %v1992 = vpop.f32.mrb[0].mxu0
      %v1993 = vadd.f32 0.0, %v1992
      %1994 = vmatprep.mubr.f32.mxu0 0.0
      %1995 = vmatmul.mubr.f32.gmra.mrb[0].mxu0 %v1862
      %v1996 = vpop.f32.mrb[0].mxu0
      %v1997 = vadd.f32 0.0, %v1996
      %v1998 = vpop.f32.mrb[0].mxu0
      %v1999 = vadd.f32 0.0, %v1998
      %2000 = vmatprep.mubr.f32.mxu0 0.0
      %2001 = vmatmul.mubr.f32.gmra.mrb[0].mxu0 %v1865
      %v2002 = vpop.f32.mrb[0].mxu0
      %v2003 = vadd.f32 0.0, %v2002
      %v2004 = vpop.f32.mrb[0].mxu0
      %v2005 = vadd.f32 0.0, %v2004
      %2006 = vmatprep.mubr.f32.mxu0 0.0
      %2007 = vmatmul.mubr.f32.gmra.mrb[0].mxu0 %v1868
      %v2008 = vpop.f32.mrb[0].mxu0
      %v2009 = vadd.f32 0.0, %v2008
      %v2010 = vpop.f32.mrb[0].mxu0
      %v2011 = vadd.f32 0.0, %v2010
      %2012 = vmatprep.mubr.f32.mxu0 0.0
      %2013 = vmatmul.mubr.f32.gmra.mrb[0].mxu0 %v1871
      %v2014 = vpop.f32.mrb[0].mxu0
      %v2015 = vadd.f32 0.0, %v2014
      %v2016 = vpop.f32.mrb[0].mxu0
      %v2017 = vadd.f32 0.0, %v2016
      %2018 = vmatprep.mubr.f32.mxu0 0.0
      %2019 = vmatmul.mubr.f32.gmra.mrb[0].mxu0 %v1874
      %v2020 = vpop.f32.mrb[0].mxu0
      %v2021 = vadd.f32 0.0, %v2020
      %v2022 = vpop.f32.mrb[0].mxu0
      %v2023 = vadd.f32 0.0, %v2022
      %2024 = vmatprep.mubr.f32.mxu0 0.0
      %2025 = vmatmul.mubr.f32.gmra.mrb[0].mxu0 %v1877
      %v2026 = vpop.f32.mrb[0].mxu0
      %v2027 = vadd.f32 0.0, %v2026
      %v2028 = vpop.f32.mrb[0].mxu0
      %v2029 = vadd.f32 0.0, %v2028
      %2030 = vmatprep.mubr.f32.mxu0 0.0
      %2031 = vmatmul.mubr.f32.gmra.mrb[0].mxu0 %v1880
      %v2032 = vpop.f32.mrb[0].mxu0
      %v2033 = vadd.f32 0.0, %v2032
      %v2034 = vpop.f32.mrb[0].mxu0
      %v2035 = vadd.f32 0.0, %v2034
      %2036 = vmatprep.mubr.f32.mxu0 0.0
      %2037 = vmatmul.mubr.f32.gmra.mrb[0].mxu0 %v1883
      %v2038 = vpop.f32.mrb[0].mxu0
      %v2039 = vadd.f32 0.0, %v2038
      %v2040 = vpop.f32.mrb[0].mxu0
      %v2041 = vadd.f32 0.0, %v2040
      %2042 = vmatprep.mubr.f32.mxu0 0.0
      %2043 = vmatmul.mubr.f32.gmra.mrb[0].mxu0 %v1886
      %v2044 = vpop.f32.mrb[0].mxu0
      %v2045 = vadd.f32 0.0, %v2044
      %v2046 = vpop.f32.mrb[0].mxu0
      %v2047 = vadd.f32 0.0, %v2046
      %2048 = vdwg.mxu0
      %2049 = vrot.lane.b32.xlu0 %v661, 112
      %v2050 = vpop.permute.xlu0 %2049
      %2051 = vrot.lane.b32.xlu0 %v662, 112
      %v2052 = vpop.permute.xlu0 %2051
      %2053 = vrot.lane.b32.xlu0 %v663, 112
      %v2054 = vpop.permute.xlu0 %2053
      %2055 = vrot.lane.b32.xlu0 %v664, 112
      %v2056 = vpop.permute.xlu0 %2055
      %2057 = vrot.lane.b32.xlu0 %v701, 112
      %v2058 = vpop.permute.xlu0 %2057
      %2059 = vrot.lane.b32.xlu0 %v702, 112
      %v2060 = vpop.permute.xlu0 %2059
      %2061 = vrot.lane.b32.xlu0 %v703, 112
      %v2062 = vpop.permute.xlu0 %2061
      %2063 = vrot.lane.b32.xlu0 %v704, 112
      %v2064 = vpop.permute.xlu0 %2063
      %2065 = vrot.lane.b32.xlu0 %v705, 112
      %v2066 = vpop.permute.xlu0 %2065
      %2067 = vrot.lane.b32.xlu0 %v706, 112
      %v2068 = vpop.permute.xlu0 %2067
      %2069 = vrot.lane.b32.xlu0 %v707, 112
      %v2070 = vpop.permute.xlu0 %2069
      %2071 = vrot.lane.b32.xlu0 %v708, 112
      %v2072 = vpop.permute.xlu0 %2071
      %2073 = vrot.lane.b32.xlu0 %v709, 112
      %v2074 = vpop.permute.xlu0 %2073
      %v2076 = vsel %vm710, %v2050, 0
      %v2079 = vsel %vm710, %v2052, 0
      %v2082 = vsel %vm710, %v2054, 0
      %v2085 = vsel %vm710, %v2056, 0
      %v2088 = vsel %vm710, %v2058, 0
      %v2091 = vsel %vm710, %v2060, 0
      %v2094 = vsel %vm710, %v2062, 0
      %v2097 = vsel %vm710, %v2064, 0
      %v2100 = vsel %vm710, %v2066, 0
      %v2103 = vsel %vm710, %v2068, 0
      %v2106 = vsel %vm710, %v2070, 0
      %v2109 = vsel %vm710, %v2072, 0
      %v2112 = vsel %vm710, %v2074, 0
      %2114 = vmatprep.subr.bf16.mxu0 0
      %2115 = vmatpush1.bf16.xpose.msra.mxu0 %v2088
      %2116 = vmatprep.subr.bf16.mxu0 0
      %2117 = vmatpush1.bf16.xpose.msra.mxu0 %v2091
      %2118 = vmatprep.subr.bf16.mxu0 0
      %2119 = vmatpush1.bf16.xpose.msra.mxu0 %v2094
      %2120 = vmatprep.subr.bf16.mxu0 0
      %2121 = vmatpush1.bf16.xpose.msra.mxu0 %v2097
      %2122 = vmatprep.subr.bf16.mxu0 0
      %2123 = vmatpush1.bf16.xpose.msra.mxu0 %v2100
      %2124 = vmatprep.subr.bf16.mxu0 0
      %2125 = vmatpush1.bf16.xpose.msra.mxu0 %v2103
      %2126 = vmatprep.subr.bf16.mxu0 0
      %2127 = vmatpush1.bf16.xpose.msra.mxu0 %v2106
      %2128 = vmatprep.subr.bf16.mxu0 0
      %2129 = vmatpush1.bf16.xpose.msra.mxu0 %v2109
      %2130 = vmatprep.subr.bf16.mxu0 0
      %2131 = vmatpush1.bf16.xpose.msra.mxu0 %v2112
      %2132 = vmatprep.subr.bf16.mxu0 0
      %2133 = vmatpush1.bf16.xpose.msra.mxu0 0
      %2134 = vmatprep.subr.bf16.mxu0 0
      %2135 = vmatpush1.bf16.xpose.msra.mxu0 0
      %2136 = vmatprep.subr.bf16.mxu0 0
      %2137 = vmatpush1.bf16.xpose.msra.mxu0 0
      %2138 = vmatprep.subr.bf16.mxu0 0
      %2139 = vmatpush1.bf16.xpose.msra.mxu0 0
      %2140 = vmatprep.subr.bf16.mxu0 0
      %2141 = vmatpush1.bf16.xpose.msra.mxu0 0
      %2142 = vmatprep.subr.bf16.mxu0 0
      %2143 = vmatpush1.bf16.xpose.msra.mxu0 0
      %2144 = vmatprep.subr.bf16.mxu0 0
      %2145 = vmatpush1.bf16.xpose.msra.mxu0 0
      %2146 = vmatprep.mubr.bf16.mxu0 0
      %2147 = vmatmul.mubr.bf16.gmra.mrb[0].mxu0 %v2076
      %v2148 = vpop.f32.mrb[0].mxu0
      %v2149 = vadd.f32 %v1955, %v2148
      %v2150 = vpop.f32.mrb[0].mxu0
      %v2151 = vadd.f32 %v1957, %v2150
      %v2152 = vpop.f32.mrb[0].mxu0
      %v2153 = vadd.f32 %v1961, %v2152
      %v2154 = vpop.f32.mrb[0].mxu0
      %v2155 = vadd.f32 %v1963, %v2154
      %2156 = vmatprep.mubr.bf16.mxu0 0
      %2157 = vmatmul.mubr.bf16.gmra.mrb[0].mxu0 %v2079
      %v2158 = vpop.f32.mrb[0].mxu0
      %v2159 = vadd.f32 %v1967, %v2158
      %v2160 = vpop.f32.mrb[0].mxu0
      %v2161 = vadd.f32 %v1969, %v2160
      %v2162 = vpop.f32.mrb[0].mxu0
      %v2163 = vadd.f32 %v1973, %v2162
      %v2164 = vpop.f32.mrb[0].mxu0
      %v2165 = vadd.f32 %v1975, %v2164
      %2166 = vmatprep.mubr.bf16.mxu0 0
      %2167 = vmatmul.mubr.bf16.gmra.mrb[0].mxu0 %v2082
      %v2168 = vpop.f32.mrb[0].mxu0
      %v2169 = vadd.f32 %v1979, %v2168
      %v2170 = vpop.f32.mrb[0].mxu0
      %v2171 = vadd.f32 %v1981, %v2170
      %v2172 = vpop.f32.mrb[0].mxu0
      %v2173 = vadd.f32 %v1985, %v2172
      %v2174 = vpop.f32.mrb[0].mxu0
      %v2175 = vadd.f32 %v1987, %v2174
      %2176 = vmatprep.mubr.bf16.mxu0 0
      %2177 = vmatmul.mubr.bf16.gmra.mrb[0].mxu0 %v2085
      %v2178 = vpop.f32.mrb[0].mxu0
      %v2179 = vadd.f32 %v1991, %v2178
      %v2180 = vpop.f32.mrb[0].mxu0
      %v2181 = vadd.f32 %v1993, %v2180
      %v2182 = vpop.f32.mrb[0].mxu0
      %v2183 = vadd.f32 %v1997, %v2182
      %v2184 = vpop.f32.mrb[0].mxu0
      %v2185 = vadd.f32 %v1999, %v2184
      %2186 = vdwg.mxu0
      %2187 = vrot.lane.b32.xlu0 %v839, 112
      %v2188 = vpop.permute.xlu0 %2187
      %2189 = vrot.lane.b32.xlu0 %v840, 112
      %v2190 = vpop.permute.xlu0 %2189
      %2191 = vrot.lane.b32.xlu0 %v841, 112
      %v2192 = vpop.permute.xlu0 %2191
      %2193 = vrot.lane.b32.xlu0 %v842, 112
      %v2194 = vpop.permute.xlu0 %2193
      %2195 = vrot.lane.b32.xlu0 %v879, 112
      %v2196 = vpop.permute.xlu0 %2195
      %2197 = vrot.lane.b32.xlu0 %v880, 112
      %v2198 = vpop.permute.xlu0 %2197
      %2199 = vrot.lane.b32.xlu0 %v881, 112
      %v2200 = vpop.permute.xlu0 %2199
      %2201 = vrot.lane.b32.xlu0 %v882, 112
      %v2202 = vpop.permute.xlu0 %2201
      %2203 = vrot.lane.b32.xlu0 %v883, 112
      %v2204 = vpop.permute.xlu0 %2203
      %2205 = vrot.lane.b32.xlu0 %v884, 112
      %v2206 = vpop.permute.xlu0 %2205
      %2207 = vrot.lane.b32.xlu0 %v885, 112
      %v2208 = vpop.permute.xlu0 %2207
      %2209 = vrot.lane.b32.xlu0 %v886, 112
      %v2210 = vpop.permute.xlu0 %2209
      %2211 = vrot.lane.b32.xlu0 %v887, 112
      %v2212 = vpop.permute.xlu0 %2211
      %v2214 = vsel %vm710, %v2188, 0
      %v2217 = vsel %vm710, %v2190, 0
      %v2220 = vsel %vm710, %v2192, 0
      %v2223 = vsel %vm710, %v2194, 0
      %v2226 = vsel %vm710, %v2196, 0
      %v2229 = vsel %vm710, %v2198, 0
      %v2232 = vsel %vm710, %v2200, 0
      %v2235 = vsel %vm710, %v2202, 0
      %v2238 = vsel %vm710, %v2204, 0
      %v2241 = vsel %vm710, %v2206, 0
      %v2244 = vsel %vm710, %v2208, 0
      %v2247 = vsel %vm710, %v2210, 0
      %v2250 = vsel %vm710, %v2212, 0
      %2252 = vmatprep.subr.bf16.mxu0 0
      %2253 = vmatpush1.bf16.xpose.msra.mxu0 %v2226
      %2254 = vmatprep.subr.bf16.mxu0 0
      %2255 = vmatpush1.bf16.xpose.msra.mxu0 %v2229
      %2256 = vmatprep.subr.bf16.mxu0 0
      %2257 = vmatpush1.bf16.xpose.msra.mxu0 %v2232
      %2258 = vmatprep.subr.bf16.mxu0 0
      %2259 = vmatpush1.bf16.xpose.msra.mxu0 %v2235
      %2260 = vmatprep.subr.bf16.mxu0 0
      %2261 = vmatpush1.bf16.xpose.msra.mxu0 %v2238
      %2262 = vmatprep.subr.bf16.mxu0 0
      %2263 = vmatpush1.bf16.xpose.msra.mxu0 %v2241
      %2264 = vmatprep.subr.bf16.mxu0 0
      %2265 = vmatpush1.bf16.xpose.msra.mxu0 %v2244
      %2266 = vmatprep.subr.bf16.mxu0 0
      %2267 = vmatpush1.bf16.xpose.msra.mxu0 %v2247
      %2268 = vmatprep.subr.bf16.mxu0 0
      %2269 = vmatpush1.bf16.xpose.msra.mxu0 %v2250
      %2270 = vmatprep.subr.bf16.mxu0 0
      %2271 = vmatpush1.bf16.xpose.msra.mxu0 0
      %2272 = vmatprep.subr.bf16.mxu0 0
      %2273 = vmatpush1.bf16.xpose.msra.mxu0 0
      %2274 = vmatprep.subr.bf16.mxu0 0
      %2275 = vmatpush1.bf16.xpose.msra.mxu0 0
      %2276 = vmatprep.subr.bf16.mxu0 0
      %2277 = vmatpush1.bf16.xpose.msra.mxu0 0
      %2278 = vmatprep.subr.bf16.mxu0 0
      %2279 = vmatpush1.bf16.xpose.msra.mxu0 0
      %2280 = vmatprep.subr.bf16.mxu0 0
      %2281 = vmatpush1.bf16.xpose.msra.mxu0 0
      %2282 = vmatprep.subr.bf16.mxu0 0
      %2283 = vmatpush1.bf16.xpose.msra.mxu0 0
      %2284 = vmatprep.mubr.bf16.mxu0 0
      %2285 = vmatmul.mubr.bf16.gmra.mrb[0].mxu0 %v2214
      %v2286 = vpop.f32.mrb[0].mxu0
      %v2287 = vadd.f32 %v2003, %v2286
      %v2288 = vpop.f32.mrb[0].mxu0
      %v2289 = vadd.f32 %v2005, %v2288
      %v2290 = vpop.f32.mrb[0].mxu0
      %v2291 = vadd.f32 %v2009, %v2290
      %v2292 = vpop.f32.mrb[0].mxu0
      %v2293 = vadd.f32 %v2011, %v2292
      %2294 = vmatprep.mubr.bf16.mxu0 0
      %2295 = vmatmul.mubr.bf16.gmra.mrb[0].mxu0 %v2217
      %v2296 = vpop.f32.mrb[0].mxu0
      %v2297 = vadd.f32 %v2015, %v2296
      %v2298 = vpop.f32.mrb[0].mxu0
      %v2299 = vadd.f32 %v2017, %v2298
      %v2300 = vpop.f32.mrb[0].mxu0
      %v2301 = vadd.f32 %v2021, %v2300
      %v2302 = vpop.f32.mrb[0].mxu0
      %v2303 = vadd.f32 %v2023, %v2302
      %2304 = vmatprep.mubr.bf16.mxu0 0
      %2305 = vmatmul.mubr.bf16.gmra.mrb[0].mxu0 %v2220
      %v2306 = vpop.f32.mrb[0].mxu0
      %v2307 = vadd.f32 %v2027, %v2306
      %v2308 = vpop.f32.mrb[0].mxu0
      %v2309 = vadd.f32 %v2029, %v2308
      %v2310 = vpop.f32.mrb[0].mxu0
      %v2311 = vadd.f32 %v2033, %v2310
      %v2312 = vpop.f32.mrb[0].mxu0
      %v2313 = vadd.f32 %v2035, %v2312
      %2314 = vmatprep.mubr.bf16.mxu0 0
      %2315 = vmatmul.mubr.bf16.gmra.mrb[0].mxu0 %v2223
      %v2316 = vpop.f32.mrb[0].mxu0
      %v2317 = vadd.f32 %v2039, %v2316
      %v2318 = vpop.f32.mrb[0].mxu0
      %v2319 = vadd.f32 %v2041, %v2318
      %v2320 = vpop.f32.mrb[0].mxu0
      %v2321 = vadd.f32 %v2045, %v2320
      %v2322 = vpop.f32.mrb[0].mxu0
      %v2323 = vadd.f32 %v2047, %v2322
      %2324 = vdwg.mxu0
      %v2325 = vsel %vm710, %v2151, -inf
      %v2326 = vmax.f32 %v2149, %v2325
      %2327 = vmax.xlane.f32.xlu0 %v2326
      %v2328 = vpop.xlane.xlu0 %2327
      %v2329 = vsel %vm710, %v2155, -inf
      %v2330 = vmax.f32 %v2153, %v2329
      %2331 = vmax.xlane.f32.xlu0 %v2330
      %v2332 = vpop.xlane.xlu0 %2331
      %v2333 = vsel %vm710, %v2161, -inf
      %v2334 = vmax.f32 %v2159, %v2333
      %2335 = vmax.xlane.f32.xlu0 %v2334
      %v2336 = vpop.xlane.xlu0 %2335
      %v2337 = vsel %vm710, %v2165, -inf
      %v2338 = vmax.f32 %v2163, %v2337
      %2339 = vmax.xlane.f32.xlu0 %v2338
      %v2340 = vpop.xlane.xlu0 %2339
      %v2341 = vsel %vm710, %v2171, -inf
      %v2342 = vmax.f32 %v2169, %v2341
      %2343 = vmax.xlane.f32.xlu0 %v2342
      %v2344 = vpop.xlane.xlu0 %2343
      %v2345 = vsel %vm710, %v2175, -inf
      %v2346 = vmax.f32 %v2173, %v2345
      %2347 = vmax.xlane.f32.xlu0 %v2346
      %v2348 = vpop.xlane.xlu0 %2347
      %v2349 = vsel %vm710, %v2181, -inf
      %v2350 = vmax.f32 %v2179, %v2349
      %2351 = vmax.xlane.f32.xlu0 %v2350
      %v2352 = vpop.xlane.xlu0 %2351
      %v2353 = vsel %vm710, %v2185, -inf
      %v2354 = vmax.f32 %v2183, %v2353
      %2355 = vmax.xlane.f32.xlu0 %v2354
      %v2356 = vpop.xlane.xlu0 %2355
      %v2357 = vsel %vm710, %v2289, -inf
      %v2358 = vmax.f32 %v2287, %v2357
      %2359 = vmax.xlane.f32.xlu0 %v2358
      %v2360 = vpop.xlane.xlu0 %2359
      %v2361 = vsel %vm710, %v2293, -inf
      %v2362 = vmax.f32 %v2291, %v2361
      %2363 = vmax.xlane.f32.xlu0 %v2362
      %v2364 = vpop.xlane.xlu0 %2363
      %v2365 = vsel %vm710, %v2299, -inf
      %v2366 = vmax.f32 %v2297, %v2365
      %2367 = vmax.xlane.f32.xlu0 %v2366
      %v2368 = vpop.xlane.xlu0 %2367
      %v2369 = vsel %vm710, %v2303, -inf
      %v2370 = vmax.f32 %v2301, %v2369
      %2371 = vmax.xlane.f32.xlu0 %v2370
      %v2372 = vpop.xlane.xlu0 %2371
      %v2373 = vsel %vm710, %v2309, -inf
      %v2374 = vmax.f32 %v2307, %v2373
      %2375 = vmax.xlane.f32.xlu0 %v2374
      %v2376 = vpop.xlane.xlu0 %2375
      %v2377 = vsel %vm710, %v2313, -inf
      %v2378 = vmax.f32 %v2311, %v2377
      %2379 = vmax.xlane.f32.xlu0 %v2378
      %v2380 = vpop.xlane.xlu0 %2379
      %v2381 = vsel %vm710, %v2319, -inf
      %v2382 = vmax.f32 %v2317, %v2381
      %2383 = vmax.xlane.f32.xlu0 %v2382
      %v2384 = vpop.xlane.xlu0 %2383
      %v2385 = vsel %vm710, %v2323, -inf
      %v2386 = vmax.f32 %v2321, %v2385
      %2387 = vmax.xlane.f32.xlu0 %v2386
      %v2388 = vpop.xlane.xlu0 %2387
      %v2389 = vsub.f32 %v2149, %v2328
      %v2390 = vsub.f32 %v2151, %v2328
      %v2391 = vsub.f32 %v2153, %v2332
      %v2392 = vsub.f32 %v2155, %v2332
      %v2393 = vsub.f32 %v2159, %v2336
      %v2394 = vsub.f32 %v2161, %v2336
      %v2395 = vsub.f32 %v2163, %v2340
      %v2396 = vsub.f32 %v2165, %v2340
      %v2397 = vsub.f32 %v2169, %v2344
      %v2398 = vsub.f32 %v2171, %v2344
      %v2399 = vsub.f32 %v2173, %v2348
      %v2400 = vsub.f32 %v2175, %v2348
      %v2401 = vsub.f32 %v2179, %v2352
      %v2402 = vsub.f32 %v2181, %v2352
      %v2403 = vsub.f32 %v2183, %v2356
      %v2404 = vsub.f32 %v2185, %v2356
      %v2405 = vsub.f32 %v2287, %v2360
      %v2406 = vsub.f32 %v2289, %v2360
      %v2407 = vsub.f32 %v2291, %v2364
      %v2408 = vsub.f32 %v2293, %v2364
      %v2409 = vsub.f32 %v2297, %v2368
      %v2410 = vsub.f32 %v2299, %v2368
      %v2411 = vsub.f32 %v2301, %v2372
      %v2412 = vsub.f32 %v2303, %v2372
      %v2413 = vsub.f32 %v2307, %v2376
      %v2414 = vsub.f32 %v2309, %v2376
      %v2415 = vsub.f32 %v2311, %v2380
      %v2416 = vsub.f32 %v2313, %v2380
      %v2417 = vsub.f32 %v2317, %v2384
      %v2418 = vsub.f32 %v2319, %v2384
      %v2419 = vsub.f32 %v2321, %v2388
      %v2420 = vsub.f32 %v2323, %v2388
      %v2421 = vmul.f32 %v2389, 1.442695
      %v2422 = vpow.pop %v2421
      %v2423 = vmul.f32 %v2390, 1.442695
      %v2424 = vpow.pop %v2423
      %v2425 = vmul.f32 %v2391, 1.442695
      %v2426 = vpow.pop %v2425
      %v2427 = vmul.f32 %v2392, 1.442695
      %v2428 = vpow.pop %v2427
      %v2429 = vmul.f32 %v2393, 1.442695
      %v2430 = vpow.pop %v2429
      %v2431 = vmul.f32 %v2394, 1.442695
      %v2432 = vpow.pop %v2431
      %v2433 = vmul.f32 %v2395, 1.442695
      %v2434 = vpow.pop %v2433
      %v2435 = vmul.f32 %v2396, 1.442695
      %v2436 = vpow.pop %v2435
      %v2437 = vmul.f32 %v2397, 1.442695
      %v2438 = vpow.pop %v2437
      %v2439 = vmul.f32 %v2398, 1.442695
      %v2440 = vpow.pop %v2439
      %v2441 = vmul.f32 %v2399, 1.442695
      %v2442 = vpow.pop %v2441
      %v2443 = vmul.f32 %v2400, 1.442695
      %v2444 = vpow.pop %v2443
      %v2445 = vmul.f32 %v2401, 1.442695
      %v2446 = vpow.pop %v2445
      %v2447 = vmul.f32 %v2402, 1.442695
      %v2448 = vpow.pop %v2447
      %v2449 = vmul.f32 %v2403, 1.442695
      %v2450 = vpow.pop %v2449
      %v2451 = vmul.f32 %v2404, 1.442695
      %v2452 = vpow.pop %v2451
      %v2453 = vmul.f32 %v2405, 1.442695
      %v2454 = vpow.pop %v2453
      %v2455 = vmul.f32 %v2406, 1.442695
      %v2456 = vpow.pop %v2455
      %v2457 = vmul.f32 %v2407, 1.442695
      %v2458 = vpow.pop %v2457
      %v2459 = vmul.f32 %v2408, 1.442695
      %v2460 = vpow.pop %v2459
      %v2461 = vmul.f32 %v2409, 1.442695
      %v2462 = vpow.pop %v2461
      %v2463 = vmul.f32 %v2410, 1.442695
      %v2464 = vpow.pop %v2463
      %v2465 = vmul.f32 %v2411, 1.442695
      %v2466 = vpow.pop %v2465
      %v2467 = vmul.f32 %v2412, 1.442695
      %v2468 = vpow.pop %v2467
      %v2469 = vmul.f32 %v2413, 1.442695
      %v2470 = vpow.pop %v2469
      %v2471 = vmul.f32 %v2414, 1.442695
      %v2472 = vpow.pop %v2471
      %v2473 = vmul.f32 %v2415, 1.442695
      %v2474 = vpow.pop %v2473
      %v2475 = vmul.f32 %v2416, 1.442695
      %v2476 = vpow.pop %v2475
      %v2477 = vmul.f32 %v2417, 1.442695
      %v2478 = vpow.pop %v2477
      %v2479 = vmul.f32 %v2418, 1.442695
      %v2480 = vpow.pop %v2479
      %v2481 = vmul.f32 %v2419, 1.442695
      %v2482 = vpow.pop %v2481
      %v2483 = vmul.f32 %v2420, 1.442695
      %v2484 = vpow.pop %v2483
      %v2486 = vsel %vm710, %v2424, 0
      %v2489 = vsel %vm710, %v2428, 0
      %v2492 = vsel %vm710, %v2432, 0
      %v2495 = vsel %vm710, %v2436, 0
      %v2498 = vsel %vm710, %v2440, 0
      %v2501 = vsel %vm710, %v2444, 0
      %v2504 = vsel %vm710, %v2448, 0
      %v2507 = vsel %vm710, %v2452, 0
      %v2510 = vsel %vm710, %v2456, 0
      %v2513 = vsel %vm710, %v2460, 0
      %v2516 = vsel %vm710, %v2464, 0
      %v2519 = vsel %vm710, %v2468, 0
      %v2522 = vsel %vm710, %v2472, 0
      %v2525 = vsel %vm710, %v2476, 0
      %v2528 = vsel %vm710, %v2480, 0
      %v2531 = vsel %vm710, %v2484, 0
      %2533 = vmatprep.subr.mxu0 0.0
      %2534 = vmatpush1.msra.mxu0 1.0
      %2535 = vmatprep.subr.mxu0 0.0
      %2536 = vmatpush1.msra.mxu0 1.0
      %2537 = vmatprep.subr.mxu0 0.0
      %2538 = vmatpush1.msra.mxu0 1.0
      %2539 = vmatprep.subr.mxu0 0.0
      %2540 = vmatpush1.msra.mxu0 1.0
      %2541 = vmatprep.subr.mxu0 0.0
      %2542 = vmatpush1.msra.mxu0 1.0
      %2543 = vmatprep.subr.mxu0 0.0
      %2544 = vmatpush1.msra.mxu0 1.0
      %2545 = vmatprep.subr.mxu0 0.0
      %2546 = vmatpush1.msra.mxu0 1.0
      %2547 = vmatprep.subr.mxu0 0.0
      %2548 = vmatpush1.msra.mxu0 1.0
      %2549 = vmatprep.subr.mxu0 0.0
      %2550 = vmatpush1.msra.mxu0 1.0
      %2551 = vmatprep.subr.mxu0 0.0
      %2552 = vmatpush1.msra.mxu0 1.0
      %2553 = vmatprep.subr.mxu0 0.0
      %2554 = vmatpush1.msra.mxu0 1.0
      %2555 = vmatprep.subr.mxu0 0.0
      %2556 = vmatpush1.msra.mxu0 1.0
      %2557 = vmatprep.subr.mxu0 0.0
      %2558 = vmatpush1.msra.mxu0 1.0
      %2559 = vmatprep.subr.mxu0 0.0
      %2560 = vmatpush1.msra.mxu0 1.0
      %2561 = vmatprep.subr.mxu0 0.0
      %2562 = vmatpush1.msra.mxu0 1.0
      %2563 = vmatprep.subr.mxu0 0.0
      %2564 = vmatpush1.msra.mxu0 1.0
      %2565 = vmatprep.subr.mxu0 0.0
      %2566 = vmatpush1.msra.mxu0 1.0
      %2567 = vmatprep.subr.mxu0 0.0
      %2568 = vmatpush1.msra.mxu0 1.0
      %2569 = vmatprep.subr.mxu0 0.0
      %2570 = vmatpush1.msra.mxu0 0.0
      %2571 = vmatprep.subr.mxu0 0.0
      %2572 = vmatpush1.msra.mxu0 0.0
      %2573 = vmatprep.subr.mxu0 0.0
      %2574 = vmatpush1.msra.mxu0 0.0
      %2575 = vmatprep.subr.mxu0 0.0
      %2576 = vmatpush1.msra.mxu0 0.0
      %2577 = vmatprep.subr.mxu0 0.0
      %2578 = vmatpush1.msra.mxu0 0.0
      %2579 = vmatprep.subr.mxu0 0.0
      %2580 = vmatpush1.msra.mxu0 0.0
      %2581 = vmatprep.subr.mxu0 0.0
      %2582 = vmatpush1.msra.mxu0 0.0
      %2583 = vmatprep.subr.mxu0 0.0
      %2584 = vmatpush1.msra.mxu0 0.0
      %2585 = vmatprep.subr.mxu0 0.0
      %2586 = vmatpush1.msra.mxu0 0.0
      %2587 = vmatprep.subr.mxu0 0.0
      %2588 = vmatpush1.msra.mxu0 0.0
      %2589 = vmatprep.subr.mxu0 0.0
      %2590 = vmatpush1.msra.mxu0 0.0
      %2591 = vmatprep.subr.mxu0 0.0
      %2592 = vmatpush1.msra.mxu0 0.0
      %2593 = vmatprep.subr.mxu0 0.0
      %2594 = vmatpush1.msra.mxu0 0.0
      %2595 = vmatprep.subr.mxu0 0.0
      %2596 = vmatpush1.msra.mxu0 0.0
      %2597 = vmatprep.mubr.f32.mxu0 %v2486
      %2598 = vmatmul.mubr.f32.gmra.mrb[0].mxu0 %v2422
      %v2599 = vpop.f32.mrb[0].mxu0
      %v2600 = vadd.f32 0.0, %v2599
      %v2601 = vpop.f32.mrb[0].mxu0
      %2602 = vmatprep.mubr.f32.mxu0 %v2489
      %2603 = vmatmul.mubr.f32.gmra.mrb[0].mxu0 %v2426
      %v2604 = vpop.f32.mrb[0].mxu0
      %v2605 = vadd.f32 0.0, %v2604
      %v2606 = vpop.f32.mrb[0].mxu0
      %2607 = vmatprep.mubr.f32.mxu0 %v2492
      %2608 = vmatmul.mubr.f32.gmra.mrb[0].mxu0 %v2430
      %v2609 = vpop.f32.mrb[0].mxu0
      %v2610 = vadd.f32 0.0, %v2609
      %v2611 = vpop.f32.mrb[0].mxu0
      %2612 = vmatprep.mubr.f32.mxu0 %v2495
      %2613 = vmatmul.mubr.f32.gmra.mrb[0].mxu0 %v2434
      %v2614 = vpop.f32.mrb[0].mxu0
      %v2615 = vadd.f32 0.0, %v2614
      %v2616 = vpop.f32.mrb[0].mxu0
      %2617 = vmatprep.mubr.f32.mxu0 %v2498
      %2618 = vmatmul.mubr.f32.gmra.mrb[0].mxu0 %v2438
      %v2619 = vpop.f32.mrb[0].mxu0
      %v2620 = vadd.f32 0.0, %v2619
      %v2621 = vpop.f32.mrb[0].mxu0
      %2622 = vmatprep.mubr.f32.mxu0 %v2501
      %2623 = vmatmul.mubr.f32.gmra.mrb[0].mxu0 %v2442
      %v2624 = vpop.f32.mrb[0].mxu0
      %v2625 = vadd.f32 0.0, %v2624
      %v2626 = vpop.f32.mrb[0].mxu0
      %2627 = vmatprep.mubr.f32.mxu0 %v2504
      %2628 = vmatmul.mubr.f32.gmra.mrb[0].mxu0 %v2446
      %v2629 = vpop.f32.mrb[0].mxu0
      %v2630 = vadd.f32 0.0, %v2629
      %v2631 = vpop.f32.mrb[0].mxu0
      %2632 = vmatprep.mubr.f32.mxu0 %v2507
      %2633 = vmatmul.mubr.f32.gmra.mrb[0].mxu0 %v2450
      %v2634 = vpop.f32.mrb[0].mxu0
      %v2635 = vadd.f32 0.0, %v2634
      %v2636 = vpop.f32.mrb[0].mxu0
      %2637 = vmatprep.mubr.f32.mxu0 %v2510
      %2638 = vmatmul.mubr.f32.gmra.mrb[0].mxu0 %v2454
      %v2639 = vpop.f32.mrb[0].mxu0
      %v2640 = vadd.f32 0.0, %v2639
      %v2641 = vpop.f32.mrb[0].mxu0
      %2642 = vmatprep.mubr.f32.mxu0 %v2513
      %2643 = vmatmul.mubr.f32.gmra.mrb[0].mxu0 %v2458
      %v2644 = vpop.f32.mrb[0].mxu0
      %v2645 = vadd.f32 0.0, %v2644
      %v2646 = vpop.f32.mrb[0].mxu0
      %2647 = vmatprep.mubr.f32.mxu0 %v2516
      %2648 = vmatmul.mubr.f32.gmra.mrb[0].mxu0 %v2462
      %v2649 = vpop.f32.mrb[0].mxu0
      %v2650 = vadd.f32 0.0, %v2649
      %v2651 = vpop.f32.mrb[0].mxu0
      %2652 = vmatprep.mubr.f32.mxu0 %v2519
      %2653 = vmatmul.mubr.f32.gmra.mrb[0].mxu0 %v2466
      %v2654 = vpop.f32.mrb[0].mxu0
      %v2655 = vadd.f32 0.0, %v2654
      %v2656 = vpop.f32.mrb[0].mxu0
      %2657 = vmatprep.mubr.f32.mxu0 %v2522
      %2658 = vmatmul.mubr.f32.gmra.mrb[0].mxu0 %v2470
      %v2659 = vpop.f32.mrb[0].mxu0
      %v2660 = vadd.f32 0.0, %v2659
      %v2661 = vpop.f32.mrb[0].mxu0
      %2662 = vmatprep.mubr.f32.mxu0 %v2525
      %2663 = vmatmul.mubr.f32.gmra.mrb[0].mxu0 %v2474
      %v2664 = vpop.f32.mrb[0].mxu0
      %v2665 = vadd.f32 0.0, %v2664
      %v2666 = vpop.f32.mrb[0].mxu0
      %2667 = vmatprep.mubr.f32.mxu0 %v2528
      %2668 = vmatmul.mubr.f32.gmra.mrb[0].mxu0 %v2478
      %v2669 = vpop.f32.mrb[0].mxu0
      %v2670 = vadd.f32 0.0, %v2669
      %v2671 = vpop.f32.mrb[0].mxu0
      %2672 = vmatprep.mubr.f32.mxu0 %v2531
      %2673 = vmatmul.mubr.f32.gmra.mrb[0].mxu0 %v2482
      %v2674 = vpop.f32.mrb[0].mxu0
      %v2675 = vadd.f32 0.0, %v2674
      %v2676 = vpop.f32.mrb[0].mxu0
      %2677 = vdwg.mxu0
      %v2678 = vrcp.pop %v2600
      %v2679 = vrcp.pop %v2605
      %v2680 = vrcp.pop %v2610
      %v2681 = vrcp.pop %v2615
      %v2682 = vrcp.pop %v2620
      %v2683 = vrcp.pop %v2625
      %v2684 = vrcp.pop %v2630
      %v2685 = vrcp.pop %v2635
      %v2686 = vrcp.pop %v2640
      %v2687 = vrcp.pop %v2645
      %v2688 = vrcp.pop %v2650
      %v2689 = vrcp.pop %v2655
      %v2690 = vrcp.pop %v2660
      %v2691 = vrcp.pop %v2665
      %v2692 = vrcp.pop %v2670
      %v2693 = vrcp.pop %v2675
      %2695 = vset.pattern.permute.xlu0 0
      %2696 = vperm.xlu0 %2695, %v2678
      %v2697 = vpop.permute.xlu0 %2696
      %2700 = vset.pattern.permute.xlu0 0
      %2701 = vperm.xlu0 %2700, %v2679
      %v2702 = vpop.permute.xlu0 %2701
      %2705 = vset.pattern.permute.xlu0 0
      %2706 = vperm.xlu0 %2705, %v2680
      %v2707 = vpop.permute.xlu0 %2706
      %2710 = vset.pattern.permute.xlu0 0
      %2711 = vperm.xlu0 %2710, %v2681
      %v2712 = vpop.permute.xlu0 %2711
      %2715 = vset.pattern.permute.xlu0 0
      %2716 = vperm.xlu0 %2715, %v2682
      %v2717 = vpop.permute.xlu0 %2716
      %2720 = vset.pattern.permute.xlu0 0
      %2721 = vperm.xlu0 %2720, %v2683
      %v2722 = vpop.permute.xlu0 %2721
      %2725 = vset.pattern.permute.xlu0 0
      %2726 = vperm.xlu0 %2725, %v2684
      %v2727 = vpop.permute.xlu0 %2726
      %2730 = vset.pattern.permute.xlu0 0
      %2731 = vperm.xlu0 %2730, %v2685
      %v2732 = vpop.permute.xlu0 %2731
      %2735 = vset.pattern.permute.xlu0 0
      %2736 = vperm.xlu0 %2735, %v2686
      %v2737 = vpop.permute.xlu0 %2736
      %2740 = vset.pattern.permute.xlu0 0
      %2741 = vperm.xlu0 %2740, %v2687
      %v2742 = vpop.permute.xlu0 %2741
      %2745 = vset.pattern.permute.xlu0 0
      %2746 = vperm.xlu0 %2745, %v2688
      %v2747 = vpop.permute.xlu0 %2746
      %2750 = vset.pattern.permute.xlu0 0
      %2751 = vperm.xlu0 %2750, %v2689
      %v2752 = vpop.permute.xlu0 %2751
      %2755 = vset.pattern.permute.xlu0 0
      %2756 = vperm.xlu0 %2755, %v2690
      %v2757 = vpop.permute.xlu0 %2756
      %2760 = vset.pattern.permute.xlu0 0
      %2761 = vperm.xlu0 %2760, %v2691
      %v2762 = vpop.permute.xlu0 %2761
      %2765 = vset.pattern.permute.xlu0 0
      %2766 = vperm.xlu0 %2765, %v2692
      %v2767 = vpop.permute.xlu0 %2766
      %2770 = vset.pattern.permute.xlu0 0
      %2771 = vperm.xlu0 %2770, %v2693
      %v2772 = vpop.permute.xlu0 %2771
      %v2774 = vmul.f32 %v2422, %v2697
      %v2775 = vmul.f32 %v2424, %v2697
      %v2776 = vmul.f32 %v2426, %v2702
      %v2777 = vmul.f32 %v2428, %v2702
      %v2778 = vmul.f32 %v2430, %v2707
      %v2779 = vmul.f32 %v2432, %v2707
      %v2780 = vmul.f32 %v2434, %v2712
      %v2781 = vmul.f32 %v2436, %v2712
      %v2782 = vmul.f32 %v2438, %v2717
      %v2783 = vmul.f32 %v2440, %v2717
      %v2784 = vmul.f32 %v2442, %v2722
      %v2785 = vmul.f32 %v2444, %v2722
      %v2786 = vmul.f32 %v2446, %v2727
      %v2787 = vmul.f32 %v2448, %v2727
      %v2788 = vmul.f32 %v2450, %v2732
      %v2789 = vmul.f32 %v2452, %v2732
      %v2790 = vmul.f32 %v2454, %v2737
      %v2791 = vmul.f32 %v2456, %v2737
      %v2792 = vmul.f32 %v2458, %v2742
      %v2793 = vmul.f32 %v2460, %v2742
      %v2794 = vmul.f32 %v2462, %v2747
      %v2795 = vmul.f32 %v2464, %v2747
      %v2796 = vmul.f32 %v2466, %v2752
      %v2797 = vmul.f32 %v2468, %v2752
      %v2798 = vmul.f32 %v2470, %v2757
      %v2799 = vmul.f32 %v2472, %v2757
      %v2800 = vmul.f32 %v2474, %v2762
      %v2801 = vmul.f32 %v2476, %v2762
      %v2802 = vmul.f32 %v2478, %v2767
      %v2803 = vmul.f32 %v2480, %v2767
      %v2804 = vmul.f32 %v2482, %v2772
      %v2805 = vmul.f32 %v2484, %v2772
      %v2806 = vpack.c.bf16 %v2776, %v2774
      %v2807 = vpack.c.bf16 %v2777, %v2775
      %v2808 = vpack.c.bf16 %v2780, %v2778
      %v2809 = vpack.c.bf16 %v2781, %v2779
      %v2810 = vpack.c.bf16 %v2784, %v2782
      %v2811 = vpack.c.bf16 %v2785, %v2783
      %v2812 = vpack.c.bf16 %v2788, %v2786
      %v2813 = vpack.c.bf16 %v2789, %v2787
      %v2814 = vpack.c.bf16 %v2792, %v2790
      %v2815 = vpack.c.bf16 %v2793, %v2791
      %v2816 = vpack.c.bf16 %v2796, %v2794
      %v2817 = vpack.c.bf16 %v2797, %v2795
      %v2818 = vpack.c.bf16 %v2800, %v2798
      %v2819 = vpack.c.bf16 %v2801, %v2799
      %v2820 = vpack.c.bf16 %v2804, %v2802
      %v2821 = vpack.c.bf16 %v2805, %v2803
      %2822 = vrot.lane.b32.xlu0 %v1533, 112
      %v2823 = vpop.permute.xlu0 %2822
      %2824 = vrot.lane.b32.xlu0 %v1534, 112
      %v2825 = vpop.permute.xlu0 %2824
      %2826 = vrot.lane.b32.xlu0 %v1535, 112
      %v2827 = vpop.permute.xlu0 %2826
      %2828 = vrot.lane.b32.xlu0 %v1536, 112
      %v2829 = vpop.permute.xlu0 %2828
      %2830 = vrot.lane.b32.xlu0 %v1537, 112
      %v2831 = vpop.permute.xlu0 %2830
      %2832 = vrot.lane.b32.xlu0 %v1538, 112
      %v2833 = vpop.permute.xlu0 %2832
      %2834 = vrot.lane.b32.xlu0 %v1539, 112
      %v2835 = vpop.permute.xlu0 %2834
      %2836 = vrot.lane.b32.xlu0 %v1540, 112
      %v2837 = vpop.permute.xlu0 %2836
      %2838 = vrot.lane.b32.xlu0 %v1541, 112
      %v2839 = vpop.permute.xlu0 %2838
      %v2850 = vsel %vm710, %v2807, 0
      %v2853 = vsel %vm710, %v2809, 0
      %v2856 = vsel %vm710, %v2811, 0
      %v2859 = vsel %vm710, %v2813, 0
      %2861 = vmatprep.subr.bf16.mxu0 0
      %2862 = vmatpush1.bf16.msra.mxu0 %v2823
      %2863 = vmatprep.subr.bf16.mxu0 0
      %2864 = vmatpush1.bf16.msra.mxu0 %v2825
      %2865 = vmatprep.subr.bf16.mxu0 0
      %2866 = vmatpush1.bf16.msra.mxu0 %v2827
      %2867 = vmatprep.subr.bf16.mxu0 0
      %2868 = vmatpush1.bf16.msra.mxu0 %v2829
      %2869 = vmatprep.subr.bf16.mxu0 0
      %2870 = vmatpush1.bf16.msra.mxu0 %v2831
      %2871 = vmatprep.subr.bf16.mxu0 0
      %2872 = vmatpush1.bf16.msra.mxu0 %v2833
      %2873 = vmatprep.subr.bf16.mxu0 0
      %2874 = vmatpush1.bf16.msra.mxu0 %v2835
      %2875 = vmatprep.subr.bf16.mxu0 0
      %2876 = vmatpush1.bf16.msra.mxu0 %v2837
      %2877 = vmatprep.subr.bf16.mxu0 0
      %2878 = vmatpush1.bf16.msra.mxu0 %v2839
      %2879 = vmatprep.subr.bf16.mxu0 0
      %2880 = vmatpush1.bf16.msra.mxu0 0
      %2881 = vmatprep.subr.bf16.mxu0 0
      %2882 = vmatpush1.bf16.msra.mxu0 0
      %2883 = vmatprep.subr.bf16.mxu0 0
      %2884 = vmatpush1.bf16.msra.mxu0 0
      %2885 = vmatprep.subr.bf16.mxu0 0
      %2886 = vmatpush1.bf16.msra.mxu0 0
      %2887 = vmatprep.subr.bf16.mxu0 0
      %2888 = vmatpush1.bf16.msra.mxu0 0
      %2889 = vmatprep.subr.bf16.mxu0 0
      %2890 = vmatpush1.bf16.msra.mxu0 0
      %2891 = vmatprep.subr.bf16.mxu0 0
      %2892 = vmatpush1.bf16.msra.mxu0 0
      %2893 = vmatprep.mubr.bf16.mxu0 %v2850
      %2894 = vmatmul.mubr.bf16.gmra.mrb[0].mxu0 %v2806
      %v2895 = vpop.f32.mrb[0].mxu0
      %v2896 = vadd.f32 0.0, %v2895
      %v2897 = vpop.f32.mrb[0].mxu0
      %v2898 = vpop.f32.mrb[0].mxu0
      %v2899 = vadd.f32 0.0, %v2898
      %v2900 = vpop.f32.mrb[0].mxu0
      %2901 = vmatprep.mubr.bf16.mxu0 %v2853
      %2902 = vmatmul.mubr.bf16.gmra.mrb[0].mxu0 %v2808
      %v2903 = vpop.f32.mrb[0].mxu0
      %v2904 = vadd.f32 0.0, %v2903
      %v2905 = vpop.f32.mrb[0].mxu0
      %v2906 = vpop.f32.mrb[0].mxu0
      %v2907 = vadd.f32 0.0, %v2906
      %v2908 = vpop.f32.mrb[0].mxu0
      %2909 = vmatprep.mubr.bf16.mxu0 %v2856
      %2910 = vmatmul.mubr.bf16.gmra.mrb[0].mxu0 %v2810
      %v2911 = vpop.f32.mrb[0].mxu0
      %v2912 = vadd.f32 0.0, %v2911
      %v2913 = vpop.f32.mrb[0].mxu0
      %v2914 = vpop.f32.mrb[0].mxu0
      %v2915 = vadd.f32 0.0, %v2914
      %v2916 = vpop.f32.mrb[0].mxu0
      %2917 = vmatprep.mubr.bf16.mxu0 %v2859
      %2918 = vmatmul.mubr.bf16.gmra.mrb[0].mxu0 %v2812
      %v2919 = vpop.f32.mrb[0].mxu0
      %v2920 = vadd.f32 0.0, %v2919
      %v2921 = vpop.f32.mrb[0].mxu0
      %v2922 = vpop.f32.mrb[0].mxu0
      %v2923 = vadd.f32 0.0, %v2922
      %v2924 = vpop.f32.mrb[0].mxu0
      %2925 = vdwg.mxu0
      %2926 = vrot.lane.b32.xlu0 %v1664, 112
      %v2927 = vpop.permute.xlu0 %2926
      %2928 = vrot.lane.b32.xlu0 %v1665, 112
      %v2929 = vpop.permute.xlu0 %2928
      %2930 = vrot.lane.b32.xlu0 %v1666, 112
      %v2931 = vpop.permute.xlu0 %2930
      %2932 = vrot.lane.b32.xlu0 %v1667, 112
      %v2933 = vpop.permute.xlu0 %2932
      %2934 = vrot.lane.b32.xlu0 %v1668, 112
      %v2935 = vpop.permute.xlu0 %2934
      %2936 = vrot.lane.b32.xlu0 %v1669, 112
      %v2937 = vpop.permute.xlu0 %2936
      %2938 = vrot.lane.b32.xlu0 %v1670, 112
      %v2939 = vpop.permute.xlu0 %2938
      %2940 = vrot.lane.b32.xlu0 %v1671, 112
      %v2941 = vpop.permute.xlu0 %2940
      %2942 = vrot.lane.b32.xlu0 %v1672, 112
      %v2943 = vpop.permute.xlu0 %2942
      %v2954 = vsel %vm710, %v2815, 0
      %v2957 = vsel %vm710, %v2817, 0
      %v2960 = vsel %vm710, %v2819, 0
      %v2963 = vsel %vm710, %v2821, 0
      %2965 = vmatprep.subr.bf16.mxu0 0
      %2966 = vmatpush1.bf16.msra.mxu0 %v2927
      %2967 = vmatprep.subr.bf16.mxu0 0
      %2968 = vmatpush1.bf16.msra.mxu0 %v2929
      %2969 = vmatprep.subr.bf16.mxu0 0
      %2970 = vmatpush1.bf16.msra.mxu0 %v2931
      %2971 = vmatprep.subr.bf16.mxu0 0
      %2972 = vmatpush1.bf16.msra.mxu0 %v2933
      %2973 = vmatprep.subr.bf16.mxu0 0
      %2974 = vmatpush1.bf16.msra.mxu0 %v2935
      %2975 = vmatprep.subr.bf16.mxu0 0
      %2976 = vmatpush1.bf16.msra.mxu0 %v2937
      %2977 = vmatprep.subr.bf16.mxu0 0
      %2978 = vmatpush1.bf16.msra.mxu0 %v2939
      %2979 = vmatprep.subr.bf16.mxu0 0
      %2980 = vmatpush1.bf16.msra.mxu0 %v2941
      %2981 = vmatprep.subr.bf16.mxu0 0
      %2982 = vmatpush1.bf16.msra.mxu0 %v2943
      %2983 = vmatprep.subr.bf16.mxu0 0
      %2984 = vmatpush1.bf16.msra.mxu0 0
      %2985 = vmatprep.subr.bf16.mxu0 0
      %2986 = vmatpush1.bf16.msra.mxu0 0
      %2987 = vmatprep.subr.bf16.mxu0 0
      %2988 = vmatpush1.bf16.msra.mxu0 0
      %2989 = vmatprep.subr.bf16.mxu0 0
      %2990 = vmatpush1.bf16.msra.mxu0 0
      %2991 = vmatprep.subr.bf16.mxu0 0
      %2992 = vmatpush1.bf16.msra.mxu0 0
      %2993 = vmatprep.subr.bf16.mxu0 0
      %2994 = vmatpush1.bf16.msra.mxu0 0
      %2995 = vmatprep.subr.bf16.mxu0 0
      %2996 = vmatpush1.bf16.msra.mxu0 0
      %2997 = vmatprep.mubr.bf16.mxu0 %v2954
      %2998 = vmatmul.mubr.bf16.gmra.mrb[0].mxu0 %v2814
      %v2999 = vpop.f32.mrb[0].mxu0
      %v3000 = vadd.f32 0.0, %v2999
      %v3001 = vpop.f32.mrb[0].mxu0
      %v3002 = vpop.f32.mrb[0].mxu0
      %v3003 = vadd.f32 0.0, %v3002
      %v3004 = vpop.f32.mrb[0].mxu0
      %3005 = vmatprep.mubr.bf16.mxu0 %v2957
      %3006 = vmatmul.mubr.bf16.gmra.mrb[0].mxu0 %v2816
      %v3007 = vpop.f32.mrb[0].mxu0
      %v3008 = vadd.f32 0.0, %v3007
      %v3009 = vpop.f32.mrb[0].mxu0
      %v3010 = vpop.f32.mrb[0].mxu0
      %v3011 = vadd.f32 0.0, %v3010
      %v3012 = vpop.f32.mrb[0].mxu0
      %3013 = vmatprep.mubr.bf16.mxu0 %v2960
      %3014 = vmatmul.mubr.bf16.gmra.mrb[0].mxu0 %v2818
      %v3015 = vpop.f32.mrb[0].mxu0
      %v3016 = vadd.f32 0.0, %v3015
      %v3017 = vpop.f32.mrb[0].mxu0
      %v3018 = vpop.f32.mrb[0].mxu0
      %v3019 = vadd.f32 0.0, %v3018
      %v3020 = vpop.f32.mrb[0].mxu0
      %3021 = vmatprep.mubr.bf16.mxu0 %v2963
      %3022 = vmatmul.mubr.bf16.gmra.mrb[0].mxu0 %v2820
      %v3023 = vpop.f32.mrb[0].mxu0
      %v3024 = vadd.f32 0.0, %v3023
      %v3025 = vpop.f32.mrb[0].mxu0
      %v3026 = vpop.f32.mrb[0].mxu0
      %v3027 = vadd.f32 0.0, %v3026
      %v3028 = vpop.f32.mrb[0].mxu0
      %3029 = vdwg.mxu0
      %v3030 = vpack.c.bf16 %v2899, %v2896
      %v3031 = vpack.c.bf16 %v2907, %v2904
      %v3032 = vpack.c.bf16 %v2915, %v2912
      %v3033 = vpack.c.bf16 %v2923, %v2920
      %v3034 = vpack.c.bf16 %v3003, %v3000
      %v3035 = vpack.c.bf16 %v3011, %v3008
      %v3036 = vpack.c.bf16 %v3019, %v3016
      %v3037 = vpack.c.bf16 %v3027, %v3024
      %v3046 = vunpack.c.l.b16 %v3030
      %v3047 = vunpack.c.h.b16 %v3030
      %v3048 = vunpack.c.l.b16 %v3031
      %v3049 = vunpack.c.h.b16 %v3031
      %v3050 = vunpack.c.l.b16 %v3032
      %v3051 = vunpack.c.h.b16 %v3032
      %v3052 = vunpack.c.l.b16 %v3033
      %v3053 = vunpack.c.h.b16 %v3033
      %v3054 = vunpack.c.l.b16 %v3034
      %v3055 = vunpack.c.h.b16 %v3034
      %v3056 = vunpack.c.l.b16 %v3035
      %v3057 = vunpack.c.h.b16 %v3035
      %v3058 = vunpack.c.l.b16 %v3036
      %v3059 = vunpack.c.h.b16 %v3036
      %v3060 = vunpack.c.l.b16 %v3037
      %v3061 = vunpack.c.h.b16 %v3037
      %v3062 = vpack.c.b16 %v3046, %v3046
      %v3063 = vpack.c.b16 %v3047, %v3047
      %v3064 = vpack.c.b16 %v3048, %v3048
      %v3065 = vpack.c.b16 %v3049, %v3049
      %v3066 = vpack.c.b16 %v3050, %v3050
      %v3067 = vpack.c.b16 %v3051, %v3051
      %v3068 = vpack.c.b16 %v3052, %v3052
      %v3069 = vpack.c.b16 %v3053, %v3053
      %v3070 = vpack.c.b16 %v3054, %v3054
      %v3071 = vpack.c.b16 %v3055, %v3055
      %v3072 = vpack.c.b16 %v3056, %v3056
      %v3073 = vpack.c.b16 %v3057, %v3057
      %v3074 = vpack.c.b16 %v3058, %v3058
      %v3075 = vpack.c.b16 %v3059, %v3059
      %v3076 = vpack.c.b16 %v3060, %v3060
      %v3077 = vpack.c.b16 %v3061, %v3061
      %3078 = vrot.lane.b32.xlu0 %v3062, 16
      %v3079 = vpop.permute.xlu0 %3078
      %3080 = vrot.lane.b32.xlu0 %v3063, 16
      %v3081 = vpop.permute.xlu0 %3080
      %3082 = vrot.lane.b32.xlu0 %v3064, 16
      %v3083 = vpop.permute.xlu0 %3082
      %3084 = vrot.lane.b32.xlu0 %v3065, 16
      %v3085 = vpop.permute.xlu0 %3084
      %3086 = vrot.lane.b32.xlu0 %v3066, 16
      %v3087 = vpop.permute.xlu0 %3086
      %3088 = vrot.lane.b32.xlu0 %v3067, 16
      %v3089 = vpop.permute.xlu0 %3088
      %3090 = vrot.lane.b32.xlu0 %v3068, 16
      %v3091 = vpop.permute.xlu0 %3090
      %3092 = vrot.lane.b32.xlu0 %v3069, 16
      %v3093 = vpop.permute.xlu0 %3092
      %3094 = vrot.lane.b32.xlu0 %v3070, 16
      %v3095 = vpop.permute.xlu0 %3094
      %3096 = vrot.lane.b32.xlu0 %v3071, 16
      %v3097 = vpop.permute.xlu0 %3096
      %3098 = vrot.lane.b32.xlu0 %v3072, 16
      %v3099 = vpop.permute.xlu0 %3098
      %3100 = vrot.lane.b32.xlu0 %v3073, 16
      %v3101 = vpop.permute.xlu0 %3100
      %3102 = vrot.lane.b32.xlu0 %v3074, 16
      %v3103 = vpop.permute.xlu0 %3102
      %3104 = vrot.lane.b32.xlu0 %v3075, 16
      %v3105 = vpop.permute.xlu0 %3104
      %3106 = vrot.lane.b32.xlu0 %v3076, 16
      %v3107 = vpop.permute.xlu0 %3106
      %3108 = vrot.lane.b32.xlu0 %v3077, 16
      %v3109 = vpop.permute.xlu0 %3108
      %vm3126 = vcmask 257152
      %3127 = vst.msk [vmem:[%s306] sm:$0xf] %vm3126, %v3079
      %3128 = vst.msk [vmem:[%s306 + $0x4] sm:$0xf] %vm3126, %v3081
      %3129 = vst.msk [vmem:[%s306 + $0x8] sm:$0xf] %vm3126, %v3083
      %3130 = vst.msk [vmem:[%s306 + $0xc] sm:$0xf] %vm3126, %v3085
      %3131 = vst.msk [vmem:[%s306 + $0x10] sm:$0xf] %vm3126, %v3087
      %3132 = vst.msk [vmem:[%s306 + $0x14] sm:$0xf] %vm3126, %v3089
      %3133 = vst.msk [vmem:[%s306 + $0x18] sm:$0xf] %vm3126, %v3091
      %3134 = vst.msk [vmem:[%s306 + $0x1c] sm:$0xf] %vm3126, %v3093
      %3135 = vst.msk [vmem:[%s306 + $0x20] sm:$0xf] %vm3126, %v3095
      %3136 = vst.msk [vmem:[%s306 + $0x24] sm:$0xf] %vm3126, %v3097
      %3137 = vst.msk [vmem:[%s306 + $0x28] sm:$0xf] %vm3126, %v3099
      %3138 = vst.msk [vmem:[%s306 + $0x2c] sm:$0xf] %vm3126, %v3101
      %3139 = vst.msk [vmem:[%s306 + $0x30] sm:$0xf] %vm3126, %v3103
      %3140 = vst.msk [vmem:[%s306 + $0x34] sm:$0xf] %vm3126, %v3105
      %3141 = vst.msk [vmem:[%s306 + $0x38] sm:$0xf] %vm3126, %v3107
      %3142 = vst.msk [vmem:[%s306 + $0x3c] sm:$0xf] %vm3126, %v3109
      %s3143 = smul.u32 2, %s16
      %p3144 = scmp.lt.s32.totalorder %s3143, 7
      %s3145 = scalar_select %p3144, %s3143, 7
      %s3146 = smul.addr %s3145, 8
      %s3147 = smul.addr %s3146, 4
      %s3148 = scalar_lea.vmem %s5, %s3147
      // Predicated region
      $region41: #{_lambda_.4} parent=39 // pred_check
        %p3149 = pneg %p159
      $region42: #{_lambda_.4} parent=39 // pred_check_branch
        %3151 = sbr.rel (%p3149) target = $region44
      $region43: #{_lambda_.4} parent=39 // pred_region
        %s3152 = smul.u32 2, %s16
      $region44: #{_lambda_.4} parent=39 // pred_fallthru
        _
    $region40: #{_lambda_.4} parent=5 // pred_fallthru
      _
    %p3153 = scmp.le.s32.totalorder 2, %s11
    // Predicated region
    $region45: #{_lambda_.4} parent=5 // pred_check
      %p3154 = pneg %p3153
    $region46: #{_lambda_.4} parent=5 // pred_check_branch
      %3156 = sbr.rel (%p3154) target = $region48
    $region47: #{_lambda_.4} parent=5 // pred_region
      %s3157 = ssub.s32 %s11, 2
      // Predicated region
      $region49: #{_lambda_.4} parent=47 // pred_check
        %p3158 = pneg %p165
      $region50: #{_lambda_.4} parent=47 // pred_check_branch
        %3160 = sbr.rel (%p3158) target = $region52
      $region51: #{_lambda_.4} parent=47 // pred_region
        %s3161 = smul.u32 2, %s17
        %p3162 = scmp.lt.s32.totalorder %s3161, 7
        %s3163 = scalar_select %p3162, %s3161, 7
        %s3164 = smul.addr %s3163, 8
        %s3165 = smul.addr %s3164, 4
        %s3166 = scalar_lea.vmem %s5, %s3165
      $region52: #{_lambda_.4} parent=47 // pred_fallthru
        _
    $region48: #{_lambda_.4} parent=5 // pred_fallthru
      _
  $region6: #{_lambda_.4} parent=0 // loop_footer
    %s15 = sadd.s32 1, %s11
  $region7: #{_lambda_.4} parent=0 // loop_footer_branch
    %10 = sbr.rel target = $region3
  $region8: #{_lambda_.4} parent=0 // loop_exit
    _

</llo_original>
